<compile_context>
chip_gen: v6e
topology: v6e:2x2x1
jax: 0.10.0
libtpu: 0.0.40
codegen_flags: <defaults>
</compile_context>

<pallas_src>
import functools
import math

import jax
import jax.numpy as jnp
from jax.experimental import pallas as pl
from jax.experimental.pallas import tpu as pltpu

# ----------------------------- model config (small) -----------------------------
VOCAB = 64
D_MODEL = 32
NUM_HEADS = 4
HEAD_DIM = D_MODEL // NUM_HEADS      # 8
FFN_DIM = 64
NUM_LAYERS = 2
MAX_SEQ_LEN = 16
PAD_TOKEN_ID = 0
RMS_EPS = 1e-5
ROPE_BASE = 10000.0
LOGITS_PAD = 128                     # lane-dense logits writeback (>= VOCAB, multiple of 128)
NEG_INF = -1e30                      # safe in f32 (scores/softmax stay f32)


# ================================ fused Pallas kernel ================================

def _fused_decoder_kernel(h0_ref, cos_ref, sin_ref, bias_ref,
                          wqkv_ref, wo_ref, wgu_ref, wdown_ref, wout_ref,
                          logits_ref,
                          *, num_layers, num_heads, head_dim, ffn_dim, eps):
    """One grid step = full forward for a chunk of Bc batch elements stacked as rows."""
    N, D = h0_ref.shape                                  # N = Bc * S

    h = h0_ref[...]                                      # [N, D] token embeddings
    cos_f = cos_ref[...]                                 # [N, D]
    sin_f = sin_ref[...]                                 # [N, D] (interleaved sign folded in)
    bias3 = bias_ref[...][None, :, :]                    # [1, N, N] block-diag causal bias

    for l in range(num_layers):
        x = h

        # --- self-attention block (sa_norm gamma + 1/sqrt(hd) folded into wqkv) ---
        xn = x * jax.lax.rsqrt(jnp.mean(x * x, axis=-1, keepdims=True) + eps)
        qkv = jnp.dot(xn, wqkv_ref[l], preferred_element_type=jnp.float32)   # [N, 5D]
        q    = qkv[:, 0 * D:1 * D]
        k    = qkv[:, 1 * D:2 * D]
        v    = qkv[:, 2 * D:3 * D]
        q_sw = qkv[:, 3 * D:4 * D]                        # pair-swapped q (host-folded)
        k_sw = qkv[:, 4 * D:5 * D]                        # pair-swapped k (host-folded)

        # RoPE: pure VPU mul-add (no extra matmuls)
        q = q * cos_f + q_sw * sin_f
        k = k * cos_f + k_sw * sin_f

        # per-head scores on the MXU, softmax batched across heads on [H, N, N]
        s3 = jnp.stack(
            [jax.lax.dot_general(q[:, hh * head_dim:(hh + 1) * head_dim],
                                 k[:, hh * head_dim:(hh + 1) * head_dim],
                                 (((1,), (1,)), ((), ())),
                                 preferred_element_type=jnp.float32)
             for hh in range(num_heads)], axis=0)                         # [H, N, N]
        s3 = s3 + bias3                                   # block-diagonal causal mask (additive)
        m3 = jnp.max(s3, axis=-1, keepdims=True)
        p3 = jnp.exp(s3 - m3)
        p3 = p3 / jnp.sum(p3, axis=-1, keepdims=True)     # exact divide: parity with torch softmax

        # per-head context + output projection, accumulated (no lane-axis concat)
        wo_l = wo_ref[l]                                  # [D, D]
        h1 = x
        for hh in range(num_heads):
            lo, hi = hh * head_dim, (hh + 1) * head_dim
            o = jnp.dot(p3[hh], v[:, lo:hi], preferred_element_type=jnp.float32)       # [N, hd]
            h1 = h1 + jnp.dot(o, wo_l[lo:hi, :], preferred_element_type=jnp.float32)   # [N, D]

        # --- MLP block (SwiGLU); mlp_norm gamma folded into wgu rows ---
        hn = h1 * jax.lax.rsqrt(jnp.mean(h1 * h1, axis=-1, keepdims=True) + eps)
        gu = jnp.dot(hn, wgu_ref[l], preferred_element_type=jnp.float32)  # [N, 2F]
        g = gu[:, :ffn_dim]
        u = gu[:, ffn_dim:]
        act = g * jax.nn.sigmoid(g) * u
        h = h1 + jnp.dot(act, wdown_ref[l], preferred_element_type=jnp.float32)

    # Tied output head on the *un-normed* h (reference quirk: norm(h) unused for logits).
    # Output is padded to 128 lanes -> unmasked full-lane stores; wrapper slices back.
    logits_ref[...] = jnp.dot(h, wout_ref[...], preferred_element_type=jnp.float32)


# ================================ host-side helpers ================================

def _make_rope_tables(seq_len, head_dim, num_heads, base=ROPE_BASE):
    """Full-width [S, H*hd] cos and sign-folded sin tables for interleaved-pair RoPE."""
    half = head_dim // 2
    theta = 1.0 / (base ** (jnp.arange(half, dtype=jnp.float32) * 2.0 / head_dim))
    angle = jnp.outer(jnp.arange(seq_len, dtype=jnp.float32), theta)     # [S, half]
    cos_i = jnp.repeat(jnp.cos(angle), 2, axis=-1)                       # [S, hd]  c0 c0 c1 c1 ...
    sin_i = jnp.repeat(jnp.sin(angle), 2, axis=-1)                       # [S, hd]
    sign = jnp.tile(jnp.array([-1.0, 1.0], jnp.float32), half)           # -s at even, +s at odd
    cos_full = jnp.tile(cos_i, (1, num_heads))                           # [S, H*hd]
    sin_full = jnp.tile(sin_i * sign[None, :], (1, num_heads))           # [S, H*hd]
    return cos_full, sin_full


@jax.jit
def transformer_decoder_phi_forward(tokens, params):
    B, S = tokens.shape
    assert S <= MAX_SEQ_LEN

    # padding mask for the PHi layer (self_prediction_layer is None -> unused, like reference)
    _padding_mask = tokens == PAD_TOKEN_ID
    del _padding_mask

    # ---- batch blocking: Bc elements per grid step (amortizes per-step overhead) ----
    Bc = B if B <= 8 else 8
    G = -(-B // Bc)                      # ceil(B / Bc)
    B_pad = G * Bc
    N = Bc * S

    # embedding gather in the wrapper (cheaper than an in-kernel one-hot matmul)
    h0 = jnp.take(params["emb"], tokens.astype(jnp.int32), axis=0)       # [B, S, D]
    if B_pad != B:
        h0 = jnp.pad(h0, ((0, B_pad - B), (0, 0), (0, 0)))
    h0 = h0.reshape(G, N, D_MODEL)

    # RoPE tables tiled over the Bc stacked batch elements (constant-folded under jit)
    cos_s, sin_s = _make_rope_tables(S, HEAD_DIM, NUM_HEADS)             # [S, D]
    cos_f = jnp.tile(cos_s, (Bc, 1))                                     # [N, D]
    sin_f = jnp.tile(sin_s, (Bc, 1))

    # block-diagonal (per batch element) causal additive bias, [N, N]
    pos = jnp.arange(N, dtype=jnp.int32)
    same_elem = (pos[:, None] // S) == (pos[None, :] // S)
    causal = pos[:, None] >= pos[None, :]
    bias = jnp.where(same_elem & causal, 0.0, NEG_INF).astype(jnp.float32)

    kernel = functools.partial(
        _fused_decoder_kernel,
        num_layers=NUM_LAYERS, num_heads=NUM_HEADS, head_dim=HEAD_DIM,
        ffn_dim=FFN_DIM, eps=RMS_EPS)

    def _resident(shape):
        # constant block index -> DMA'd once, stays resident in VMEM across the grid
        nd = len(shape)
        return pl.BlockSpec(shape, lambda g, _nd=nd: (0,) * _nd)
        # NOTE: pipeline_mode=pl.Buffered(1) would halve the resident VMEM copies;
        # skipped here for maximum lowering robustness (footprint is ~0.2 MB anyway).

    in_specs = [
        pl.BlockSpec((None, N, D_MODEL), lambda g: (g, 0, 0)),           # h0 chunk (per grid step)
        _resident((N, D_MODEL)),                                         # RoPE cos
        _resident((N, D_MODEL)),                                         # RoPE ±sin
        _resident((N, N)),                                               # attention bias
        _resident((NUM_LAYERS, D_MODEL, 5 * D_MODEL)),                   # fused wq|wk|wv|wqP|wkP
        _resident((NUM_LAYERS, D_MODEL, D_MODEL)),                       # wo
        _resident((NUM_LAYERS, D_MODEL, 2 * FFN_DIM)),                   # fused w_gate|w_up
        _resident((NUM_LAYERS, FFN_DIM, D_MODEL)),                       # w_down
        _resident((D_MODEL, LOGITS_PAD)),                                # tied head (padded, emb.T)
    ]

    logits_pad = pl.pallas_call(
        kernel,
        out_shape=jax.ShapeDtypeStruct((G, N, LOGITS_PAD), jnp.float32),
        grid=(G,),
        in_specs=in_specs,
        out_specs=pl.BlockSpec((None, N, LOGITS_PAD), lambda g: (g, 0, 0)),
        compiler_params=pltpu.CompilerParams(
            dimension_semantics=("parallel",)),          # lets v7x shard batch chunks over 2 TCs
    )(h0, cos_f, sin_f, bias,
      params["w_qkv"], params["wo"], params["w_gu"], params["w_down"], params["w_out"])

    logits = logits_pad.reshape(B_pad, S, LOGITS_PAD)[:B, :, :VOCAB]
    # NOTE: the reference PHi forward also computes last_hidden = norm(h), which is never
    # used for the returned logits; it is dead code and therefore skipped here.
    return logits


def init_params(key):
    """Random module params, with all free host-side folding done once:
       - sa_norm / mlp_norm gammas folded into wqkv / wgu rows,
       - 1/sqrt(head_dim) folded into the q (and q-swapped) columns,
       - RoPE pair-swap permutation folded as extra wq@P | wk@P columns,
       - tied output head pre-transposed and padded to 128 lanes."""
    keys = jax.random.split(key, 1 + NUM_LAYERS)
    emb = jax.random.normal(keys[0], (VOCAB, D_MODEL), jnp.float32) * 0.02

    sa_norm = jnp.ones((NUM_LAYERS, D_MODEL), jnp.float32)     # RMSNorm gammas (default = 1)
    mlp_norm = jnp.ones((NUM_LAYERS, D_MODEL), jnp.float32)
    qscale = 1.0 / math.sqrt(HEAD_DIM)
    pair_perm = jnp.arange(D_MODEL, dtype=jnp.int32) ^ 1       # swap adjacent column pairs

    wqkv_ext, wo, wgu, wdown = [], [], [], []
    for l in range(NUM_LAYERS):
        k = jax.random.split(keys[1 + l], 7)
        wq = jax.random.normal(k[0], (D_MODEL, NUM_HEADS * HEAD_DIM), jnp.float32) * 0.02
        wk = jax.random.normal(k[1], (D_MODEL, NUM_HEADS * HEAD_DIM), jnp.float32) * 0.02
        wv = jax.random.normal(k[2], (D_MODEL, NUM_HEADS * HEAD_DIM), jnp.float32) * 0.02
        w_o = jax.random.normal(k[3], (NUM_HEADS * HEAD_DIM, D_MODEL), jnp.float32) * 0.02
        w_gate = jax.random.normal(k[4], (D_MODEL, FFN_DIM), jnp.float32) * 0.02
        w_up = jax.random.normal(k[5], (D_MODEL, FFN_DIM), jnp.float32) * 0.02
        w_down = jax.random.normal(k[6], (FFN_DIM, D_MODEL), jnp.float32) * 0.02

        wq_s = wq * qscale                                     # attention scale folded into q
        fused = jnp.concatenate(
            [wq_s, wk, wv, wq_s[:, pair_perm], wk[:, pair_perm]], axis=1)   # [D, 5D]
        wqkv_ext.append(sa_norm[l][:, None] * fused)           # sa_norm gamma folded into rows
        wo.append(w_o)
        wgu.append(mlp_norm[l][:, None] *
                   jnp.concatenate([w_gate, w_up], axis=1))    # [D, 2F], mlp_norm folded
        wdown.append(w_down)

    w_out_pad = jnp.zeros((D_MODEL, LOGITS_PAD), jnp.float32).at[:, :VOCAB].set(emb.T)

    return dict(
        emb=emb,
        w_out=w_out_pad,                                       # tied output head, padded lane-dense
        w_qkv=jnp.stack(wqkv_ext),                             # [L, D, 5D]
        wo=jnp.stack(wo),                                      # [L, D, D]
        w_gu=jnp.stack(wgu),                                   # [L, D, 2F]
        w_down=jnp.stack(wdown),                               # [L, F, D]
        final_norm=jnp.ones((D_MODEL,), jnp.float32),          # parity only; unused for logits
    )


if __name__ == "__main__":
    key = jax.random.PRNGKey(0)
    pkey, tkey = jax.random.split(key)
    params = init_params(pkey)

    batch, seq_len = 2, 8
    tokens = jax.random.randint(tkey, (batch, seq_len), 0, VOCAB, dtype=jnp.int32)

    logits = transformer_decoder_phi_forward(tokens, params)
    logits = jax.block_until_ready(logits)
    assert logits.shape == (batch, seq_len, VOCAB)
    assert logits.dtype == jnp.float32
    assert bool(jnp.all(jnp.isfinite(logits)))
    print("KERNEL_OK")
</pallas_src>

<mosaic_0001>
module attributes {stable_mosaic.version = 11 : i64} {
  func.func @_fused_decoder_kernel(%arg0: i32, %arg1: memref<1x16x32xf32, #tpu.memory_space<vmem>>, %arg2: memref<16x32xf32, #tpu.memory_space<vmem>>, %arg3: memref<16x32xf32, #tpu.memory_space<vmem>>, %arg4: memref<16x16xf32, #tpu.memory_space<vmem>>, %arg5: memref<2x32x160xf32, #tpu.memory_space<vmem>>, %arg6: memref<2x32x32xf32, #tpu.memory_space<vmem>>, %arg7: memref<2x32x128xf32, #tpu.memory_space<vmem>>, %arg8: memref<2x64x32xf32, #tpu.memory_space<vmem>>, %arg9: memref<32x128xf32, #tpu.memory_space<vmem>>, %arg10: memref<1x16x128xf32, #tpu.memory_space<vmem>>) attributes {dimension_semantics = [#tpu.dimension_semantics<parallel>], iteration_bounds = array<i64: 1>, scalar_prefetch = 0 : i64, scratch_operands = 0 : i64, tpu.core_type = #tpu.core_type<tc>, window_params = [{transform_indices = @transform_0, window_bounds = array<i64: 1, 16, 32>}, {pipeline_mode = #tpu.pipeline_mode<synchronous>, transform_indices = @transform_1, window_bounds = array<i64: 16, 32>}, {pipeline_mode = #tpu.pipeline_mode<synchronous>, transform_indices = @transform_2, window_bounds = array<i64: 16, 32>}, {pipeline_mode = #tpu.pipeline_mode<synchronous>, transform_indices = @transform_3, window_bounds = array<i64: 16, 16>}, {pipeline_mode = #tpu.pipeline_mode<synchronous>, transform_indices = @transform_4, window_bounds = array<i64: 2, 32, 160>}, {pipeline_mode = #tpu.pipeline_mode<synchronous>, transform_indices = @transform_5, window_bounds = array<i64: 2, 32, 32>}, {pipeline_mode = #tpu.pipeline_mode<synchronous>, transform_indices = @transform_6, window_bounds = array<i64: 2, 32, 128>}, {pipeline_mode = #tpu.pipeline_mode<synchronous>, transform_indices = @transform_7, window_bounds = array<i64: 2, 64, 32>}, {pipeline_mode = #tpu.pipeline_mode<synchronous>, transform_indices = @transform_8, window_bounds = array<i64: 32, 128>}, {transform_indices = @transform_9, window_bounds = array<i64: 1, 16, 128>}]} {
    %c0 = arith.constant 0 : index
    %c0_0 = arith.constant 0 : index
    %c0_1 = arith.constant 0 : index
    %0 = vector.load %arg1[%c0, %c0_0, %c0_1] : memref<1x16x32xf32, #tpu.memory_space<vmem>>, vector<1x16x32xf32>
    %1 = vector.shape_cast %0 : vector<1x16x32xf32> to vector<16x32xf32>
    %c0_2 = arith.constant 0 : index
    %c0_3 = arith.constant 0 : index
    %2 = vector.load %arg2[%c0_2, %c0_3] : memref<16x32xf32, #tpu.memory_space<vmem>>, vector<16x32xf32>
    %c0_4 = arith.constant 0 : index
    %c0_5 = arith.constant 0 : index
    %3 = vector.load %arg3[%c0_4, %c0_5] : memref<16x32xf32, #tpu.memory_space<vmem>>, vector<16x32xf32>
    %c0_6 = arith.constant 0 : index
    %c0_7 = arith.constant 0 : index
    %4 = vector.load %arg4[%c0_6, %c0_7] : memref<16x16xf32, #tpu.memory_space<vmem>>, vector<16x16xf32>
    %5 = vector.shape_cast %4 : vector<16x16xf32> to vector<1x16x16xf32>
    %6 = arith.mulf %1, %1 : vector<16x32xf32>
    %cst = arith.constant dense<0.000000e+00> : vector<16xf32>
    %7 = vector.multi_reduction <add>, %6, %cst [1] : vector<16x32xf32> to vector<16xf32>
    %8 = vector.shape_cast %7 : vector<16xf32> to vector<16x1xf32>
    %cst_8 = arith.constant 3.200000e+01 : f32
    %9 = vector.broadcast %cst_8 : f32 to vector<16x1xf32>
    %10 = arith.divf %8, %9 : vector<16x1xf32>
    %cst_9 = arith.constant 9.99999974E-6 : f32
    %11 = vector.broadcast %cst_9 : f32 to vector<16x1xf32>
    %12 = arith.addf %10, %11 : vector<16x1xf32>
    %13 = math.rsqrt %12 : vector<16x1xf32>
    %14 = vector.broadcast %13 : vector<16x1xf32> to vector<16x32xf32>
    %15 = arith.mulf %1, %14 : vector<16x32xf32>
    %c0_10 = arith.constant 0 : index
    %c0_11 = arith.constant 0 : index
    %c0_12 = arith.constant 0 : index
    %16 = vector.load %arg5[%c0_10, %c0_11, %c0_12] : memref<2x32x160xf32, #tpu.memory_space<vmem>>, vector<1x32x160xf32>
    %17 = vector.shape_cast %16 : vector<1x32x160xf32> to vector<32x160xf32>
    %cst_13 = arith.constant dense<0.000000e+00> : vector<16x160xf32>
    %18 = tpu.matmul %15, %17, %cst_13 {dimension_numbers = #tpu.dot_dimension_numbers<[1], [0], [0], [1], [0, 0, 1, 1], [], []>} : vector<16x32xf32>, vector<32x160xf32>, vector<16x160xf32> -> vector<16x160xf32>
    %19 = vector.extract_strided_slice %18 {offsets = [0, 0], sizes = [16, 32], strides = [1, 1]} : vector<16x160xf32> to vector<16x32xf32>
    %20 = vector.extract_strided_slice %18 {offsets = [0, 32], sizes = [16, 32], strides = [1, 1]} : vector<16x160xf32> to vector<16x32xf32>
    %21 = vector.extract_strided_slice %18 {offsets = [0, 64], sizes = [16, 32], strides = [1, 1]} : vector<16x160xf32> to vector<16x32xf32>
    %22 = vector.extract_strided_slice %18 {offsets = [0, 96], sizes = [16, 32], strides = [1, 1]} : vector<16x160xf32> to vector<16x32xf32>
    %23 = vector.extract_strided_slice %18 {offsets = [0, 128], sizes = [16, 32], strides = [1, 1]} : vector<16x160xf32> to vector<16x32xf32>
    %24 = arith.mulf %19, %2 : vector<16x32xf32>
    %25 = arith.mulf %22, %3 : vector<16x32xf32>
    %26 = arith.addf %24, %25 : vector<16x32xf32>
    %27 = arith.mulf %20, %2 : vector<16x32xf32>
    %28 = arith.mulf %23, %3 : vector<16x32xf32>
    %29 = arith.addf %27, %28 : vector<16x32xf32>
    %30 = vector.extract_strided_slice %26 {offsets = [0, 0], sizes = [16, 8], strides = [1, 1]} : vector<16x32xf32> to vector<16x8xf32>
    %31 = vector.extract_strided_slice %29 {offsets = [0, 0], sizes = [16, 8], strides = [1, 1]} : vector<16x32xf32> to vector<16x8xf32>
    %cst_14 = arith.constant dense<0.000000e+00> : vector<16x16xf32>
    %32 = tpu.matmul %30, %31, %cst_14 {dimension_numbers = #tpu.dot_dimension_numbers<[1], [1], [0], [0], [0, 0, 1, 0], [], []>} : vector<16x8xf32>, vector<16x8xf32>, vector<16x16xf32> -> vector<16x16xf32>
    %33 = vector.extract_strided_slice %26 {offsets = [0, 8], sizes = [16, 8], strides = [1, 1]} : vector<16x32xf32> to vector<16x8xf32>
    %34 = vector.extract_strided_slice %29 {offsets = [0, 8], sizes = [16, 8], strides = [1, 1]} : vector<16x32xf32> to vector<16x8xf32>
    %cst_15 = arith.constant dense<0.000000e+00> : vector<16x16xf32>
    %35 = tpu.matmul %33, %34, %cst_15 {dimension_numbers = #tpu.dot_dimension_numbers<[1], [1], [0], [0], [0, 0, 1, 0], [], []>} : vector<16x8xf32>, vector<16x8xf32>, vector<16x16xf32> -> vector<16x16xf32>
    %36 = vector.extract_strided_slice %26 {offsets = [0, 16], sizes = [16, 8], strides = [1, 1]} : vector<16x32xf32> to vector<16x8xf32>
    %37 = vector.extract_strided_slice %29 {offsets = [0, 16], sizes = [16, 8], strides = [1, 1]} : vector<16x32xf32> to vector<16x8xf32>
    %cst_16 = arith.constant dense<0.000000e+00> : vector<16x16xf32>
    %38 = tpu.matmul %36, %37, %cst_16 {dimension_numbers = #tpu.dot_dimension_numbers<[1], [1], [0], [0], [0, 0, 1, 0], [], []>} : vector<16x8xf32>, vector<16x8xf32>, vector<16x16xf32> -> vector<16x16xf32>
    %39 = vector.extract_strided_slice %26 {offsets = [0, 24], sizes = [16, 8], strides = [1, 1]} : vector<16x32xf32> to vector<16x8xf32>
    %40 = vector.extract_strided_slice %29 {offsets = [0, 24], sizes = [16, 8], strides = [1, 1]} : vector<16x32xf32> to vector<16x8xf32>
    %cst_17 = arith.constant dense<0.000000e+00> : vector<16x16xf32>
    %41 = tpu.matmul %39, %40, %cst_17 {dimension_numbers = #tpu.dot_dimension_numbers<[1], [1], [0], [0], [0, 0, 1, 0], [], []>} : vector<16x8xf32>, vector<16x8xf32>, vector<16x16xf32> -> vector<16x16xf32>
    %42 = vector.shape_cast %32 : vector<16x16xf32> to vector<1x16x16xf32>
    %43 = vector.shape_cast %35 : vector<16x16xf32> to vector<1x16x16xf32>
    %44 = vector.shape_cast %38 : vector<16x16xf32> to vector<1x16x16xf32>
    %45 = vector.shape_cast %41 : vector<16x16xf32> to vector<1x16x16xf32>
    %46 = tpu.concatenate %42, %43, %44, %45 in 0 : vector<1x16x16xf32>, vector<1x16x16xf32>, vector<1x16x16xf32>, vector<1x16x16xf32> -> vector<4x16x16xf32>
    %47 = vector.broadcast %5 : vector<1x16x16xf32> to vector<4x16x16xf32>
    %48 = arith.addf %46, %47 : vector<4x16x16xf32>
    %cst_18 = arith.constant dense<0xFF800000> : vector<4x16xf32>
    %49 = vector.multi_reduction <maximumf>, %48, %cst_18 [2] : vector<4x16x16xf32> to vector<4x16xf32>
    %50 = vector.shape_cast %49 : vector<4x16xf32> to vector<4x16x1xf32>
    %51 = vector.broadcast %50 : vector<4x16x1xf32> to vector<4x16x16xf32>
    %52 = arith.subf %48, %51 : vector<4x16x16xf32>
    %53 = math.exp %52 : vector<4x16x16xf32>
    %cst_19 = arith.constant dense<0.000000e+00> : vector<4x16xf32>
    %54 = vector.multi_reduction <add>, %53, %cst_19 [2] : vector<4x16x16xf32> to vector<4x16xf32>
    %55 = vector.shape_cast %54 : vector<4x16xf32> to vector<4x16x1xf32>
    %56 = vector.broadcast %55 : vector<4x16x1xf32> to vector<4x16x16xf32>
    %57 = arith.divf %53, %56 : vector<4x16x16xf32>
    %c0_20 = arith.constant 0 : index
    %c0_21 = arith.constant 0 : index
    %c0_22 = arith.constant 0 : index
    %58 = vector.load %arg6[%c0_20, %c0_21, %c0_22] : memref<2x32x32xf32, #tpu.memory_space<vmem>>, vector<1x32x32xf32>
    %59 = vector.shape_cast %58 : vector<1x32x32xf32> to vector<32x32xf32>
    %60 = vector.extract_strided_slice %57 {offsets = [0, 0, 0], sizes = [1, 16, 16], strides = [1, 1, 1]} : vector<4x16x16xf32> to vector<1x16x16xf32>
    %61 = vector.shape_cast %60 : vector<1x16x16xf32> to vector<16x16xf32>
    %62 = vector.extract_strided_slice %21 {offsets = [0, 0], sizes = [16, 8], strides = [1, 1]} : vector<16x32xf32> to vector<16x8xf32>
    %cst_23 = arith.constant dense<0.000000e+00> : vector<16x8xf32>
    %63 = tpu.matmul %61, %62, %cst_23 {dimension_numbers = #tpu.dot_dimension_numbers<[1], [0], [0], [1], [0, 0, 1, 1], [], []>} : vector<16x16xf32>, vector<16x8xf32>, vector<16x8xf32> -> vector<16x8xf32>
    %64 = vector.extract_strided_slice %59 {offsets = [0, 0], sizes = [8, 32], strides = [1, 1]} : vector<32x32xf32> to vector<8x32xf32>
    %cst_24 = arith.constant dense<0.000000e+00> : vector<16x32xf32>
    %65 = tpu.matmul %63, %64, %cst_24 {dimension_numbers = #tpu.dot_dimension_numbers<[1], [0], [0], [1], [0, 0, 1, 1], [], []>} : vector<16x8xf32>, vector<8x32xf32>, vector<16x32xf32> -> vector<16x32xf32>
    %66 = arith.addf %1, %65 : vector<16x32xf32>
    %67 = vector.extract_strided_slice %57 {offsets = [1, 0, 0], sizes = [1, 16, 16], strides = [1, 1, 1]} : vector<4x16x16xf32> to vector<1x16x16xf32>
    %68 = vector.shape_cast %67 : vector<1x16x16xf32> to vector<16x16xf32>
    %69 = vector.extract_strided_slice %21 {offsets = [0, 8], sizes = [16, 8], strides = [1, 1]} : vector<16x32xf32> to vector<16x8xf32>
    %cst_25 = arith.constant dense<0.000000e+00> : vector<16x8xf32>
    %70 = tpu.matmul %68, %69, %cst_25 {dimension_numbers = #tpu.dot_dimension_numbers<[1], [0], [0], [1], [0, 0, 1, 1], [], []>} : vector<16x16xf32>, vector<16x8xf32>, vector<16x8xf32> -> vector<16x8xf32>
    %71 = vector.extract_strided_slice %59 {offsets = [8, 0], sizes = [8, 32], strides = [1, 1]} : vector<32x32xf32> to vector<8x32xf32>
    %cst_26 = arith.constant dense<0.000000e+00> : vector<16x32xf32>
    %72 = tpu.matmul %70, %71, %cst_26 {dimension_numbers = #tpu.dot_dimension_numbers<[1], [0], [0], [1], [0, 0, 1, 1], [], []>} : vector<16x8xf32>, vector<8x32xf32>, vector<16x32xf32> -> vector<16x32xf32>
    %73 = arith.addf %66, %72 : vector<16x32xf32>
    %74 = vector.extract_strided_slice %57 {offsets = [2, 0, 0], sizes = [1, 16, 16], strides = [1, 1, 1]} : vector<4x16x16xf32> to vector<1x16x16xf32>
    %75 = vector.shape_cast %74 : vector<1x16x16xf32> to vector<16x16xf32>
    %76 = vector.extract_strided_slice %21 {offsets = [0, 16], sizes = [16, 8], strides = [1, 1]} : vector<16x32xf32> to vector<16x8xf32>
    %cst_27 = arith.constant dense<0.000000e+00> : vector<16x8xf32>
    %77 = tpu.matmul %75, %76, %cst_27 {dimension_numbers = #tpu.dot_dimension_numbers<[1], [0], [0], [1], [0, 0, 1, 1], [], []>} : vector<16x16xf32>, vector<16x8xf32>, vector<16x8xf32> -> vector<16x8xf32>
    %78 = vector.extract_strided_slice %59 {offsets = [16, 0], sizes = [8, 32], strides = [1, 1]} : vector<32x32xf32> to vector<8x32xf32>
    %cst_28 = arith.constant dense<0.000000e+00> : vector<16x32xf32>
    %79 = tpu.matmul %77, %78, %cst_28 {dimension_numbers = #tpu.dot_dimension_numbers<[1], [0], [0], [1], [0, 0, 1, 1], [], []>} : vector<16x8xf32>, vector<8x32xf32>, vector<16x32xf32> -> vector<16x32xf32>
    %80 = arith.addf %73, %79 : vector<16x32xf32>
    %81 = vector.extract_strided_slice %57 {offsets = [3, 0, 0], sizes = [1, 16, 16], strides = [1, 1, 1]} : vector<4x16x16xf32> to vector<1x16x16xf32>
    %82 = vector.shape_cast %81 : vector<1x16x16xf32> to vector<16x16xf32>
    %83 = vector.extract_strided_slice %21 {offsets = [0, 24], sizes = [16, 8], strides = [1, 1]} : vector<16x32xf32> to vector<16x8xf32>
    %cst_29 = arith.constant dense<0.000000e+00> : vector<16x8xf32>
    %84 = tpu.matmul %82, %83, %cst_29 {dimension_numbers = #tpu.dot_dimension_numbers<[1], [0], [0], [1], [0, 0, 1, 1], [], []>} : vector<16x16xf32>, vector<16x8xf32>, vector<16x8xf32> -> vector<16x8xf32>
    %85 = vector.extract_strided_slice %59 {offsets = [24, 0], sizes = [8, 32], strides = [1, 1]} : vector<32x32xf32> to vector<8x32xf32>
    %cst_30 = arith.constant dense<0.000000e+00> : vector<16x32xf32>
    %86 = tpu.matmul %84, %85, %cst_30 {dimension_numbers = #tpu.dot_dimension_numbers<[1], [0], [0], [1], [0, 0, 1, 1], [], []>} : vector<16x8xf32>, vector<8x32xf32>, vector<16x32xf32> -> vector<16x32xf32>
    %87 = arith.addf %80, %86 : vector<16x32xf32>
    %88 = arith.mulf %87, %87 : vector<16x32xf32>
    %cst_31 = arith.constant dense<0.000000e+00> : vector<16xf32>
    %89 = vector.multi_reduction <add>, %88, %cst_31 [1] : vector<16x32xf32> to vector<16xf32>
    %90 = vector.shape_cast %89 : vector<16xf32> to vector<16x1xf32>
    %cst_32 = arith.constant 3.200000e+01 : f32
    %91 = vector.broadcast %cst_32 : f32 to vector<16x1xf32>
    %92 = arith.divf %90, %91 : vector<16x1xf32>
    %cst_33 = arith.constant 9.99999974E-6 : f32
    %93 = vector.broadcast %cst_33 : f32 to vector<16x1xf32>
    %94 = arith.addf %92, %93 : vector<16x1xf32>
    %95 = math.rsqrt %94 : vector<16x1xf32>
    %96 = vector.broadcast %95 : vector<16x1xf32> to vector<16x32xf32>
    %97 = arith.mulf %87, %96 : vector<16x32xf32>
    %c0_34 = arith.constant 0 : index
    %c0_35 = arith.constant 0 : index
    %c0_36 = arith.constant 0 : index
    %98 = vector.load %arg7[%c0_34, %c0_35, %c0_36] : memref<2x32x128xf32, #tpu.memory_space<vmem>>, vector<1x32x128xf32>
    %99 = vector.shape_cast %98 : vector<1x32x128xf32> to vector<32x128xf32>
    %cst_37 = arith.constant dense<0.000000e+00> : vector<16x128xf32>
    %100 = tpu.matmul %97, %99, %cst_37 {dimension_numbers = #tpu.dot_dimension_numbers<[1], [0], [0], [1], [0, 0, 1, 1], [], []>} : vector<16x32xf32>, vector<32x128xf32>, vector<16x128xf32> -> vector<16x128xf32>
    %101 = vector.extract_strided_slice %100 {offsets = [0, 0], sizes = [16, 64], strides = [1, 1]} : vector<16x128xf32> to vector<16x64xf32>
    %102 = vector.extract_strided_slice %100 {offsets = [0, 64], sizes = [16, 64], strides = [1, 1]} : vector<16x128xf32> to vector<16x64xf32>
    %103 = arith.negf %101 : vector<16x64xf32>
    %104 = math.exp %103 : vector<16x64xf32>
    %cst_38 = arith.constant 1.000000e+00 : f32
    %105 = vector.broadcast %cst_38 : f32 to vector<16x64xf32>
    %106 = arith.addf %105, %104 : vector<16x64xf32>
    %107 = arith.divf %105, %106 : vector<16x64xf32>
    %108 = arith.mulf %101, %107 : vector<16x64xf32>
    %109 = arith.mulf %108, %102 : vector<16x64xf32>
    %c0_39 = arith.constant 0 : index
    %c0_40 = arith.constant 0 : index
    %c0_41 = arith.constant 0 : index
    %110 = vector.load %arg8[%c0_39, %c0_40, %c0_41] : memref<2x64x32xf32, #tpu.memory_space<vmem>>, vector<1x64x32xf32>
    %111 = vector.shape_cast %110 : vector<1x64x32xf32> to vector<64x32xf32>
    %cst_42 = arith.constant dense<0.000000e+00> : vector<16x32xf32>
    %112 = tpu.matmul %109, %111, %cst_42 {dimension_numbers = #tpu.dot_dimension_numbers<[1], [0], [0], [1], [0, 0, 1, 1], [], []>} : vector<16x64xf32>, vector<64x32xf32>, vector<16x32xf32> -> vector<16x32xf32>
    %113 = arith.addf %87, %112 : vector<16x32xf32>
    %114 = arith.mulf %113, %113 : vector<16x32xf32>
    %cst_43 = arith.constant dense<0.000000e+00> : vector<16xf32>
    %115 = vector.multi_reduction <add>, %114, %cst_43 [1] : vector<16x32xf32> to vector<16xf32>
    %116 = vector.shape_cast %115 : vector<16xf32> to vector<16x1xf32>
    %cst_44 = arith.constant 3.200000e+01 : f32
    %117 = vector.broadcast %cst_44 : f32 to vector<16x1xf32>
    %118 = arith.divf %116, %117 : vector<16x1xf32>
    %cst_45 = arith.constant 9.99999974E-6 : f32
    %119 = vector.broadcast %cst_45 : f32 to vector<16x1xf32>
    %120 = arith.addf %118, %119 : vector<16x1xf32>
    %121 = math.rsqrt %120 : vector<16x1xf32>
    %122 = vector.broadcast %121 : vector<16x1xf32> to vector<16x32xf32>
    %123 = arith.mulf %113, %122 : vector<16x32xf32>
    %c1 = arith.constant 1 : index
    %c0_46 = arith.constant 0 : index
    %c0_47 = arith.constant 0 : index
    %124 = vector.load %arg5[%c1, %c0_46, %c0_47] : memref<2x32x160xf32, #tpu.memory_space<vmem>>, vector<1x32x160xf32>
    %125 = vector.shape_cast %124 : vector<1x32x160xf32> to vector<32x160xf32>
    %cst_48 = arith.constant dense<0.000000e+00> : vector<16x160xf32>
    %126 = tpu.matmul %123, %125, %cst_48 {dimension_numbers = #tpu.dot_dimension_numbers<[1], [0], [0], [1], [0, 0, 1, 1], [], []>} : vector<16x32xf32>, vector<32x160xf32>, vector<16x160xf32> -> vector<16x160xf32>
    %127 = vector.extract_strided_slice %126 {offsets = [0, 0], sizes = [16, 32], strides = [1, 1]} : vector<16x160xf32> to vector<16x32xf32>
    %128 = vector.extract_strided_slice %126 {offsets = [0, 32], sizes = [16, 32], strides = [1, 1]} : vector<16x160xf32> to vector<16x32xf32>
    %129 = vector.extract_strided_slice %126 {offsets = [0, 64], sizes = [16, 32], strides = [1, 1]} : vector<16x160xf32> to vector<16x32xf32>
    %130 = vector.extract_strided_slice %126 {offsets = [0, 96], sizes = [16, 32], strides = [1, 1]} : vector<16x160xf32> to vector<16x32xf32>
    %131 = vector.extract_strided_slice %126 {offsets = [0, 128], sizes = [16, 32], strides = [1, 1]} : vector<16x160xf32> to vector<16x32xf32>
    %132 = arith.mulf %127, %2 : vector<16x32xf32>
    %133 = arith.mulf %130, %3 : vector<16x32xf32>
    %134 = arith.addf %132, %133 : vector<16x32xf32>
    %135 = arith.mulf %128, %2 : vector<16x32xf32>
    %136 = arith.mulf %131, %3 : vector<16x32xf32>
    %137 = arith.addf %135, %136 : vector<16x32xf32>
    %138 = vector.extract_strided_slice %134 {offsets = [0, 0], sizes = [16, 8], strides = [1, 1]} : vector<16x32xf32> to vector<16x8xf32>
    %139 = vector.extract_strided_slice %137 {offsets = [0, 0], sizes = [16, 8], strides = [1, 1]} : vector<16x32xf32> to vector<16x8xf32>
    %cst_49 = arith.constant dense<0.000000e+00> : vector<16x16xf32>
    %140 = tpu.matmul %138, %139, %cst_49 {dimension_numbers = #tpu.dot_dimension_numbers<[1], [1], [0], [0], [0, 0, 1, 0], [], []>} : vector<16x8xf32>, vector<16x8xf32>, vector<16x16xf32> -> vector<16x16xf32>
    %141 = vector.extract_strided_slice %134 {offsets = [0, 8], sizes = [16, 8], strides = [1, 1]} : vector<16x32xf32> to vector<16x8xf32>
    %142 = vector.extract_strided_slice %137 {offsets = [0, 8], sizes = [16, 8], strides = [1, 1]} : vector<16x32xf32> to vector<16x8xf32>
    %cst_50 = arith.constant dense<0.000000e+00> : vector<16x16xf32>
    %143 = tpu.matmul %141, %142, %cst_50 {dimension_numbers = #tpu.dot_dimension_numbers<[1], [1], [0], [0], [0, 0, 1, 0], [], []>} : vector<16x8xf32>, vector<16x8xf32>, vector<16x16xf32> -> vector<16x16xf32>
    %144 = vector.extract_strided_slice %134 {offsets = [0, 16], sizes = [16, 8], strides = [1, 1]} : vector<16x32xf32> to vector<16x8xf32>
    %145 = vector.extract_strided_slice %137 {offsets = [0, 16], sizes = [16, 8], strides = [1, 1]} : vector<16x32xf32> to vector<16x8xf32>
    %cst_51 = arith.constant dense<0.000000e+00> : vector<16x16xf32>
    %146 = tpu.matmul %144, %145, %cst_51 {dimension_numbers = #tpu.dot_dimension_numbers<[1], [1], [0], [0], [0, 0, 1, 0], [], []>} : vector<16x8xf32>, vector<16x8xf32>, vector<16x16xf32> -> vector<16x16xf32>
    %147 = vector.extract_strided_slice %134 {offsets = [0, 24], sizes = [16, 8], strides = [1, 1]} : vector<16x32xf32> to vector<16x8xf32>
    %148 = vector.extract_strided_slice %137 {offsets = [0, 24], sizes = [16, 8], strides = [1, 1]} : vector<16x32xf32> to vector<16x8xf32>
    %cst_52 = arith.constant dense<0.000000e+00> : vector<16x16xf32>
    %149 = tpu.matmul %147, %148, %cst_52 {dimension_numbers = #tpu.dot_dimension_numbers<[1], [1], [0], [0], [0, 0, 1, 0], [], []>} : vector<16x8xf32>, vector<16x8xf32>, vector<16x16xf32> -> vector<16x16xf32>
    %150 = vector.shape_cast %140 : vector<16x16xf32> to vector<1x16x16xf32>
    %151 = vector.shape_cast %143 : vector<16x16xf32> to vector<1x16x16xf32>
    %152 = vector.shape_cast %146 : vector<16x16xf32> to vector<1x16x16xf32>
    %153 = vector.shape_cast %149 : vector<16x16xf32> to vector<1x16x16xf32>
    %154 = tpu.concatenate %150, %151, %152, %153 in 0 : vector<1x16x16xf32>, vector<1x16x16xf32>, vector<1x16x16xf32>, vector<1x16x16xf32> -> vector<4x16x16xf32>
    %155 = vector.broadcast %5 : vector<1x16x16xf32> to vector<4x16x16xf32>
    %156 = arith.addf %154, %155 : vector<4x16x16xf32>
    %cst_53 = arith.constant dense<0xFF800000> : vector<4x16xf32>
    %157 = vector.multi_reduction <maximumf>, %156, %cst_53 [2] : vector<4x16x16xf32> to vector<4x16xf32>
    %158 = vector.shape_cast %157 : vector<4x16xf32> to vector<4x16x1xf32>
    %159 = vector.broadcast %158 : vector<4x16x1xf32> to vector<4x16x16xf32>
    %160 = arith.subf %156, %159 : vector<4x16x16xf32>
    %161 = math.exp %160 : vector<4x16x16xf32>
    %cst_54 = arith.constant dense<0.000000e+00> : vector<4x16xf32>
    %162 = vector.multi_reduction <add>, %161, %cst_54 [2] : vector<4x16x16xf32> to vector<4x16xf32>
    %163 = vector.shape_cast %162 : vector<4x16xf32> to vector<4x16x1xf32>
    %164 = vector.broadcast %163 : vector<4x16x1xf32> to vector<4x16x16xf32>
    %165 = arith.divf %161, %164 : vector<4x16x16xf32>
    %c1_55 = arith.constant 1 : index
    %c0_56 = arith.constant 0 : index
    %c0_57 = arith.constant 0 : index
    %166 = vector.load %arg6[%c1_55, %c0_56, %c0_57] : memref<2x32x32xf32, #tpu.memory_space<vmem>>, vector<1x32x32xf32>
    %167 = vector.shape_cast %166 : vector<1x32x32xf32> to vector<32x32xf32>
    %168 = vector.extract_strided_slice %165 {offsets = [0, 0, 0], sizes = [1, 16, 16], strides = [1, 1, 1]} : vector<4x16x16xf32> to vector<1x16x16xf32>
    %169 = vector.shape_cast %168 : vector<1x16x16xf32> to vector<16x16xf32>
    %170 = vector.extract_strided_slice %129 {offsets = [0, 0], sizes = [16, 8], strides = [1, 1]} : vector<16x32xf32> to vector<16x8xf32>
    %cst_58 = arith.constant dense<0.000000e+00> : vector<16x8xf32>
    %171 = tpu.matmul %169, %170, %cst_58 {dimension_numbers = #tpu.dot_dimension_numbers<[1], [0], [0], [1], [0, 0, 1, 1], [], []>} : vector<16x16xf32>, vector<16x8xf32>, vector<16x8xf32> -> vector<16x8xf32>
    %172 = vector.extract_strided_slice %167 {offsets = [0, 0], sizes = [8, 32], strides = [1, 1]} : vector<32x32xf32> to vector<8x32xf32>
    %cst_59 = arith.constant dense<0.000000e+00> : vector<16x32xf32>
    %173 = tpu.matmul %171, %172, %cst_59 {dimension_numbers = #tpu.dot_dimension_numbers<[1], [0], [0], [1], [0, 0, 1, 1], [], []>} : vector<16x8xf32>, vector<8x32xf32>, vector<16x32xf32> -> vector<16x32xf32>
    %174 = arith.addf %113, %173 : vector<16x32xf32>
    %175 = vector.extract_strided_slice %165 {offsets = [1, 0, 0], sizes = [1, 16, 16], strides = [1, 1, 1]} : vector<4x16x16xf32> to vector<1x16x16xf32>
    %176 = vector.shape_cast %175 : vector<1x16x16xf32> to vector<16x16xf32>
    %177 = vector.extract_strided_slice %129 {offsets = [0, 8], sizes = [16, 8], strides = [1, 1]} : vector<16x32xf32> to vector<16x8xf32>
    %cst_60 = arith.constant dense<0.000000e+00> : vector<16x8xf32>
    %178 = tpu.matmul %176, %177, %cst_60 {dimension_numbers = #tpu.dot_dimension_numbers<[1], [0], [0], [1], [0, 0, 1, 1], [], []>} : vector<16x16xf32>, vector<16x8xf32>, vector<16x8xf32> -> vector<16x8xf32>
    %179 = vector.extract_strided_slice %167 {offsets = [8, 0], sizes = [8, 32], strides = [1, 1]} : vector<32x32xf32> to vector<8x32xf32>
    %cst_61 = arith.constant dense<0.000000e+00> : vector<16x32xf32>
    %180 = tpu.matmul %178, %179, %cst_61 {dimension_numbers = #tpu.dot_dimension_numbers<[1], [0], [0], [1], [0, 0, 1, 1], [], []>} : vector<16x8xf32>, vector<8x32xf32>, vector<16x32xf32> -> vector<16x32xf32>
    %181 = arith.addf %174, %180 : vector<16x32xf32>
    %182 = vector.extract_strided_slice %165 {offsets = [2, 0, 0], sizes = [1, 16, 16], strides = [1, 1, 1]} : vector<4x16x16xf32> to vector<1x16x16xf32>
    %183 = vector.shape_cast %182 : vector<1x16x16xf32> to vector<16x16xf32>
    %184 = vector.extract_strided_slice %129 {offsets = [0, 16], sizes = [16, 8], strides = [1, 1]} : vector<16x32xf32> to vector<16x8xf32>
    %cst_62 = arith.constant dense<0.000000e+00> : vector<16x8xf32>
    %185 = tpu.matmul %183, %184, %cst_62 {dimension_numbers = #tpu.dot_dimension_numbers<[1], [0], [0], [1], [0, 0, 1, 1], [], []>} : vector<16x16xf32>, vector<16x8xf32>, vector<16x8xf32> -> vector<16x8xf32>
    %186 = vector.extract_strided_slice %167 {offsets = [16, 0], sizes = [8, 32], strides = [1, 1]} : vector<32x32xf32> to vector<8x32xf32>
    %cst_63 = arith.constant dense<0.000000e+00> : vector<16x32xf32>
    %187 = tpu.matmul %185, %186, %cst_63 {dimension_numbers = #tpu.dot_dimension_numbers<[1], [0], [0], [1], [0, 0, 1, 1], [], []>} : vector<16x8xf32>, vector<8x32xf32>, vector<16x32xf32> -> vector<16x32xf32>
    %188 = arith.addf %181, %187 : vector<16x32xf32>
    %189 = vector.extract_strided_slice %165 {offsets = [3, 0, 0], sizes = [1, 16, 16], strides = [1, 1, 1]} : vector<4x16x16xf32> to vector<1x16x16xf32>
    %190 = vector.shape_cast %189 : vector<1x16x16xf32> to vector<16x16xf32>
    %191 = vector.extract_strided_slice %129 {offsets = [0, 24], sizes = [16, 8], strides = [1, 1]} : vector<16x32xf32> to vector<16x8xf32>
    %cst_64 = arith.constant dense<0.000000e+00> : vector<16x8xf32>
    %192 = tpu.matmul %190, %191, %cst_64 {dimension_numbers = #tpu.dot_dimension_numbers<[1], [0], [0], [1], [0, 0, 1, 1], [], []>} : vector<16x16xf32>, vector<16x8xf32>, vector<16x8xf32> -> vector<16x8xf32>
    %193 = vector.extract_strided_slice %167 {offsets = [24, 0], sizes = [8, 32], strides = [1, 1]} : vector<32x32xf32> to vector<8x32xf32>
    %cst_65 = arith.constant dense<0.000000e+00> : vector<16x32xf32>
    %194 = tpu.matmul %192, %193, %cst_65 {dimension_numbers = #tpu.dot_dimension_numbers<[1], [0], [0], [1], [0, 0, 1, 1], [], []>} : vector<16x8xf32>, vector<8x32xf32>, vector<16x32xf32> -> vector<16x32xf32>
    %195 = arith.addf %188, %194 : vector<16x32xf32>
    %196 = arith.mulf %195, %195 : vector<16x32xf32>
    %cst_66 = arith.constant dense<0.000000e+00> : vector<16xf32>
    %197 = vector.multi_reduction <add>, %196, %cst_66 [1] : vector<16x32xf32> to vector<16xf32>
    %198 = vector.shape_cast %197 : vector<16xf32> to vector<16x1xf32>
    %cst_67 = arith.constant 3.200000e+01 : f32
    %199 = vector.broadcast %cst_67 : f32 to vector<16x1xf32>
    %200 = arith.divf %198, %199 : vector<16x1xf32>
    %cst_68 = arith.constant 9.99999974E-6 : f32
    %201 = vector.broadcast %cst_68 : f32 to vector<16x1xf32>
    %202 = arith.addf %200, %201 : vector<16x1xf32>
    %203 = math.rsqrt %202 : vector<16x1xf32>
    %204 = vector.broadcast %203 : vector<16x1xf32> to vector<16x32xf32>
    %205 = arith.mulf %195, %204 : vector<16x32xf32>
    %c1_69 = arith.constant 1 : index
    %c0_70 = arith.constant 0 : index
    %c0_71 = arith.constant 0 : index
    %206 = vector.load %arg7[%c1_69, %c0_70, %c0_71] : memref<2x32x128xf32, #tpu.memory_space<vmem>>, vector<1x32x128xf32>
    %207 = vector.shape_cast %206 : vector<1x32x128xf32> to vector<32x128xf32>
    %cst_72 = arith.constant dense<0.000000e+00> : vector<16x128xf32>
    %208 = tpu.matmul %205, %207, %cst_72 {dimension_numbers = #tpu.dot_dimension_numbers<[1], [0], [0], [1], [0, 0, 1, 1], [], []>} : vector<16x32xf32>, vector<32x128xf32>, vector<16x128xf32> -> vector<16x128xf32>
    %209 = vector.extract_strided_slice %208 {offsets = [0, 0], sizes = [16, 64], strides = [1, 1]} : vector<16x128xf32> to vector<16x64xf32>
    %210 = vector.extract_strided_slice %208 {offsets = [0, 64], sizes = [16, 64], strides = [1, 1]} : vector<16x128xf32> to vector<16x64xf32>
    %211 = arith.negf %209 : vector<16x64xf32>
    %212 = math.exp %211 : vector<16x64xf32>
    %cst_73 = arith.constant 1.000000e+00 : f32
    %213 = vector.broadcast %cst_73 : f32 to vector<16x64xf32>
    %214 = arith.addf %213, %212 : vector<16x64xf32>
    %215 = arith.divf %213, %214 : vector<16x64xf32>
    %216 = arith.mulf %209, %215 : vector<16x64xf32>
    %217 = arith.mulf %216, %210 : vector<16x64xf32>
    %c1_74 = arith.constant 1 : index
    %c0_75 = arith.constant 0 : index
    %c0_76 = arith.constant 0 : index
    %218 = vector.load %arg8[%c1_74, %c0_75, %c0_76] : memref<2x64x32xf32, #tpu.memory_space<vmem>>, vector<1x64x32xf32>
    %219 = vector.shape_cast %218 : vector<1x64x32xf32> to vector<64x32xf32>
    %cst_77 = arith.constant dense<0.000000e+00> : vector<16x32xf32>
    %220 = tpu.matmul %217, %219, %cst_77 {dimension_numbers = #tpu.dot_dimension_numbers<[1], [0], [0], [1], [0, 0, 1, 1], [], []>} : vector<16x64xf32>, vector<64x32xf32>, vector<16x32xf32> -> vector<16x32xf32>
    %221 = arith.addf %195, %220 : vector<16x32xf32>
    %c0_78 = arith.constant 0 : index
    %c0_79 = arith.constant 0 : index
    %222 = vector.load %arg9[%c0_78, %c0_79] : memref<32x128xf32, #tpu.memory_space<vmem>>, vector<32x128xf32>
    %cst_80 = arith.constant dense<0.000000e+00> : vector<16x128xf32>
    %223 = tpu.matmul %221, %222, %cst_80 {dimension_numbers = #tpu.dot_dimension_numbers<[1], [0], [0], [1], [0, 0, 1, 1], [], []>} : vector<16x32xf32>, vector<32x128xf32>, vector<16x128xf32> -> vector<16x128xf32>
    %c0_81 = arith.constant 0 : index
    %c0_82 = arith.constant 0 : index
    %c0_83 = arith.constant 0 : index
    %224 = vector.load %arg10[%c0_81, %c0_82, %c0_83] : memref<1x16x128xf32, #tpu.memory_space<vmem>>, vector<1x16x128xf32>
    %225 = vector.shape_cast %224 : vector<1x16x128xf32> to vector<16x128xf32>
    %226 = vector.shape_cast %223 : vector<16x128xf32> to vector<1x16x128xf32>
    tpu.vector_store %arg10[%c0_81, %c0_82, %c0_83], %226 {strides = array<i32>} : memref<1x16x128xf32, #tpu.memory_space<vmem>>, vector<1x16x128xf32>,
    return
  }
  func.func @transform_0(%arg0: i32) -> (i32, i32, i32) {
    %c0_i32 = arith.constant 0 : i32
    %c0_i32_0 = arith.constant 0 : i32
    %c0_i32_1 = arith.constant 0 : i32
    return %arg0, %c0_i32, %c0_i32_0 : i32, i32, i32
  }
  func.func @transform_1(%arg0: i32) -> (i32, i32) {
    %c0_i32 = arith.constant 0 : i32
    %c0_i32_0 = arith.constant 0 : i32
    %c0_i32_1 = arith.constant 0 : i32
    return %c0_i32, %c0_i32_0 : i32, i32
  }
  func.func @transform_2(%arg0: i32) -> (i32, i32) {
    %c0_i32 = arith.constant 0 : i32
    %c0_i32_0 = arith.constant 0 : i32
    %c0_i32_1 = arith.constant 0 : i32
    return %c0_i32, %c0_i32_0 : i32, i32
  }
  func.func @transform_3(%arg0: i32) -> (i32, i32) {
    %c0_i32 = arith.constant 0 : i32
    %c0_i32_0 = arith.constant 0 : i32
    %c0_i32_1 = arith.constant 0 : i32
    return %c0_i32, %c0_i32_0 : i32, i32
  }
  func.func @transform_4(%arg0: i32) -> (i32, i32, i32) {
    %c0_i32 = arith.constant 0 : i32
    %c0_i32_0 = arith.constant 0 : i32
    %c0_i32_1 = arith.constant 0 : i32
    %c0_i32_2 = arith.constant 0 : i32
    return %c0_i32, %c0_i32_0, %c0_i32_1 : i32, i32, i32
  }
  func.func @transform_5(%arg0: i32) -> (i32, i32, i32) {
    %c0_i32 = arith.constant 0 : i32
    %c0_i32_0 = arith.constant 0 : i32
    %c0_i32_1 = arith.constant 0 : i32
    %c0_i32_2 = arith.constant 0 : i32
    return %c0_i32, %c0_i32_0, %c0_i32_1 : i32, i32, i32
  }
  func.func @transform_6(%arg0: i32) -> (i32, i32, i32) {
    %c0_i32 = arith.constant 0 : i32
    %c0_i32_0 = arith.constant 0 : i32
    %c0_i32_1 = arith.constant 0 : i32
    %c0_i32_2 = arith.constant 0 : i32
    return %c0_i32, %c0_i32_0, %c0_i32_1 : i32, i32, i32
  }
  func.func @transform_7(%arg0: i32) -> (i32, i32, i32) {
    %c0_i32 = arith.constant 0 : i32
    %c0_i32_0 = arith.constant 0 : i32
    %c0_i32_1 = arith.constant 0 : i32
    %c0_i32_2 = arith.constant 0 : i32
    return %c0_i32, %c0_i32_0, %c0_i32_1 : i32, i32, i32
  }
  func.func @transform_8(%arg0: i32) -> (i32, i32) {
    %c0_i32 = arith.constant 0 : i32
    %c0_i32_0 = arith.constant 0 : i32
    %c0_i32_1 = arith.constant 0 : i32
    return %c0_i32, %c0_i32_0 : i32, i32
  }
  func.func @transform_9(%arg0: i32) -> (i32, i32, i32) {
    %c0_i32 = arith.constant 0 : i32
    %c0_i32_0 = arith.constant 0 : i32
    %c0_i32_1 = arith.constant 0 : i32
    return %arg0, %c0_i32, %c0_i32_0 : i32, i32, i32
  }
}

</mosaic_0001>

<llo_original>
// kernel: tile.23
$region0: #{tile.23}
  #allocation0 [shape = 's32[1]{0}', space=sflag, size = 0x4, scoped, tag = 'scoped memory for tile.23']
  %s0 = inlined_call_operand.vmem [shape: f32[2], index: 0, kind: input, shape index: {}]
  %s1 = inlined_call_operand.vmem [shape: f32[4,2], index: 1, kind: output, shape index: {}]
  // Predicated region
  $region2: #{tile.23} parent=0 // pred_check
    _
  $region3: #{tile.23} parent=0 // pred_check_branch
    %3 = sbr.rel (0) target = $region5
  $region4: #{tile.23} parent=0 // pred_region
    _
  $region5: #{tile.23} parent=0 // pred_fallthru
    _
  %v4 = vld [vmem:[%s0] ss:$0 sm:$0xff]
  %5 = vst [vmem:[%s1] sm:$0xf] %v4

// kernel: transformer_decoder_phi_forward.1
$region0: #{transformer_decoder_phi_forward.1}
  #allocation0 [shape = 'u32[]', space=smem, size = 0x4, offset = 0x4, fixed_abs, tag = 'smem constant byte address 0x4 - core index']
  #allocation1 [shape = 'u32[144,128]{1,0:T(1,128)}', space=vmem, size = 0x12000, scoped, tag = 'internal scratch']
  %s0 = inlined_call_operand.vmem [shape: f32[1,16,32], index: 0, kind: input, shape index: {}]
  %s1 = inlined_call_operand.vmem [shape: f32[16,32], index: 1, kind: input, shape index: {}]
  %s2 = inlined_call_operand.vmem [shape: f32[16,32], index: 2, kind: input, shape index: {}]
  %s3 = inlined_call_operand.vmem [shape: f32[16,16], index: 3, kind: input, shape index: {}]
  %s4 = inlined_call_operand.vmem [shape: f32[2,32,160], index: 4, kind: input, shape index: {}]
  %s5 = inlined_call_operand.vmem [shape: f32[2,32,32], index: 5, kind: input, shape index: {}]
  %s6 = inlined_call_operand.vmem [shape: f32[2,32,128], index: 6, kind: input, shape index: {}]
  %s7 = inlined_call_operand.vmem [shape: f32[2,64,32], index: 7, kind: input, shape index: {}]
  %s8 = inlined_call_operand.vmem [shape: f32[32,128], index: 8, kind: input, shape index: {}]
  %s9 = inlined_call_operand.hbm [shape: f32[1,16,128], index: 9, kind: output, shape index: {}]
  %s10 = sld [smem:[#allocation0]]
  $region46: #{transformer_decoder_phi_forward.1} parent=0
    _
  %s12 = ssub.s32 1, %s10
  %s13 = scalar_select 0, %s12, %s10
  $region1: #{transformer_decoder_phi_forward.1} parent=0
    #allocation2 [shape = 'u8[8192]{0}', space=vmem, size = 0x2000, scoped, tag = 'output window, operand 0, single buffered']
    #allocation3 [shape = 's32[1]{0}', space=sflag, size = 0x4, scoped, tag = 'scoped memory for transformer_decoder_phi_forward.1']
    %14 = vsyncpa [#allocation3], 0
    // Predicated region
    $region2: #{transformer_decoder_phi_forward.1} parent=1 // pred_check
      _
    $region3: #{transformer_decoder_phi_forward.1} parent=1 // pred_check_branch
      %16 = sbr.rel (0) target = $region5
    $region4: #{transformer_decoder_phi_forward.1} parent=1 // pred_region
      _
    $region5: #{transformer_decoder_phi_forward.1} parent=1 // pred_fallthru
      _
    // Predicated region
    $region6: #{transformer_decoder_phi_forward.1} parent=1 // pred_check
      _
    $region7: #{transformer_decoder_phi_forward.1} parent=1 // pred_check_branch
      %18 = sbr.rel (0) target = $region9
    $region8: #{transformer_decoder_phi_forward.1} parent=1 // pred_region
      _
    $region9: #{transformer_decoder_phi_forward.1} parent=1 // pred_fallthru
      _
    // Predicated region
    $region10: #{transformer_decoder_phi_forward.1} parent=1 // pred_check
      _
    $region11: #{transformer_decoder_phi_forward.1} parent=1 // pred_check_branch
      %20 = sbr.rel (0) target = $region13
    $region12: #{transformer_decoder_phi_forward.1} parent=1 // pred_region
      _
    $region13: #{transformer_decoder_phi_forward.1} parent=1 // pred_fallthru
      _
    // Predicated region
    $region14: #{transformer_decoder_phi_forward.1} parent=1 // pred_check
      _
    $region15: #{transformer_decoder_phi_forward.1} parent=1 // pred_check_branch
      %22 = sbr.rel (0) target = $region17
    $region16: #{transformer_decoder_phi_forward.1} parent=1 // pred_region
      _
    $region17: #{transformer_decoder_phi_forward.1} parent=1 // pred_fallthru
      _
    // Predicated region
    $region18: #{transformer_decoder_phi_forward.1} parent=1 // pred_check
      _
    $region19: #{transformer_decoder_phi_forward.1} parent=1 // pred_check_branch
      %24 = sbr.rel (0) target = $region21
    $region20: #{transformer_decoder_phi_forward.1} parent=1 // pred_region
      _
    $region21: #{transformer_decoder_phi_forward.1} parent=1 // pred_fallthru
      _
    // Predicated region
    $region22: #{transformer_decoder_phi_forward.1} parent=1 // pred_check
      _
    $region23: #{transformer_decoder_phi_forward.1} parent=1 // pred_check_branch
      %26 = sbr.rel (0) target = $region25
    $region24: #{transformer_decoder_phi_forward.1} parent=1 // pred_region
      _
    $region25: #{transformer_decoder_phi_forward.1} parent=1 // pred_fallthru
      _
    // Predicated region
    $region26: #{transformer_decoder_phi_forward.1} parent=1 // pred_check
      _
    $region27: #{transformer_decoder_phi_forward.1} parent=1 // pred_check_branch
      %28 = sbr.rel (0) target = $region29
    $region28: #{transformer_decoder_phi_forward.1} parent=1 // pred_region
      _
    $region29: #{transformer_decoder_phi_forward.1} parent=1 // pred_fallthru
      _
    // Predicated region
    $region30: #{transformer_decoder_phi_forward.1} parent=1 // pred_check
      _
    $region31: #{transformer_decoder_phi_forward.1} parent=1 // pred_check_branch
      %30 = sbr.rel (0) target = $region33
    $region32: #{transformer_decoder_phi_forward.1} parent=1 // pred_region
      _
    $region33: #{transformer_decoder_phi_forward.1} parent=1 // pred_fallthru
      _
    // Predicated region
    $region34: #{transformer_decoder_phi_forward.1} parent=1 // pred_check
      _
    $region35: #{transformer_decoder_phi_forward.1} parent=1 // pred_check_branch
      %32 = sbr.rel (0) target = $region37
    $region36: #{transformer_decoder_phi_forward.1} parent=1 // pred_region
      _
    $region37: #{transformer_decoder_phi_forward.1} parent=1 // pred_fallthru
      _
    %v33 = vld [vmem:[%s0] sm:$0xff]
    %v34 = vld [vmem:[%s0 + $0x8] sm:$0xff]
    %v35 = vld [vmem:[%s1] sm:$0xff]
    %v36 = vld [vmem:[%s1 + $0x8] sm:$0xff]
    %v37 = vld [vmem:[%s2] sm:$0xff]
    %v38 = vld [vmem:[%s2 + $0x8] sm:$0xff]
    %v39 = vld [vmem:[%s3] sm:$0xff]
    %v40 = vld [vmem:[%s3 + $0x8] sm:$0xff]
    %v41 = vmul.f32 %v33, %v33
    %v42 = vmul.f32 %v34, %v34
    %vm43 = vcmask 261120
    %v44 = vsel %vm43, %v41, 0.0
    %45 = vadd.xlane.f32.xlu0 %v44
    %v46 = vpop.xlane.xlu0 %45
    %v47 = vsel %vm43, %v42, 0.0
    %48 = vadd.xlane.f32.xlu0 %v47
    %v49 = vpop.xlane.xlu0 %48
    %v50 = vrcp.pop 32.0
    %v51 = vmul.f32 %v46, %v50
    %v52 = vmul.f32 %v49, %v50
    %v53 = vadd.f32 %v51, 1e-05
    %v54 = vadd.f32 %v52, 1e-05
    %v55 = vrsqrt.pop %v53
    %v56 = vrsqrt.pop %v54
    %v57 = vmul.f32 %v33, %v55
    %v58 = vmul.f32 %v34, %v56
    %v59 = vld [vmem:[%s4] sm:$0xff]
    %v60 = vld [vmem:[%s4 + $0x8] sm:$0xff]
    %v61 = vld [vmem:[%s4 + $0x10] sm:$0xff]
    %v62 = vld [vmem:[%s4 + $0x18] sm:$0xff]
    %v63 = vld [vmem:[%s4 + $0x20] sm:$0xff]
    %v64 = vld [vmem:[%s4 + $0x28] sm:$0xff]
    %v65 = vld [vmem:[%s4 + $0x30] sm:$0xff]
    %v66 = vld [vmem:[%s4 + $0x38] sm:$0xff]
    %v68 = vsel %vm43, %v57, 0
    %v71 = vsel %vm43, %v58, 0
    %73 = vmatprep.subr.mxu0 0.0
    %74 = vmatpush1.msra.mxu0 0.0
    %75 = vmatprep.subr.mxu0 0.0
    %76 = vmatpush1.msra.mxu0 0.0
    %77 = vmatprep.subr.mxu0 0.0
    %78 = vmatpush1.msra.mxu0 0.0
    %79 = vmatprep.subr.mxu0 0.0
    %80 = vmatpush1.msra.mxu0 0.0
    %81 = vmatprep.subr.mxu0 0.0
    %82 = vmatpush1.msra.mxu0 0.0
    %83 = vmatprep.subr.mxu0 0.0
    %84 = vmatpush1.msra.mxu0 0.0
    %85 = vmatprep.subr.mxu0 0.0
    %86 = vmatpush1.msra.mxu0 0.0
    %87 = vmatprep.subr.mxu0 0.0
    %88 = vmatpush1.msra.mxu0 0.0
    %89 = vmatprep.subr.mxu0 0.0
    %90 = vmatpush1.msra.mxu0 0.0
    %91 = vmatprep.subr.mxu0 0.0
    %92 = vmatpush1.msra.mxu0 0.0
    %93 = vmatprep.subr.mxu0 0.0
    %94 = vmatpush1.msra.mxu0 0.0
    %95 = vmatprep.subr.mxu0 0.0
    %96 = vmatpush1.msra.mxu0 0.0
    %97 = vmatprep.subr.mxu0 %v66
    %98 = vmatpush1.msra.mxu0 %v65
    %99 = vmatprep.subr.mxu0 %v64
    %100 = vmatpush1.msra.mxu0 %v63
    %101 = vmatprep.subr.mxu0 %v62
    %102 = vmatpush1.msra.mxu0 %v61
    %103 = vmatprep.subr.mxu0 %v60
    %104 = vmatpush1.msra.mxu0 %v59
    %105 = vmatprep.subr.mxu0 0.0
    %106 = vmatpush2.msra.mxu0 0.0
    %107 = vmatprep.subr.mxu0 0.0
    %108 = vmatpush2.msra.mxu0 0.0
    %109 = vmatprep.subr.mxu0 0.0
    %110 = vmatpush2.msra.mxu0 0.0
    %111 = vmatprep.subr.mxu0 0.0
    %112 = vmatpush2.msra.mxu0 0.0
    %113 = vmatprep.subr.mxu0 0.0
    %114 = vmatpush2.msra.mxu0 0.0
    %115 = vmatprep.subr.mxu0 0.0
    %116 = vmatpush2.msra.mxu0 0.0
    %117 = vmatprep.subr.mxu0 0.0
    %118 = vmatpush2.msra.mxu0 0.0
    %119 = vmatprep.subr.mxu0 0.0
    %120 = vmatpush2.msra.mxu0 0.0
    %121 = vmatprep.subr.mxu0 0.0
    %122 = vmatpush2.msra.mxu0 0.0
    %123 = vmatprep.subr.mxu0 0.0
    %124 = vmatpush2.msra.mxu0 0.0
    %125 = vmatprep.subr.mxu0 0.0
    %126 = vmatpush2.msra.mxu0 0.0
    %127 = vmatprep.subr.mxu0 0.0
    %128 = vmatpush2.msra.mxu0 0.0
    %129 = vmatprep.subr.mxu0 0.0
    %130 = vmatpush2.msra.mxu0 0.0
    %131 = vmatprep.subr.mxu0 0.0
    %132 = vmatpush2.msra.mxu0 0.0
    %133 = vmatprep.subr.mxu0 0.0
    %134 = vmatpush2.msra.mxu0 0.0
    %135 = vmatprep.subr.mxu0 0.0
    %136 = vmatpush2.msra.mxu0 0.0
    %137 = vmatprep.mubr.f32.mxu0 0.0
    %138 = vmatmul.mubr.f32.gmra.mxu0 %v68
    %v139 = vpop.f32.mrf.mxu0
    %v140 = vadd.f32 0.0, %v139
    %v141 = vpop.f32.mrf.mxu0
    %v142 = vadd.f32 0.0, %v141
    %143 = vmatprep.mubr.f32.mxu0 0.0
    %144 = vmatmul.mubr.f32.gmra.mxu0 %v71
    %v145 = vpop.f32.mrf.mxu0
    %v146 = vadd.f32 0.0, %v145
    %v147 = vpop.f32.mrf.mxu0
    %v148 = vadd.f32 0.0, %v147
    %149 = vdwg.mxu0
    %v150 = vmul.f32 %v140, %v35
    %v151 = vmul.f32 %v146, %v36
    %154 = vrot.lane.b32.xlu0 %v37, 96
    %v155 = vpop.permute.xlu0 %154
    %156 = vrot.lane.b32.xlu0 %v38, 96
    %v157 = vpop.permute.xlu0 %156
    %v160 = vmul.f32 %v140, %v155
    %v161 = vmul.f32 %v146, %v157
    %164 = vrot.lane.b32.xlu0 %v160, 32
    %v165 = vpop.permute.xlu0 %164
    %166 = vrot.lane.b32.xlu0 %v161, 32
    %v167 = vpop.permute.xlu0 %166
    %v170 = vadd.f32 %v150, %v165
    %v171 = vadd.f32 %v151, %v167
    %174 = vrot.lane.b32.xlu0 %v35, 32
    %v175 = vpop.permute.xlu0 %174
    %176 = vrot.lane.b32.xlu0 %v36, 32
    %v177 = vpop.permute.xlu0 %176
    %v180 = vmul.f32 %v140, %v175
    %v181 = vmul.f32 %v146, %v177
    %v182 = vmul.f32 %v142, %v37
    %v183 = vmul.f32 %v148, %v38
    %186 = vrot.lane.b32.xlu0 %v182, 32
    %v187 = vpop.permute.xlu0 %186
    %188 = vrot.lane.b32.xlu0 %v183, 32
    %v189 = vpop.permute.xlu0 %188
    %v192 = vadd.f32 %v180, %v187
    %v193 = vadd.f32 %v181, %v189
    %196 = vrot.lane.b32.xlu0 %v192, 96
    %v197 = vpop.permute.xlu0 %196
    %198 = vrot.lane.b32.xlu0 %v193, 96
    %v199 = vpop.permute.xlu0 %198
    %vm200 = vcmask 64512
    %v202 = vsel %vm200, %v170, 0
    %v205 = vsel %vm200, %v171, 0
    %v207 = vsel %vm200, %v197, 0
    %v209 = vsel %vm200, %v199, 0
    %211 = vmatprep.subr.mxu0 0.0
    %212 = vmatpush1.xpose.msra.mxu0 0.0
    %213 = vmatprep.subr.mxu0 0.0
    %214 = vmatpush1.xpose.msra.mxu0 0.0
    %215 = vmatprep.subr.mxu0 0.0
    %216 = vmatpush1.xpose.msra.mxu0 0.0
    %217 = vmatprep.subr.mxu0 0.0
    %218 = vmatpush1.xpose.msra.mxu0 0.0
    %219 = vmatprep.subr.mxu0 0.0
    %220 = vmatpush1.xpose.msra.mxu0 0.0
    %221 = vmatprep.subr.mxu0 0.0
    %222 = vmatpush1.xpose.msra.mxu0 0.0
    %223 = vmatprep.subr.mxu0 0.0
    %224 = vmatpush1.xpose.msra.mxu0 0.0
    %225 = vmatprep.subr.mxu0 0.0
    %226 = vmatpush1.xpose.msra.mxu0 0.0
    %227 = vmatprep.subr.mxu0 0.0
    %228 = vmatpush1.xpose.msra.mxu0 0.0
    %229 = vmatprep.subr.mxu0 0.0
    %230 = vmatpush1.xpose.msra.mxu0 0.0
    %231 = vmatprep.subr.mxu0 0.0
    %232 = vmatpush1.xpose.msra.mxu0 0.0
    %233 = vmatprep.subr.mxu0 0.0
    %234 = vmatpush1.xpose.msra.mxu0 0.0
    %235 = vmatprep.subr.mxu0 0.0
    %236 = vmatpush1.xpose.msra.mxu0 0.0
    %237 = vmatprep.subr.mxu0 0.0
    %238 = vmatpush1.xpose.msra.mxu0 0.0
    %239 = vmatprep.subr.mxu0 0.0
    %240 = vmatpush1.xpose.msra.mxu0 %v209
    %241 = vmatprep.subr.mxu0 0.0
    %242 = vmatpush1.xpose.msra.mxu0 %v207
    %243 = vmatprep.subr.mxu0 0.0
    %244 = vmatpush2.xpose.msra.mxu0 0.0
    %245 = vmatprep.subr.mxu0 0.0
    %246 = vmatpush2.xpose.msra.mxu0 0.0
    %247 = vmatprep.subr.mxu0 0.0
    %248 = vmatpush2.xpose.msra.mxu0 0.0
    %249 = vmatprep.subr.mxu0 0.0
    %250 = vmatpush2.xpose.msra.mxu0 0.0
    %251 = vmatprep.subr.mxu0 0.0
    %252 = vmatpush2.xpose.msra.mxu0 0.0
    %253 = vmatprep.subr.mxu0 0.0
    %254 = vmatpush2.xpose.msra.mxu0 0.0
    %255 = vmatprep.subr.mxu0 0.0
    %256 = vmatpush2.xpose.msra.mxu0 0.0
    %257 = vmatprep.subr.mxu0 0.0
    %258 = vmatpush2.xpose.msra.mxu0 0.0
    %259 = vmatprep.subr.mxu0 0.0
    %260 = vmatpush2.xpose.msra.mxu0 0.0
    %261 = vmatprep.subr.mxu0 0.0
    %262 = vmatpush2.xpose.msra.mxu0 0.0
    %263 = vmatprep.subr.mxu0 0.0
    %264 = vmatpush2.xpose.msra.mxu0 0.0
    %265 = vmatprep.subr.mxu0 0.0
    %266 = vmatpush2.xpose.msra.mxu0 0.0
    %267 = vmatprep.subr.mxu0 0.0
    %268 = vmatpush2.xpose.msra.mxu0 0.0
    %269 = vmatprep.subr.mxu0 0.0
    %270 = vmatpush2.xpose.msra.mxu0 0.0
    %271 = vmatprep.subr.mxu0 0.0
    %272 = vmatpush2.xpose.msra.mxu0 0.0
    %273 = vmatprep.subr.mxu0 0.0
    %274 = vmatpush2.xpose.msra.mxu0 0.0
    %275 = vmatprep.mubr.f32.mxu0 0.0
    %276 = vmatmul.mubr.f32.gmra.mxu0 %v202
    %v277 = vpop.f32.mrf.mxu0
    %v278 = vadd.f32 0.0, %v277
    %v279 = vpop.f32.mrf.mxu0
    %280 = vmatprep.mubr.f32.mxu0 0.0
    %281 = vmatmul.mubr.f32.gmra.mxu0 %v205
    %v282 = vpop.f32.mrf.mxu0
    %v283 = vadd.f32 0.0, %v282
    %v284 = vpop.f32.mrf.mxu0
    %285 = vdwg.mxu0
    %286 = vrot.lane.b32.xlu0 %v170, 120
    %v287 = vpop.permute.xlu0 %286
    %288 = vrot.lane.b32.xlu0 %v171, 120
    %v289 = vpop.permute.xlu0 %288
    %290 = vrot.lane.b32.xlu0 %v192, 88
    %v291 = vpop.permute.xlu0 %290
    %292 = vrot.lane.b32.xlu0 %v193, 88
    %v293 = vpop.permute.xlu0 %292
    %v294 = vsel %vm200, %v287, 0
    %v296 = vsel %vm200, %v289, 0
    %v298 = vsel %vm200, %v291, 0
    %v300 = vsel %vm200, %v293, 0
    %302 = vmatprep.subr.mxu0 0.0
    %303 = vmatpush1.xpose.msra.mxu0 0.0
    %304 = vmatprep.subr.mxu0 0.0
    %305 = vmatpush1.xpose.msra.mxu0 0.0
    %306 = vmatprep.subr.mxu0 0.0
    %307 = vmatpush1.xpose.msra.mxu0 0.0
    %308 = vmatprep.subr.mxu0 0.0
    %309 = vmatpush1.xpose.msra.mxu0 0.0
    %310 = vmatprep.subr.mxu0 0.0
    %311 = vmatpush1.xpose.msra.mxu0 0.0
    %312 = vmatprep.subr.mxu0 0.0
    %313 = vmatpush1.xpose.msra.mxu0 0.0
    %314 = vmatprep.subr.mxu0 0.0
    %315 = vmatpush1.xpose.msra.mxu0 0.0
    %316 = vmatprep.subr.mxu0 0.0
    %317 = vmatpush1.xpose.msra.mxu0 0.0
    %318 = vmatprep.subr.mxu0 0.0
    %319 = vmatpush1.xpose.msra.mxu0 0.0
    %320 = vmatprep.subr.mxu0 0.0
    %321 = vmatpush1.xpose.msra.mxu0 0.0
    %322 = vmatprep.subr.mxu0 0.0
    %323 = vmatpush1.xpose.msra.mxu0 0.0
    %324 = vmatprep.subr.mxu0 0.0
    %325 = vmatpush1.xpose.msra.mxu0 0.0
    %326 = vmatprep.subr.mxu0 0.0
    %327 = vmatpush1.xpose.msra.mxu0 0.0
    %328 = vmatprep.subr.mxu0 0.0
    %329 = vmatpush1.xpose.msra.mxu0 0.0
    %330 = vmatprep.subr.mxu0 0.0
    %331 = vmatpush1.xpose.msra.mxu0 %v300
    %332 = vmatprep.subr.mxu0 0.0
    %333 = vmatpush1.xpose.msra.mxu0 %v298
    %334 = vmatprep.subr.mxu0 0.0
    %335 = vmatpush2.xpose.msra.mxu0 0.0
    %336 = vmatprep.subr.mxu0 0.0
    %337 = vmatpush2.xpose.msra.mxu0 0.0
    %338 = vmatprep.subr.mxu0 0.0
    %339 = vmatpush2.xpose.msra.mxu0 0.0
    %340 = vmatprep.subr.mxu0 0.0
    %341 = vmatpush2.xpose.msra.mxu0 0.0
    %342 = vmatprep.subr.mxu0 0.0
    %343 = vmatpush2.xpose.msra.mxu0 0.0
    %344 = vmatprep.subr.mxu0 0.0
    %345 = vmatpush2.xpose.msra.mxu0 0.0
    %346 = vmatprep.subr.mxu0 0.0
    %347 = vmatpush2.xpose.msra.mxu0 0.0
    %348 = vmatprep.subr.mxu0 0.0
    %349 = vmatpush2.xpose.msra.mxu0 0.0
    %350 = vmatprep.subr.mxu0 0.0
    %351 = vmatpush2.xpose.msra.mxu0 0.0
    %352 = vmatprep.subr.mxu0 0.0
    %353 = vmatpush2.xpose.msra.mxu0 0.0
    %354 = vmatprep.subr.mxu0 0.0
    %355 = vmatpush2.xpose.msra.mxu0 0.0
    %356 = vmatprep.subr.mxu0 0.0
    %357 = vmatpush2.xpose.msra.mxu0 0.0
    %358 = vmatprep.subr.mxu0 0.0
    %359 = vmatpush2.xpose.msra.mxu0 0.0
    %360 = vmatprep.subr.mxu0 0.0
    %361 = vmatpush2.xpose.msra.mxu0 0.0
    %362 = vmatprep.subr.mxu0 0.0
    %363 = vmatpush2.xpose.msra.mxu0 0.0
    %364 = vmatprep.subr.mxu0 0.0
    %365 = vmatpush2.xpose.msra.mxu0 0.0
    %366 = vmatprep.mubr.f32.mxu0 0.0
    %367 = vmatmul.mubr.f32.gmra.mxu0 %v294
    %v368 = vpop.f32.mrf.mxu0
    %v369 = vadd.f32 0.0, %v368
    %v370 = vpop.f32.mrf.mxu0
    %371 = vmatprep.mubr.f32.mxu0 0.0
    %372 = vmatmul.mubr.f32.gmra.mxu0 %v296
    %v373 = vpop.f32.mrf.mxu0
    %v374 = vadd.f32 0.0, %v373
    %v375 = vpop.f32.mrf.mxu0
    %376 = vdwg.mxu0
    %377 = vrot.lane.b32.xlu0 %v170, 112
    %v378 = vpop.permute.xlu0 %377
    %379 = vrot.lane.b32.xlu0 %v171, 112
    %v380 = vpop.permute.xlu0 %379
    %381 = vrot.lane.b32.xlu0 %v192, 80
    %v382 = vpop.permute.xlu0 %381
    %383 = vrot.lane.b32.xlu0 %v193, 80
    %v384 = vpop.permute.xlu0 %383
    %v385 = vsel %vm200, %v378, 0
    %v387 = vsel %vm200, %v380, 0
    %v389 = vsel %vm200, %v382, 0
    %v391 = vsel %vm200, %v384, 0
    %393 = vmatprep.subr.mxu0 0.0
    %394 = vmatpush1.xpose.msra.mxu0 0.0
    %395 = vmatprep.subr.mxu0 0.0
    %396 = vmatpush1.xpose.msra.mxu0 0.0
    %397 = vmatprep.subr.mxu0 0.0
    %398 = vmatpush1.xpose.msra.mxu0 0.0
    %399 = vmatprep.subr.mxu0 0.0
    %400 = vmatpush1.xpose.msra.mxu0 0.0
    %401 = vmatprep.subr.mxu0 0.0
    %402 = vmatpush1.xpose.msra.mxu0 0.0
    %403 = vmatprep.subr.mxu0 0.0
    %404 = vmatpush1.xpose.msra.mxu0 0.0
    %405 = vmatprep.subr.mxu0 0.0
    %406 = vmatpush1.xpose.msra.mxu0 0.0
    %407 = vmatprep.subr.mxu0 0.0
    %408 = vmatpush1.xpose.msra.mxu0 0.0
    %409 = vmatprep.subr.mxu0 0.0
    %410 = vmatpush1.xpose.msra.mxu0 0.0
    %411 = vmatprep.subr.mxu0 0.0
    %412 = vmatpush1.xpose.msra.mxu0 0.0
    %413 = vmatprep.subr.mxu0 0.0
    %414 = vmatpush1.xpose.msra.mxu0 0.0
    %415 = vmatprep.subr.mxu0 0.0
    %416 = vmatpush1.xpose.msra.mxu0 0.0
    %417 = vmatprep.subr.mxu0 0.0
    %418 = vmatpush1.xpose.msra.mxu0 0.0
    %419 = vmatprep.subr.mxu0 0.0
    %420 = vmatpush1.xpose.msra.mxu0 0.0
    %421 = vmatprep.subr.mxu0 0.0
    %422 = vmatpush1.xpose.msra.mxu0 %v391
    %423 = vmatprep.subr.mxu0 0.0
    %424 = vmatpush1.xpose.msra.mxu0 %v389
    %425 = vmatprep.subr.mxu0 0.0
    %426 = vmatpush2.xpose.msra.mxu0 0.0
    %427 = vmatprep.subr.mxu0 0.0
    %428 = vmatpush2.xpose.msra.mxu0 0.0
    %429 = vmatprep.subr.mxu0 0.0
    %430 = vmatpush2.xpose.msra.mxu0 0.0
    %431 = vmatprep.subr.mxu0 0.0
    %432 = vmatpush2.xpose.msra.mxu0 0.0
    %433 = vmatprep.subr.mxu0 0.0
    %434 = vmatpush2.xpose.msra.mxu0 0.0
    %435 = vmatprep.subr.mxu0 0.0
    %436 = vmatpush2.xpose.msra.mxu0 0.0
    %437 = vmatprep.subr.mxu0 0.0
    %438 = vmatpush2.xpose.msra.mxu0 0.0
    %439 = vmatprep.subr.mxu0 0.0
    %440 = vmatpush2.xpose.msra.mxu0 0.0
    %441 = vmatprep.subr.mxu0 0.0
    %442 = vmatpush2.xpose.msra.mxu0 0.0
    %443 = vmatprep.subr.mxu0 0.0
    %444 = vmatpush2.xpose.msra.mxu0 0.0
    %445 = vmatprep.subr.mxu0 0.0
    %446 = vmatpush2.xpose.msra.mxu0 0.0
    %447 = vmatprep.subr.mxu0 0.0
    %448 = vmatpush2.xpose.msra.mxu0 0.0
    %449 = vmatprep.subr.mxu0 0.0
    %450 = vmatpush2.xpose.msra.mxu0 0.0
    %451 = vmatprep.subr.mxu0 0.0
    %452 = vmatpush2.xpose.msra.mxu0 0.0
    %453 = vmatprep.subr.mxu0 0.0
    %454 = vmatpush2.xpose.msra.mxu0 0.0
    %455 = vmatprep.subr.mxu0 0.0
    %456 = vmatpush2.xpose.msra.mxu0 0.0
    %457 = vmatprep.mubr.f32.mxu0 0.0
    %458 = vmatmul.mubr.f32.gmra.mxu0 %v385
    %v459 = vpop.f32.mrf.mxu0
    %v460 = vadd.f32 0.0, %v459
    %v461 = vpop.f32.mrf.mxu0
    %462 = vmatprep.mubr.f32.mxu0 0.0
    %463 = vmatmul.mubr.f32.gmra.mxu0 %v387
    %v464 = vpop.f32.mrf.mxu0
    %v465 = vadd.f32 0.0, %v464
    %v466 = vpop.f32.mrf.mxu0
    %467 = vdwg.mxu0
    %468 = vrot.lane.b32.xlu0 %v170, 104
    %v469 = vpop.permute.xlu0 %468
    %470 = vrot.lane.b32.xlu0 %v171, 104
    %v471 = vpop.permute.xlu0 %470
    %472 = vrot.lane.b32.xlu0 %v192, 72
    %v473 = vpop.permute.xlu0 %472
    %474 = vrot.lane.b32.xlu0 %v193, 72
    %v475 = vpop.permute.xlu0 %474
    %v476 = vsel %vm200, %v469, 0
    %v478 = vsel %vm200, %v471, 0
    %v480 = vsel %vm200, %v473, 0
    %v482 = vsel %vm200, %v475, 0
    %484 = vmatprep.subr.mxu0 0.0
    %485 = vmatpush1.xpose.msra.mxu0 0.0
    %486 = vmatprep.subr.mxu0 0.0
    %487 = vmatpush1.xpose.msra.mxu0 0.0
    %488 = vmatprep.subr.mxu0 0.0
    %489 = vmatpush1.xpose.msra.mxu0 0.0
    %490 = vmatprep.subr.mxu0 0.0
    %491 = vmatpush1.xpose.msra.mxu0 0.0
    %492 = vmatprep.subr.mxu0 0.0
    %493 = vmatpush1.xpose.msra.mxu0 0.0
    %494 = vmatprep.subr.mxu0 0.0
    %495 = vmatpush1.xpose.msra.mxu0 0.0
    %496 = vmatprep.subr.mxu0 0.0
    %497 = vmatpush1.xpose.msra.mxu0 0.0
    %498 = vmatprep.subr.mxu0 0.0
    %499 = vmatpush1.xpose.msra.mxu0 0.0
    %500 = vmatprep.subr.mxu0 0.0
    %501 = vmatpush1.xpose.msra.mxu0 0.0
    %502 = vmatprep.subr.mxu0 0.0
    %503 = vmatpush1.xpose.msra.mxu0 0.0
    %504 = vmatprep.subr.mxu0 0.0
    %505 = vmatpush1.xpose.msra.mxu0 0.0
    %506 = vmatprep.subr.mxu0 0.0
    %507 = vmatpush1.xpose.msra.mxu0 0.0
    %508 = vmatprep.subr.mxu0 0.0
    %509 = vmatpush1.xpose.msra.mxu0 0.0
    %510 = vmatprep.subr.mxu0 0.0
    %511 = vmatpush1.xpose.msra.mxu0 0.0
    %512 = vmatprep.subr.mxu0 0.0
    %513 = vmatpush1.xpose.msra.mxu0 %v482
    %514 = vmatprep.subr.mxu0 0.0
    %515 = vmatpush1.xpose.msra.mxu0 %v480
    %516 = vmatprep.subr.mxu0 0.0
    %517 = vmatpush2.xpose.msra.mxu0 0.0
    %518 = vmatprep.subr.mxu0 0.0
    %519 = vmatpush2.xpose.msra.mxu0 0.0
    %520 = vmatprep.subr.mxu0 0.0
    %521 = vmatpush2.xpose.msra.mxu0 0.0
    %522 = vmatprep.subr.mxu0 0.0
    %523 = vmatpush2.xpose.msra.mxu0 0.0
    %524 = vmatprep.subr.mxu0 0.0
    %525 = vmatpush2.xpose.msra.mxu0 0.0
    %526 = vmatprep.subr.mxu0 0.0
    %527 = vmatpush2.xpose.msra.mxu0 0.0
    %528 = vmatprep.subr.mxu0 0.0
    %529 = vmatpush2.xpose.msra.mxu0 0.0
    %530 = vmatprep.subr.mxu0 0.0
    %531 = vmatpush2.xpose.msra.mxu0 0.0
    %532 = vmatprep.subr.mxu0 0.0
    %533 = vmatpush2.xpose.msra.mxu0 0.0
    %534 = vmatprep.subr.mxu0 0.0
    %535 = vmatpush2.xpose.msra.mxu0 0.0
    %536 = vmatprep.subr.mxu0 0.0
    %537 = vmatpush2.xpose.msra.mxu0 0.0
    %538 = vmatprep.subr.mxu0 0.0
    %539 = vmatpush2.xpose.msra.mxu0 0.0
    %540 = vmatprep.subr.mxu0 0.0
    %541 = vmatpush2.xpose.msra.mxu0 0.0
    %542 = vmatprep.subr.mxu0 0.0
    %543 = vmatpush2.xpose.msra.mxu0 0.0
    %544 = vmatprep.subr.mxu0 0.0
    %545 = vmatpush2.xpose.msra.mxu0 0.0
    %546 = vmatprep.subr.mxu0 0.0
    %547 = vmatpush2.xpose.msra.mxu0 0.0
    %548 = vmatprep.mubr.f32.mxu0 0.0
    %549 = vmatmul.mubr.f32.gmra.mxu0 %v476
    %v550 = vpop.f32.mrf.mxu0
    %v551 = vadd.f32 0.0, %v550
    %v552 = vpop.f32.mrf.mxu0
    %553 = vmatprep.mubr.f32.mxu0 0.0
    %554 = vmatmul.mubr.f32.gmra.mxu0 %v478
    %v555 = vpop.f32.mrf.mxu0
    %v556 = vadd.f32 0.0, %v555
    %v557 = vpop.f32.mrf.mxu0
    %558 = vdwg.mxu0
    %v559 = vadd.f32 %v278, %v39
    %v560 = vadd.f32 %v283, %v40
    %v561 = vadd.f32 %v369, %v39
    %v562 = vadd.f32 %v374, %v40
    %v563 = vadd.f32 %v460, %v39
    %v564 = vadd.f32 %v465, %v40
    %v565 = vadd.f32 %v551, %v39
    %v566 = vadd.f32 %v556, %v40
    %vm567 = vcmask 130048
    %v568 = vsel %vm567, %v559, -inf
    %569 = vmax.xlane.f32.xlu0 %v568
    %v570 = vpop.xlane.xlu0 %569
    %v571 = vsel %vm567, %v560, -inf
    %572 = vmax.xlane.f32.xlu0 %v571
    %v573 = vpop.xlane.xlu0 %572
    %v574 = vsel %vm567, %v561, -inf
    %575 = vmax.xlane.f32.xlu0 %v574
    %v576 = vpop.xlane.xlu0 %575
    %v577 = vsel %vm567, %v562, -inf
    %578 = vmax.xlane.f32.xlu0 %v577
    %v579 = vpop.xlane.xlu0 %578
    %v580 = vsel %vm567, %v563, -inf
    %581 = vmax.xlane.f32.xlu0 %v580
    %v582 = vpop.xlane.xlu0 %581
    %v583 = vsel %vm567, %v564, -inf
    %584 = vmax.xlane.f32.xlu0 %v583
    %v585 = vpop.xlane.xlu0 %584
    %v586 = vsel %vm567, %v565, -inf
    %587 = vmax.xlane.f32.xlu0 %v586
    %v588 = vpop.xlane.xlu0 %587
    %v589 = vsel %vm567, %v566, -inf
    %590 = vmax.xlane.f32.xlu0 %v589
    %v591 = vpop.xlane.xlu0 %590
    %v592 = vsub.f32 %v559, %v570
    %v593 = vsub.f32 %v560, %v573
    %v594 = vsub.f32 %v561, %v576
    %v595 = vsub.f32 %v562, %v579
    %v596 = vsub.f32 %v563, %v582
    %v597 = vsub.f32 %v564, %v585
    %v598 = vsub.f32 %v565, %v588
    %v599 = vsub.f32 %v566, %v591
    %v600 = vmul.f32 %v592, 1.442695
    %v601 = vpow.pop %v600
    %v602 = vmul.f32 %v593, 1.442695
    %v603 = vpow.pop %v602
    %v604 = vmul.f32 %v594, 1.442695
    %v605 = vpow.pop %v604
    %v606 = vmul.f32 %v595, 1.442695
    %v607 = vpow.pop %v606
    %v608 = vmul.f32 %v596, 1.442695
    %v609 = vpow.pop %v608
    %v610 = vmul.f32 %v597, 1.442695
    %v611 = vpow.pop %v610
    %v612 = vmul.f32 %v598, 1.442695
    %v613 = vpow.pop %v612
    %v614 = vmul.f32 %v599, 1.442695
    %v615 = vpow.pop %v614
    %v616 = vsel %vm567, %v601, 0.0
    %617 = vadd.xlane.f32.xlu0 %v616
    %v618 = vpop.xlane.xlu0 %617
    %v619 = vsel %vm567, %v603, 0.0
    %620 = vadd.xlane.f32.xlu0 %v619
    %v621 = vpop.xlane.xlu0 %620
    %v622 = vsel %vm567, %v605, 0.0
    %623 = vadd.xlane.f32.xlu0 %v622
    %v624 = vpop.xlane.xlu0 %623
    %v625 = vsel %vm567, %v607, 0.0
    %626 = vadd.xlane.f32.xlu0 %v625
    %v627 = vpop.xlane.xlu0 %626
    %v628 = vsel %vm567, %v609, 0.0
    %629 = vadd.xlane.f32.xlu0 %v628
    %v630 = vpop.xlane.xlu0 %629
    %v631 = vsel %vm567, %v611, 0.0
    %632 = vadd.xlane.f32.xlu0 %v631
    %v633 = vpop.xlane.xlu0 %632
    %v634 = vsel %vm567, %v613, 0.0
    %635 = vadd.xlane.f32.xlu0 %v634
    %v636 = vpop.xlane.xlu0 %635
    %v637 = vsel %vm567, %v615, 0.0
    %638 = vadd.xlane.f32.xlu0 %v637
    %v639 = vpop.xlane.xlu0 %638
    %v640 = vrcp.pop %v618
    %v641 = vmul.f32 %v601, %v640
    %v642 = vrcp.pop %v621
    %v643 = vmul.f32 %v603, %v642
    %v644 = vrcp.pop %v624
    %v645 = vmul.f32 %v605, %v644
    %v646 = vrcp.pop %v627
    %v647 = vmul.f32 %v607, %v646
    %v648 = vrcp.pop %v630
    %v649 = vmul.f32 %v609, %v648
    %v650 = vrcp.pop %v633
    %v651 = vmul.f32 %v611, %v650
    %v652 = vrcp.pop %v636
    %v653 = vmul.f32 %v613, %v652
    %v654 = vrcp.pop %v639
    %v655 = vmul.f32 %v615, %v654
    %v656 = vld [vmem:[%s5] sm:$0xff]
    %v657 = vld [vmem:[%s5 + $0x8] sm:$0xff]
    %v658 = vld [vmem:[%s5 + $0x10] sm:$0xff]
    %v659 = vld [vmem:[%s5 + $0x18] sm:$0xff]
    %662 = vrot.lane.b32.xlu0 %v140, 64
    %v663 = vpop.permute.xlu0 %662
    %664 = vrot.lane.b32.xlu0 %v146, 64
    %v665 = vpop.permute.xlu0 %664
    %v669 = vsel %vm567, %v641, 0
    %v672 = vsel %vm567, %v643, 0
    %674 = vmatprep.subr.mxu0 0.0
    %675 = vmatpush1.msra.mxu0 0.0
    %676 = vmatprep.subr.mxu0 0.0
    %677 = vmatpush1.msra.mxu0 0.0
    %678 = vmatprep.subr.mxu0 0.0
    %679 = vmatpush1.msra.mxu0 0.0
    %680 = vmatprep.subr.mxu0 0.0
    %681 = vmatpush1.msra.mxu0 0.0
    %682 = vmatprep.subr.mxu0 0.0
    %683 = vmatpush1.msra.mxu0 0.0
    %684 = vmatprep.subr.mxu0 0.0
    %685 = vmatpush1.msra.mxu0 0.0
    %686 = vmatprep.subr.mxu0 0.0
    %687 = vmatpush1.msra.mxu0 0.0
    %688 = vmatprep.subr.mxu0 0.0
    %689 = vmatpush1.msra.mxu0 0.0
    %690 = vmatprep.subr.mxu0 0.0
    %691 = vmatpush1.msra.mxu0 0.0
    %692 = vmatprep.subr.mxu0 0.0
    %693 = vmatpush1.msra.mxu0 0.0
    %694 = vmatprep.subr.mxu0 0.0
    %695 = vmatpush1.msra.mxu0 0.0
    %696 = vmatprep.subr.mxu0 0.0
    %697 = vmatpush1.msra.mxu0 0.0
    %698 = vmatprep.subr.mxu0 0.0
    %699 = vmatpush1.msra.mxu0 0.0
    %700 = vmatprep.subr.mxu0 0.0
    %701 = vmatpush1.msra.mxu0 0.0
    %702 = vmatprep.subr.mxu0 0.0
    %703 = vmatpush1.msra.mxu0 %v665
    %704 = vmatprep.subr.mxu0 0.0
    %705 = vmatpush1.msra.mxu0 %v663
    %706 = vmatprep.subr.mxu0 0.0
    %707 = vmatpush2.msra.mxu0 0.0
    %708 = vmatprep.subr.mxu0 0.0
    %709 = vmatpush2.msra.mxu0 0.0
    %710 = vmatprep.subr.mxu0 0.0
    %711 = vmatpush2.msra.mxu0 0.0
    %712 = vmatprep.subr.mxu0 0.0
    %713 = vmatpush2.msra.mxu0 0.0
    %714 = vmatprep.subr.mxu0 0.0
    %715 = vmatpush2.msra.mxu0 0.0
    %716 = vmatprep.subr.mxu0 0.0
    %717 = vmatpush2.msra.mxu0 0.0
    %718 = vmatprep.subr.mxu0 0.0
    %719 = vmatpush2.msra.mxu0 0.0
    %720 = vmatprep.subr.mxu0 0.0
    %721 = vmatpush2.msra.mxu0 0.0
    %722 = vmatprep.subr.mxu0 0.0
    %723 = vmatpush2.msra.mxu0 0.0
    %724 = vmatprep.subr.mxu0 0.0
    %725 = vmatpush2.msra.mxu0 0.0
    %726 = vmatprep.subr.mxu0 0.0
    %727 = vmatpush2.msra.mxu0 0.0
    %728 = vmatprep.subr.mxu0 0.0
    %729 = vmatpush2.msra.mxu0 0.0
    %730 = vmatprep.subr.mxu0 0.0
    %731 = vmatpush2.msra.mxu0 0.0
    %732 = vmatprep.subr.mxu0 0.0
    %733 = vmatpush2.msra.mxu0 0.0
    %734 = vmatprep.subr.mxu0 0.0
    %735 = vmatpush2.msra.mxu0 0.0
    %736 = vmatprep.subr.mxu0 0.0
    %737 = vmatpush2.msra.mxu0 0.0
    %738 = vmatprep.mubr.f32.mxu0 0.0
    %739 = vmatmul.mubr.f32.gmra.mxu0 %v669
    %v740 = vpop.f32.mrf.mxu0
    %v741 = vadd.f32 0.0, %v740
    %v742 = vpop.f32.mrf.mxu0
    %743 = vmatprep.mubr.f32.mxu0 0.0
    %744 = vmatmul.mubr.f32.gmra.mxu0 %v672
    %v745 = vpop.f32.mrf.mxu0
    %v746 = vadd.f32 0.0, %v745
    %v747 = vpop.f32.mrf.mxu0
    %748 = vdwg.mxu0
    %v750 = vsel %vm200, %v741, 0
    %v753 = vsel %vm200, %v746, 0
    %755 = vmatprep.subr.mxu0 0.0
    %756 = vmatpush1.msra.mxu0 0.0
    %757 = vmatprep.subr.mxu0 0.0
    %758 = vmatpush1.msra.mxu0 0.0
    %759 = vmatprep.subr.mxu0 0.0
    %760 = vmatpush1.msra.mxu0 0.0
    %761 = vmatprep.subr.mxu0 0.0
    %762 = vmatpush1.msra.mxu0 0.0
    %763 = vmatprep.subr.mxu0 0.0
    %764 = vmatpush1.msra.mxu0 0.0
    %765 = vmatprep.subr.mxu0 0.0
    %766 = vmatpush1.msra.mxu0 0.0
    %767 = vmatprep.subr.mxu0 0.0
    %768 = vmatpush1.msra.mxu0 0.0
    %769 = vmatprep.subr.mxu0 0.0
    %770 = vmatpush1.msra.mxu0 0.0
    %771 = vmatprep.subr.mxu0 0.0
    %772 = vmatpush1.msra.mxu0 0.0
    %773 = vmatprep.subr.mxu0 0.0
    %774 = vmatpush1.msra.mxu0 0.0
    %775 = vmatprep.subr.mxu0 0.0
    %776 = vmatpush1.msra.mxu0 0.0
    %777 = vmatprep.subr.mxu0 0.0
    %778 = vmatpush1.msra.mxu0 0.0
    %779 = vmatprep.subr.mxu0 0.0
    %780 = vmatpush1.msra.mxu0 0.0
    %781 = vmatprep.subr.mxu0 0.0
    %782 = vmatpush1.msra.mxu0 0.0
    %783 = vmatprep.subr.mxu0 0.0
    %784 = vmatpush1.msra.mxu0 0.0
    %785 = vmatprep.subr.mxu0 0.0
    %786 = vmatpush1.msra.mxu0 %v656
    %787 = vmatprep.subr.mxu0 0.0
    %788 = vmatpush2.msra.mxu0 0.0
    %789 = vmatprep.subr.mxu0 0.0
    %790 = vmatpush2.msra.mxu0 0.0
    %791 = vmatprep.subr.mxu0 0.0
    %792 = vmatpush2.msra.mxu0 0.0
    %793 = vmatprep.subr.mxu0 0.0
    %794 = vmatpush2.msra.mxu0 0.0
    %795 = vmatprep.subr.mxu0 0.0
    %796 = vmatpush2.msra.mxu0 0.0
    %797 = vmatprep.subr.mxu0 0.0
    %798 = vmatpush2.msra.mxu0 0.0
    %799 = vmatprep.subr.mxu0 0.0
    %800 = vmatpush2.msra.mxu0 0.0
    %801 = vmatprep.subr.mxu0 0.0
    %802 = vmatpush2.msra.mxu0 0.0
    %803 = vmatprep.subr.mxu0 0.0
    %804 = vmatpush2.msra.mxu0 0.0
    %805 = vmatprep.subr.mxu0 0.0
    %806 = vmatpush2.msra.mxu0 0.0
    %807 = vmatprep.subr.mxu0 0.0
    %808 = vmatpush2.msra.mxu0 0.0
    %809 = vmatprep.subr.mxu0 0.0
    %810 = vmatpush2.msra.mxu0 0.0
    %811 = vmatprep.subr.mxu0 0.0
    %812 = vmatpush2.msra.mxu0 0.0
    %813 = vmatprep.subr.mxu0 0.0
    %814 = vmatpush2.msra.mxu0 0.0
    %815 = vmatprep.subr.mxu0 0.0
    %816 = vmatpush2.msra.mxu0 0.0
    %817 = vmatprep.subr.mxu0 0.0
    %818 = vmatpush2.msra.mxu0 0.0
    %819 = vmatprep.mubr.f32.mxu0 0.0
    %820 = vmatmul.mubr.f32.gmra.mxu0 %v750
    %v821 = vpop.f32.mrf.mxu0
    %v822 = vadd.f32 0.0, %v821
    %v823 = vpop.f32.mrf.mxu0
    %824 = vmatprep.mubr.f32.mxu0 0.0
    %825 = vmatmul.mubr.f32.gmra.mxu0 %v753
    %v826 = vpop.f32.mrf.mxu0
    %v827 = vadd.f32 0.0, %v826
    %v828 = vpop.f32.mrf.mxu0
    %829 = vdwg.mxu0
    %v830 = vadd.f32 %v33, %v822
    %v831 = vadd.f32 %v34, %v827
    %832 = vrot.lane.b32.xlu0 %v140, 56
    %v833 = vpop.permute.xlu0 %832
    %834 = vrot.lane.b32.xlu0 %v146, 56
    %v835 = vpop.permute.xlu0 %834
    %v839 = vsel %vm567, %v645, 0
    %v842 = vsel %vm567, %v647, 0
    %844 = vmatprep.subr.mxu0 0.0
    %845 = vmatpush1.msra.mxu0 0.0
    %846 = vmatprep.subr.mxu0 0.0
    %847 = vmatpush1.msra.mxu0 0.0
    %848 = vmatprep.subr.mxu0 0.0
    %849 = vmatpush1.msra.mxu0 0.0
    %850 = vmatprep.subr.mxu0 0.0
    %851 = vmatpush1.msra.mxu0 0.0
    %852 = vmatprep.subr.mxu0 0.0
    %853 = vmatpush1.msra.mxu0 0.0
    %854 = vmatprep.subr.mxu0 0.0
    %855 = vmatpush1.msra.mxu0 0.0
    %856 = vmatprep.subr.mxu0 0.0
    %857 = vmatpush1.msra.mxu0 0.0
    %858 = vmatprep.subr.mxu0 0.0
    %859 = vmatpush1.msra.mxu0 0.0
    %860 = vmatprep.subr.mxu0 0.0
    %861 = vmatpush1.msra.mxu0 0.0
    %862 = vmatprep.subr.mxu0 0.0
    %863 = vmatpush1.msra.mxu0 0.0
    %864 = vmatprep.subr.mxu0 0.0
    %865 = vmatpush1.msra.mxu0 0.0
    %866 = vmatprep.subr.mxu0 0.0
    %867 = vmatpush1.msra.mxu0 0.0
    %868 = vmatprep.subr.mxu0 0.0
    %869 = vmatpush1.msra.mxu0 0.0
    %870 = vmatprep.subr.mxu0 0.0
    %871 = vmatpush1.msra.mxu0 0.0
    %872 = vmatprep.subr.mxu0 0.0
    %873 = vmatpush1.msra.mxu0 %v835
    %874 = vmatprep.subr.mxu0 0.0
    %875 = vmatpush1.msra.mxu0 %v833
    %876 = vmatprep.subr.mxu0 0.0
    %877 = vmatpush2.msra.mxu0 0.0
    %878 = vmatprep.subr.mxu0 0.0
    %879 = vmatpush2.msra.mxu0 0.0
    %880 = vmatprep.subr.mxu0 0.0
    %881 = vmatpush2.msra.mxu0 0.0
    %882 = vmatprep.subr.mxu0 0.0
    %883 = vmatpush2.msra.mxu0 0.0
    %884 = vmatprep.subr.mxu0 0.0
    %885 = vmatpush2.msra.mxu0 0.0
    %886 = vmatprep.subr.mxu0 0.0
    %887 = vmatpush2.msra.mxu0 0.0
    %888 = vmatprep.subr.mxu0 0.0
    %889 = vmatpush2.msra.mxu0 0.0
    %890 = vmatprep.subr.mxu0 0.0
    %891 = vmatpush2.msra.mxu0 0.0
    %892 = vmatprep.subr.mxu0 0.0
    %893 = vmatpush2.msra.mxu0 0.0
    %894 = vmatprep.subr.mxu0 0.0
    %895 = vmatpush2.msra.mxu0 0.0
    %896 = vmatprep.subr.mxu0 0.0
    %897 = vmatpush2.msra.mxu0 0.0
    %898 = vmatprep.subr.mxu0 0.0
    %899 = vmatpush2.msra.mxu0 0.0
    %900 = vmatprep.subr.mxu0 0.0
    %901 = vmatpush2.msra.mxu0 0.0
    %902 = vmatprep.subr.mxu0 0.0
    %903 = vmatpush2.msra.mxu0 0.0
    %904 = vmatprep.subr.mxu0 0.0
    %905 = vmatpush2.msra.mxu0 0.0
    %906 = vmatprep.subr.mxu0 0.0
    %907 = vmatpush2.msra.mxu0 0.0
    %908 = vmatprep.mubr.f32.mxu0 0.0
    %909 = vmatmul.mubr.f32.gmra.mxu0 %v839
    %v910 = vpop.f32.mrf.mxu0
    %v911 = vadd.f32 0.0, %v910
    %v912 = vpop.f32.mrf.mxu0
    %913 = vmatprep.mubr.f32.mxu0 0.0
    %914 = vmatmul.mubr.f32.gmra.mxu0 %v842
    %v915 = vpop.f32.mrf.mxu0
    %v916 = vadd.f32 0.0, %v915
    %v917 = vpop.f32.mrf.mxu0
    %918 = vdwg.mxu0
    %v920 = vsel %vm200, %v911, 0
    %v923 = vsel %vm200, %v916, 0
    %925 = vmatprep.subr.mxu0 0.0
    %926 = vmatpush1.msra.mxu0 0.0
    %927 = vmatprep.subr.mxu0 0.0
    %928 = vmatpush1.msra.mxu0 0.0
    %929 = vmatprep.subr.mxu0 0.0
    %930 = vmatpush1.msra.mxu0 0.0
    %931 = vmatprep.subr.mxu0 0.0
    %932 = vmatpush1.msra.mxu0 0.0
    %933 = vmatprep.subr.mxu0 0.0
    %934 = vmatpush1.msra.mxu0 0.0
    %935 = vmatprep.subr.mxu0 0.0
    %936 = vmatpush1.msra.mxu0 0.0
    %937 = vmatprep.subr.mxu0 0.0
    %938 = vmatpush1.msra.mxu0 0.0
    %939 = vmatprep.subr.mxu0 0.0
    %940 = vmatpush1.msra.mxu0 0.0
    %941 = vmatprep.subr.mxu0 0.0
    %942 = vmatpush1.msra.mxu0 0.0
    %943 = vmatprep.subr.mxu0 0.0
    %944 = vmatpush1.msra.mxu0 0.0
    %945 = vmatprep.subr.mxu0 0.0
    %946 = vmatpush1.msra.mxu0 0.0
    %947 = vmatprep.subr.mxu0 0.0
    %948 = vmatpush1.msra.mxu0 0.0
    %949 = vmatprep.subr.mxu0 0.0
    %950 = vmatpush1.msra.mxu0 0.0
    %951 = vmatprep.subr.mxu0 0.0
    %952 = vmatpush1.msra.mxu0 0.0
    %953 = vmatprep.subr.mxu0 0.0
    %954 = vmatpush1.msra.mxu0 0.0
    %955 = vmatprep.subr.mxu0 0.0
    %956 = vmatpush1.msra.mxu0 %v657
    %957 = vmatprep.subr.mxu0 0.0
    %958 = vmatpush2.msra.mxu0 0.0
    %959 = vmatprep.subr.mxu0 0.0
    %960 = vmatpush2.msra.mxu0 0.0
    %961 = vmatprep.subr.mxu0 0.0
    %962 = vmatpush2.msra.mxu0 0.0
    %963 = vmatprep.subr.mxu0 0.0
    %964 = vmatpush2.msra.mxu0 0.0
    %965 = vmatprep.subr.mxu0 0.0
    %966 = vmatpush2.msra.mxu0 0.0
    %967 = vmatprep.subr.mxu0 0.0
    %968 = vmatpush2.msra.mxu0 0.0
    %969 = vmatprep.subr.mxu0 0.0
    %970 = vmatpush2.msra.mxu0 0.0
    %971 = vmatprep.subr.mxu0 0.0
    %972 = vmatpush2.msra.mxu0 0.0
    %973 = vmatprep.subr.mxu0 0.0
    %974 = vmatpush2.msra.mxu0 0.0
    %975 = vmatprep.subr.mxu0 0.0
    %976 = vmatpush2.msra.mxu0 0.0
    %977 = vmatprep.subr.mxu0 0.0
    %978 = vmatpush2.msra.mxu0 0.0
    %979 = vmatprep.subr.mxu0 0.0
    %980 = vmatpush2.msra.mxu0 0.0
    %981 = vmatprep.subr.mxu0 0.0
    %982 = vmatpush2.msra.mxu0 0.0
    %983 = vmatprep.subr.mxu0 0.0
    %984 = vmatpush2.msra.mxu0 0.0
    %985 = vmatprep.subr.mxu0 0.0
    %986 = vmatpush2.msra.mxu0 0.0
    %987 = vmatprep.subr.mxu0 0.0
    %988 = vmatpush2.msra.mxu0 0.0
    %989 = vmatprep.mubr.f32.mxu0 0.0
    %990 = vmatmul.mubr.f32.gmra.mxu0 %v920
    %v991 = vpop.f32.mrf.mxu0
    %v992 = vadd.f32 0.0, %v991
    %v993 = vpop.f32.mrf.mxu0
    %994 = vmatprep.mubr.f32.mxu0 0.0
    %995 = vmatmul.mubr.f32.gmra.mxu0 %v923
    %v996 = vpop.f32.mrf.mxu0
    %v997 = vadd.f32 0.0, %v996
    %v998 = vpop.f32.mrf.mxu0
    %999 = vdwg.mxu0
    %v1000 = vadd.f32 %v830, %v992
    %v1001 = vadd.f32 %v831, %v997
    %1002 = vrot.lane.b32.xlu0 %v140, 48
    %v1003 = vpop.permute.xlu0 %1002
    %1004 = vrot.lane.b32.xlu0 %v146, 48
    %v1005 = vpop.permute.xlu0 %1004
    %v1009 = vsel %vm567, %v649, 0
    %v1012 = vsel %vm567, %v651, 0
    %1014 = vmatprep.subr.mxu0 0.0
    %1015 = vmatpush1.msra.mxu0 0.0
    %1016 = vmatprep.subr.mxu0 0.0
    %1017 = vmatpush1.msra.mxu0 0.0
    %1018 = vmatprep.subr.mxu0 0.0
    %1019 = vmatpush1.msra.mxu0 0.0
    %1020 = vmatprep.subr.mxu0 0.0
    %1021 = vmatpush1.msra.mxu0 0.0
    %1022 = vmatprep.subr.mxu0 0.0
    %1023 = vmatpush1.msra.mxu0 0.0
    %1024 = vmatprep.subr.mxu0 0.0
    %1025 = vmatpush1.msra.mxu0 0.0
    %1026 = vmatprep.subr.mxu0 0.0
    %1027 = vmatpush1.msra.mxu0 0.0
    %1028 = vmatprep.subr.mxu0 0.0
    %1029 = vmatpush1.msra.mxu0 0.0
    %1030 = vmatprep.subr.mxu0 0.0
    %1031 = vmatpush1.msra.mxu0 0.0
    %1032 = vmatprep.subr.mxu0 0.0
    %1033 = vmatpush1.msra.mxu0 0.0
    %1034 = vmatprep.subr.mxu0 0.0
    %1035 = vmatpush1.msra.mxu0 0.0
    %1036 = vmatprep.subr.mxu0 0.0
    %1037 = vmatpush1.msra.mxu0 0.0
    %1038 = vmatprep.subr.mxu0 0.0
    %1039 = vmatpush1.msra.mxu0 0.0
    %1040 = vmatprep.subr.mxu0 0.0
    %1041 = vmatpush1.msra.mxu0 0.0
    %1042 = vmatprep.subr.mxu0 0.0
    %1043 = vmatpush1.msra.mxu0 %v1005
    %1044 = vmatprep.subr.mxu0 0.0
    %1045 = vmatpush1.msra.mxu0 %v1003
    %1046 = vmatprep.subr.mxu0 0.0
    %1047 = vmatpush2.msra.mxu0 0.0
    %1048 = vmatprep.subr.mxu0 0.0
    %1049 = vmatpush2.msra.mxu0 0.0
    %1050 = vmatprep.subr.mxu0 0.0
    %1051 = vmatpush2.msra.mxu0 0.0
    %1052 = vmatprep.subr.mxu0 0.0
    %1053 = vmatpush2.msra.mxu0 0.0
    %1054 = vmatprep.subr.mxu0 0.0
    %1055 = vmatpush2.msra.mxu0 0.0
    %1056 = vmatprep.subr.mxu0 0.0
    %1057 = vmatpush2.msra.mxu0 0.0
    %1058 = vmatprep.subr.mxu0 0.0
    %1059 = vmatpush2.msra.mxu0 0.0
    %1060 = vmatprep.subr.mxu0 0.0
    %1061 = vmatpush2.msra.mxu0 0.0
    %1062 = vmatprep.subr.mxu0 0.0
    %1063 = vmatpush2.msra.mxu0 0.0
    %1064 = vmatprep.subr.mxu0 0.0
    %1065 = vmatpush2.msra.mxu0 0.0
    %1066 = vmatprep.subr.mxu0 0.0
    %1067 = vmatpush2.msra.mxu0 0.0
    %1068 = vmatprep.subr.mxu0 0.0
    %1069 = vmatpush2.msra.mxu0 0.0
    %1070 = vmatprep.subr.mxu0 0.0
    %1071 = vmatpush2.msra.mxu0 0.0
    %1072 = vmatprep.subr.mxu0 0.0
    %1073 = vmatpush2.msra.mxu0 0.0
    %1074 = vmatprep.subr.mxu0 0.0
    %1075 = vmatpush2.msra.mxu0 0.0
    %1076 = vmatprep.subr.mxu0 0.0
    %1077 = vmatpush2.msra.mxu0 0.0
    %1078 = vmatprep.mubr.f32.mxu0 0.0
    %1079 = vmatmul.mubr.f32.gmra.mxu0 %v1009
    %v1080 = vpop.f32.mrf.mxu0
    %v1081 = vadd.f32 0.0, %v1080
    %v1082 = vpop.f32.mrf.mxu0
    %1083 = vmatprep.mubr.f32.mxu0 0.0
    %1084 = vmatmul.mubr.f32.gmra.mxu0 %v1012
    %v1085 = vpop.f32.mrf.mxu0
    %v1086 = vadd.f32 0.0, %v1085
    %v1087 = vpop.f32.mrf.mxu0
    %1088 = vdwg.mxu0
    %v1090 = vsel %vm200, %v1081, 0
    %v1093 = vsel %vm200, %v1086, 0
    %1095 = vmatprep.subr.mxu0 0.0
    %1096 = vmatpush1.msra.mxu0 0.0
    %1097 = vmatprep.subr.mxu0 0.0
    %1098 = vmatpush1.msra.mxu0 0.0
    %1099 = vmatprep.subr.mxu0 0.0
    %1100 = vmatpush1.msra.mxu0 0.0
    %1101 = vmatprep.subr.mxu0 0.0
    %1102 = vmatpush1.msra.mxu0 0.0
    %1103 = vmatprep.subr.mxu0 0.0
    %1104 = vmatpush1.msra.mxu0 0.0
    %1105 = vmatprep.subr.mxu0 0.0
    %1106 = vmatpush1.msra.mxu0 0.0
    %1107 = vmatprep.subr.mxu0 0.0
    %1108 = vmatpush1.msra.mxu0 0.0
    %1109 = vmatprep.subr.mxu0 0.0
    %1110 = vmatpush1.msra.mxu0 0.0
    %1111 = vmatprep.subr.mxu0 0.0
    %1112 = vmatpush1.msra.mxu0 0.0
    %1113 = vmatprep.subr.mxu0 0.0
    %1114 = vmatpush1.msra.mxu0 0.0
    %1115 = vmatprep.subr.mxu0 0.0
    %1116 = vmatpush1.msra.mxu0 0.0
    %1117 = vmatprep.subr.mxu0 0.0
    %1118 = vmatpush1.msra.mxu0 0.0
    %1119 = vmatprep.subr.mxu0 0.0
    %1120 = vmatpush1.msra.mxu0 0.0
    %1121 = vmatprep.subr.mxu0 0.0
    %1122 = vmatpush1.msra.mxu0 0.0
    %1123 = vmatprep.subr.mxu0 0.0
    %1124 = vmatpush1.msra.mxu0 0.0
    %1125 = vmatprep.subr.mxu0 0.0
    %1126 = vmatpush1.msra.mxu0 %v658
    %1127 = vmatprep.subr.mxu0 0.0
    %1128 = vmatpush2.msra.mxu0 0.0
    %1129 = vmatprep.subr.mxu0 0.0
    %1130 = vmatpush2.msra.mxu0 0.0
    %1131 = vmatprep.subr.mxu0 0.0
    %1132 = vmatpush2.msra.mxu0 0.0
    %1133 = vmatprep.subr.mxu0 0.0
    %1134 = vmatpush2.msra.mxu0 0.0
    %1135 = vmatprep.subr.mxu0 0.0
    %1136 = vmatpush2.msra.mxu0 0.0
    %1137 = vmatprep.subr.mxu0 0.0
    %1138 = vmatpush2.msra.mxu0 0.0
    %1139 = vmatprep.subr.mxu0 0.0
    %1140 = vmatpush2.msra.mxu0 0.0
    %1141 = vmatprep.subr.mxu0 0.0
    %1142 = vmatpush2.msra.mxu0 0.0
    %1143 = vmatprep.subr.mxu0 0.0
    %1144 = vmatpush2.msra.mxu0 0.0
    %1145 = vmatprep.subr.mxu0 0.0
    %1146 = vmatpush2.msra.mxu0 0.0
    %1147 = vmatprep.subr.mxu0 0.0
    %1148 = vmatpush2.msra.mxu0 0.0
    %1149 = vmatprep.subr.mxu0 0.0
    %1150 = vmatpush2.msra.mxu0 0.0
    %1151 = vmatprep.subr.mxu0 0.0
    %1152 = vmatpush2.msra.mxu0 0.0
    %1153 = vmatprep.subr.mxu0 0.0
    %1154 = vmatpush2.msra.mxu0 0.0
    %1155 = vmatprep.subr.mxu0 0.0
    %1156 = vmatpush2.msra.mxu0 0.0
    %1157 = vmatprep.subr.mxu0 0.0
    %1158 = vmatpush2.msra.mxu0 0.0
    %1159 = vmatprep.mubr.f32.mxu0 0.0
    %1160 = vmatmul.mubr.f32.gmra.mxu0 %v1090
    %v1161 = vpop.f32.mrf.mxu0
    %v1162 = vadd.f32 0.0, %v1161
    %v1163 = vpop.f32.mrf.mxu0
    %1164 = vmatprep.mubr.f32.mxu0 0.0
    %1165 = vmatmul.mubr.f32.gmra.mxu0 %v1093
    %v1166 = vpop.f32.mrf.mxu0
    %v1167 = vadd.f32 0.0, %v1166
    %v1168 = vpop.f32.mrf.mxu0
    %1169 = vdwg.mxu0
    %v1170 = vadd.f32 %v1000, %v1162
    %v1171 = vadd.f32 %v1001, %v1167
    %1172 = vrot.lane.b32.xlu0 %v140, 40
    %v1173 = vpop.permute.xlu0 %1172
    %1174 = vrot.lane.b32.xlu0 %v146, 40
    %v1175 = vpop.permute.xlu0 %1174
    %v1179 = vsel %vm567, %v653, 0
    %v1182 = vsel %vm567, %v655, 0
    %1184 = vmatprep.subr.mxu0 0.0
    %1185 = vmatpush1.msra.mxu0 0.0
    %1186 = vmatprep.subr.mxu0 0.0
    %1187 = vmatpush1.msra.mxu0 0.0
    %1188 = vmatprep.subr.mxu0 0.0
    %1189 = vmatpush1.msra.mxu0 0.0
    %1190 = vmatprep.subr.mxu0 0.0
    %1191 = vmatpush1.msra.mxu0 0.0
    %1192 = vmatprep.subr.mxu0 0.0
    %1193 = vmatpush1.msra.mxu0 0.0
    %1194 = vmatprep.subr.mxu0 0.0
    %1195 = vmatpush1.msra.mxu0 0.0
    %1196 = vmatprep.subr.mxu0 0.0
    %1197 = vmatpush1.msra.mxu0 0.0
    %1198 = vmatprep.subr.mxu0 0.0
    %1199 = vmatpush1.msra.mxu0 0.0
    %1200 = vmatprep.subr.mxu0 0.0
    %1201 = vmatpush1.msra.mxu0 0.0
    %1202 = vmatprep.subr.mxu0 0.0
    %1203 = vmatpush1.msra.mxu0 0.0
    %1204 = vmatprep.subr.mxu0 0.0
    %1205 = vmatpush1.msra.mxu0 0.0
    %1206 = vmatprep.subr.mxu0 0.0
    %1207 = vmatpush1.msra.mxu0 0.0
    %1208 = vmatprep.subr.mxu0 0.0
    %1209 = vmatpush1.msra.mxu0 0.0
    %1210 = vmatprep.subr.mxu0 0.0
    %1211 = vmatpush1.msra.mxu0 0.0
    %1212 = vmatprep.subr.mxu0 0.0
    %1213 = vmatpush1.msra.mxu0 %v1175
    %1214 = vmatprep.subr.mxu0 0.0
    %1215 = vmatpush1.msra.mxu0 %v1173
    %1216 = vmatprep.subr.mxu0 0.0
    %1217 = vmatpush2.msra.mxu0 0.0
    %1218 = vmatprep.subr.mxu0 0.0
    %1219 = vmatpush2.msra.mxu0 0.0
    %1220 = vmatprep.subr.mxu0 0.0
    %1221 = vmatpush2.msra.mxu0 0.0
    %1222 = vmatprep.subr.mxu0 0.0
    %1223 = vmatpush2.msra.mxu0 0.0
    %1224 = vmatprep.subr.mxu0 0.0
    %1225 = vmatpush2.msra.mxu0 0.0
    %1226 = vmatprep.subr.mxu0 0.0
    %1227 = vmatpush2.msra.mxu0 0.0
    %1228 = vmatprep.subr.mxu0 0.0
    %1229 = vmatpush2.msra.mxu0 0.0
    %1230 = vmatprep.subr.mxu0 0.0
    %1231 = vmatpush2.msra.mxu0 0.0
    %1232 = vmatprep.subr.mxu0 0.0
    %1233 = vmatpush2.msra.mxu0 0.0
    %1234 = vmatprep.subr.mxu0 0.0
    %1235 = vmatpush2.msra.mxu0 0.0
    %1236 = vmatprep.subr.mxu0 0.0
    %1237 = vmatpush2.msra.mxu0 0.0
    %1238 = vmatprep.subr.mxu0 0.0
    %1239 = vmatpush2.msra.mxu0 0.0
    %1240 = vmatprep.subr.mxu0 0.0
    %1241 = vmatpush2.msra.mxu0 0.0
    %1242 = vmatprep.subr.mxu0 0.0
    %1243 = vmatpush2.msra.mxu0 0.0
    %1244 = vmatprep.subr.mxu0 0.0
    %1245 = vmatpush2.msra.mxu0 0.0
    %1246 = vmatprep.subr.mxu0 0.0
    %1247 = vmatpush2.msra.mxu0 0.0
    %1248 = vmatprep.mubr.f32.mxu0 0.0
    %1249 = vmatmul.mubr.f32.gmra.mxu0 %v1179
    %v1250 = vpop.f32.mrf.mxu0
    %v1251 = vadd.f32 0.0, %v1250
    %v1252 = vpop.f32.mrf.mxu0
    %1253 = vmatprep.mubr.f32.mxu0 0.0
    %1254 = vmatmul.mubr.f32.gmra.mxu0 %v1182
    %v1255 = vpop.f32.mrf.mxu0
    %v1256 = vadd.f32 0.0, %v1255
    %v1257 = vpop.f32.mrf.mxu0
    %1258 = vdwg.mxu0
    %v1260 = vsel %vm200, %v1251, 0
    %v1263 = vsel %vm200, %v1256, 0
    %1265 = vmatprep.subr.mxu0 0.0
    %1266 = vmatpush1.msra.mxu0 0.0
    %1267 = vmatprep.subr.mxu0 0.0
    %1268 = vmatpush1.msra.mxu0 0.0
    %1269 = vmatprep.subr.mxu0 0.0
    %1270 = vmatpush1.msra.mxu0 0.0
    %1271 = vmatprep.subr.mxu0 0.0
    %1272 = vmatpush1.msra.mxu0 0.0
    %1273 = vmatprep.subr.mxu0 0.0
    %1274 = vmatpush1.msra.mxu0 0.0
    %1275 = vmatprep.subr.mxu0 0.0
    %1276 = vmatpush1.msra.mxu0 0.0
    %1277 = vmatprep.subr.mxu0 0.0
    %1278 = vmatpush1.msra.mxu0 0.0
    %1279 = vmatprep.subr.mxu0 0.0
    %1280 = vmatpush1.msra.mxu0 0.0
    %1281 = vmatprep.subr.mxu0 0.0
    %1282 = vmatpush1.msra.mxu0 0.0
    %1283 = vmatprep.subr.mxu0 0.0
    %1284 = vmatpush1.msra.mxu0 0.0
    %1285 = vmatprep.subr.mxu0 0.0
    %1286 = vmatpush1.msra.mxu0 0.0
    %1287 = vmatprep.subr.mxu0 0.0
    %1288 = vmatpush1.msra.mxu0 0.0
    %1289 = vmatprep.subr.mxu0 0.0
    %1290 = vmatpush1.msra.mxu0 0.0
    %1291 = vmatprep.subr.mxu0 0.0
    %1292 = vmatpush1.msra.mxu0 0.0
    %1293 = vmatprep.subr.mxu0 0.0
    %1294 = vmatpush1.msra.mxu0 0.0
    %1295 = vmatprep.subr.mxu0 0.0
    %1296 = vmatpush1.msra.mxu0 %v659
    %1297 = vmatprep.subr.mxu0 0.0
    %1298 = vmatpush2.msra.mxu0 0.0
    %1299 = vmatprep.subr.mxu0 0.0
    %1300 = vmatpush2.msra.mxu0 0.0
    %1301 = vmatprep.subr.mxu0 0.0
    %1302 = vmatpush2.msra.mxu0 0.0
    %1303 = vmatprep.subr.mxu0 0.0
    %1304 = vmatpush2.msra.mxu0 0.0
    %1305 = vmatprep.subr.mxu0 0.0
    %1306 = vmatpush2.msra.mxu0 0.0
    %1307 = vmatprep.subr.mxu0 0.0
    %1308 = vmatpush2.msra.mxu0 0.0
    %1309 = vmatprep.subr.mxu0 0.0
    %1310 = vmatpush2.msra.mxu0 0.0
    %1311 = vmatprep.subr.mxu0 0.0
    %1312 = vmatpush2.msra.mxu0 0.0
    %1313 = vmatprep.subr.mxu0 0.0
    %1314 = vmatpush2.msra.mxu0 0.0
    %1315 = vmatprep.subr.mxu0 0.0
    %1316 = vmatpush2.msra.mxu0 0.0
    %1317 = vmatprep.subr.mxu0 0.0
    %1318 = vmatpush2.msra.mxu0 0.0
    %1319 = vmatprep.subr.mxu0 0.0
    %1320 = vmatpush2.msra.mxu0 0.0
    %1321 = vmatprep.subr.mxu0 0.0
    %1322 = vmatpush2.msra.mxu0 0.0
    %1323 = vmatprep.subr.mxu0 0.0
    %1324 = vmatpush2.msra.mxu0 0.0
    %1325 = vmatprep.subr.mxu0 0.0
    %1326 = vmatpush2.msra.mxu0 0.0
    %1327 = vmatprep.subr.mxu0 0.0
    %1328 = vmatpush2.msra.mxu0 0.0
    %1329 = vmatprep.mubr.f32.mxu0 0.0
    %1330 = vmatmul.mubr.f32.gmra.mxu0 %v1260
    %v1331 = vpop.f32.mrf.mxu0
    %v1332 = vadd.f32 0.0, %v1331
    %v1333 = vpop.f32.mrf.mxu0
    %1334 = vmatprep.mubr.f32.mxu0 0.0
    %1335 = vmatmul.mubr.f32.gmra.mxu0 %v1263
    %v1336 = vpop.f32.mrf.mxu0
    %v1337 = vadd.f32 0.0, %v1336
    %v1338 = vpop.f32.mrf.mxu0
    %1339 = vdwg.mxu0
    %v1340 = vadd.f32 %v1170, %v1332
    %v1341 = vadd.f32 %v1171, %v1337
    %v1342 = vmul.f32 %v1340, %v1340
    %v1343 = vmul.f32 %v1341, %v1341
    %v1344 = vsel %vm43, %v1342, 0.0
    %1345 = vadd.xlane.f32.xlu0 %v1344
    %v1346 = vpop.xlane.xlu0 %1345
    %v1347 = vsel %vm43, %v1343, 0.0
    %1348 = vadd.xlane.f32.xlu0 %v1347
    %v1349 = vpop.xlane.xlu0 %1348
    %v1350 = vmul.f32 %v1346, %v50
    %v1351 = vmul.f32 %v1349, %v50
    %v1352 = vadd.f32 %v1350, 1e-05
    %v1353 = vadd.f32 %v1351, 1e-05
    %v1354 = vrsqrt.pop %v1352
    %v1355 = vrsqrt.pop %v1353
    %v1356 = vmul.f32 %v1340, %v1354
    %v1357 = vmul.f32 %v1341, %v1355
    %v1358 = vld [vmem:[%s6] sm:$0xff]
    %v1359 = vld [vmem:[%s6 + $0x8] sm:$0xff]
    %v1360 = vld [vmem:[%s6 + $0x10] sm:$0xff]
    %v1361 = vld [vmem:[%s6 + $0x18] sm:$0xff]
    %v1363 = vsel %vm43, %v1356, 0
    %v1366 = vsel %vm43, %v1357, 0
    %1368 = vmatprep.subr.mxu0 0.0
    %1369 = vmatpush1.msra.mxu0 0.0
    %1370 = vmatprep.subr.mxu0 0.0
    %1371 = vmatpush1.msra.mxu0 0.0
    %1372 = vmatprep.subr.mxu0 0.0
    %1373 = vmatpush1.msra.mxu0 0.0
    %1374 = vmatprep.subr.mxu0 0.0
    %1375 = vmatpush1.msra.mxu0 0.0
    %1376 = vmatprep.subr.mxu0 0.0
    %1377 = vmatpush1.msra.mxu0 0.0
    %1378 = vmatprep.subr.mxu0 0.0
    %1379 = vmatpush1.msra.mxu0 0.0
    %1380 = vmatprep.subr.mxu0 0.0
    %1381 = vmatpush1.msra.mxu0 0.0
    %1382 = vmatprep.subr.mxu0 0.0
    %1383 = vmatpush1.msra.mxu0 0.0
    %1384 = vmatprep.subr.mxu0 0.0
    %1385 = vmatpush1.msra.mxu0 0.0
    %1386 = vmatprep.subr.mxu0 0.0
    %1387 = vmatpush1.msra.mxu0 0.0
    %1388 = vmatprep.subr.mxu0 0.0
    %1389 = vmatpush1.msra.mxu0 0.0
    %1390 = vmatprep.subr.mxu0 0.0
    %1391 = vmatpush1.msra.mxu0 0.0
    %1392 = vmatprep.subr.mxu0 0.0
    %1393 = vmatpush1.msra.mxu0 %v1361
    %1394 = vmatprep.subr.mxu0 0.0
    %1395 = vmatpush1.msra.mxu0 %v1360
    %1396 = vmatprep.subr.mxu0 0.0
    %1397 = vmatpush1.msra.mxu0 %v1359
    %1398 = vmatprep.subr.mxu0 0.0
    %1399 = vmatpush1.msra.mxu0 %v1358
    %1400 = vmatprep.subr.mxu0 0.0
    %1401 = vmatpush2.msra.mxu0 0.0
    %1402 = vmatprep.subr.mxu0 0.0
    %1403 = vmatpush2.msra.mxu0 0.0
    %1404 = vmatprep.subr.mxu0 0.0
    %1405 = vmatpush2.msra.mxu0 0.0
    %1406 = vmatprep.subr.mxu0 0.0
    %1407 = vmatpush2.msra.mxu0 0.0
    %1408 = vmatprep.subr.mxu0 0.0
    %1409 = vmatpush2.msra.mxu0 0.0
    %1410 = vmatprep.subr.mxu0 0.0
    %1411 = vmatpush2.msra.mxu0 0.0
    %1412 = vmatprep.subr.mxu0 0.0
    %1413 = vmatpush2.msra.mxu0 0.0
    %1414 = vmatprep.subr.mxu0 0.0
    %1415 = vmatpush2.msra.mxu0 0.0
    %1416 = vmatprep.subr.mxu0 0.0
    %1417 = vmatpush2.msra.mxu0 0.0
    %1418 = vmatprep.subr.mxu0 0.0
    %1419 = vmatpush2.msra.mxu0 0.0
    %1420 = vmatprep.subr.mxu0 0.0
    %1421 = vmatpush2.msra.mxu0 0.0
    %1422 = vmatprep.subr.mxu0 0.0
    %1423 = vmatpush2.msra.mxu0 0.0
    %1424 = vmatprep.subr.mxu0 0.0
    %1425 = vmatpush2.msra.mxu0 0.0
    %1426 = vmatprep.subr.mxu0 0.0
    %1427 = vmatpush2.msra.mxu0 0.0
    %1428 = vmatprep.subr.mxu0 0.0
    %1429 = vmatpush2.msra.mxu0 0.0
    %1430 = vmatprep.subr.mxu0 0.0
    %1431 = vmatpush2.msra.mxu0 0.0
    %1432 = vmatprep.mubr.f32.mxu0 0.0
    %1433 = vmatmul.mubr.f32.gmra.mxu0 %v1363
    %v1434 = vpop.f32.mrf.mxu0
    %v1435 = vadd.f32 0.0, %v1434
    %v1436 = vpop.f32.mrf.mxu0
    %1437 = vmatprep.mubr.f32.mxu0 0.0
    %1438 = vmatmul.mubr.f32.gmra.mxu0 %v1366
    %v1439 = vpop.f32.mrf.mxu0
    %v1440 = vadd.f32 0.0, %v1439
    %v1441 = vpop.f32.mrf.mxu0
    %1442 = vdwg.mxu0
    %v1443 = vxor.u32 %v1435, 2147483648
    %v1444 = vxor.u32 %v1440, 2147483648
    %v1445 = vmul.f32 %v1443, 1.442695
    %v1446 = vpow.pop %v1445
    %v1447 = vmul.f32 %v1444, 1.442695
    %v1448 = vpow.pop %v1447
    %v1449 = vadd.f32 %v1446, 1.0
    %v1450 = vadd.f32 %v1448, 1.0
    %v1451 = vrcp.pop %v1449
    %v1452 = vmul.f32 1.0, %v1451
    %v1453 = vrcp.pop %v1450
    %v1454 = vmul.f32 1.0, %v1453
    %v1455 = vmul.f32 %v1435, %v1452
    %v1456 = vmul.f32 %v1440, %v1454
    %1459 = vrot.lane.b32.xlu0 %v1435, 64
    %v1460 = vpop.permute.xlu0 %1459
    %1461 = vrot.lane.b32.xlu0 %v1440, 64
    %v1462 = vpop.permute.xlu0 %1461
    %v1465 = vmul.f32 %v1455, %v1460
    %v1466 = vmul.f32 %v1456, %v1462
    %v1467 = vld [vmem:[%s7] sm:$0xff]
    %v1468 = vld [vmem:[%s7 + $0x8] sm:$0xff]
    %v1469 = vld [vmem:[%s7 + $0x10] sm:$0xff]
    %v1470 = vld [vmem:[%s7 + $0x18] sm:$0xff]
    %v1471 = vld [vmem:[%s7 + $0x20] sm:$0xff]
    %v1472 = vld [vmem:[%s7 + $0x28] sm:$0xff]
    %v1473 = vld [vmem:[%s7 + $0x30] sm:$0xff]
    %v1474 = vld [vmem:[%s7 + $0x38] sm:$0xff]
    %vm1475 = vcmask 523264
    %v1477 = vsel %vm1475, %v1465, 0
    %v1480 = vsel %vm1475, %v1466, 0
    %1482 = vmatprep.subr.mxu0 0.0
    %1483 = vmatpush1.msra.mxu0 0.0
    %1484 = vmatprep.subr.mxu0 0.0
    %1485 = vmatpush1.msra.mxu0 0.0
    %1486 = vmatprep.subr.mxu0 0.0
    %1487 = vmatpush1.msra.mxu0 0.0
    %1488 = vmatprep.subr.mxu0 0.0
    %1489 = vmatpush1.msra.mxu0 0.0
    %1490 = vmatprep.subr.mxu0 0.0
    %1491 = vmatpush1.msra.mxu0 0.0
    %1492 = vmatprep.subr.mxu0 0.0
    %1493 = vmatpush1.msra.mxu0 0.0
    %1494 = vmatprep.subr.mxu0 0.0
    %1495 = vmatpush1.msra.mxu0 0.0
    %1496 = vmatprep.subr.mxu0 0.0
    %1497 = vmatpush1.msra.mxu0 0.0
    %1498 = vmatprep.subr.mxu0 0.0
    %1499 = vmatpush1.msra.mxu0 %v1474
    %1500 = vmatprep.subr.mxu0 0.0
    %1501 = vmatpush1.msra.mxu0 %v1473
    %1502 = vmatprep.subr.mxu0 0.0
    %1503 = vmatpush1.msra.mxu0 %v1472
    %1504 = vmatprep.subr.mxu0 0.0
    %1505 = vmatpush1.msra.mxu0 %v1471
    %1506 = vmatprep.subr.mxu0 0.0
    %1507 = vmatpush1.msra.mxu0 %v1470
    %1508 = vmatprep.subr.mxu0 0.0
    %1509 = vmatpush1.msra.mxu0 %v1469
    %1510 = vmatprep.subr.mxu0 0.0
    %1511 = vmatpush1.msra.mxu0 %v1468
    %1512 = vmatprep.subr.mxu0 0.0
    %1513 = vmatpush1.msra.mxu0 %v1467
    %1514 = vmatprep.subr.mxu0 0.0
    %1515 = vmatpush2.msra.mxu0 0.0
    %1516 = vmatprep.subr.mxu0 0.0
    %1517 = vmatpush2.msra.mxu0 0.0
    %1518 = vmatprep.subr.mxu0 0.0
    %1519 = vmatpush2.msra.mxu0 0.0
    %1520 = vmatprep.subr.mxu0 0.0
    %1521 = vmatpush2.msra.mxu0 0.0
    %1522 = vmatprep.subr.mxu0 0.0
    %1523 = vmatpush2.msra.mxu0 0.0
    %1524 = vmatprep.subr.mxu0 0.0
    %1525 = vmatpush2.msra.mxu0 0.0
    %1526 = vmatprep.subr.mxu0 0.0
    %1527 = vmatpush2.msra.mxu0 0.0
    %1528 = vmatprep.subr.mxu0 0.0
    %1529 = vmatpush2.msra.mxu0 0.0
    %1530 = vmatprep.subr.mxu0 0.0
    %1531 = vmatpush2.msra.mxu0 0.0
    %1532 = vmatprep.subr.mxu0 0.0
    %1533 = vmatpush2.msra.mxu0 0.0
    %1534 = vmatprep.subr.mxu0 0.0
    %1535 = vmatpush2.msra.mxu0 0.0
    %1536 = vmatprep.subr.mxu0 0.0
    %1537 = vmatpush2.msra.mxu0 0.0
    %1538 = vmatprep.subr.mxu0 0.0
    %1539 = vmatpush2.msra.mxu0 0.0
    %1540 = vmatprep.subr.mxu0 0.0
    %1541 = vmatpush2.msra.mxu0 0.0
    %1542 = vmatprep.subr.mxu0 0.0
    %1543 = vmatpush2.msra.mxu0 0.0
    %1544 = vmatprep.subr.mxu0 0.0
    %1545 = vmatpush2.msra.mxu0 0.0
    %1546 = vmatprep.mubr.f32.mxu0 0.0
    %1547 = vmatmul.mubr.f32.gmra.mxu0 %v1477
    %v1548 = vpop.f32.mrf.mxu0
    %v1549 = vadd.f32 0.0, %v1548
    %v1550 = vpop.f32.mrf.mxu0
    %1551 = vmatprep.mubr.f32.mxu0 0.0
    %1552 = vmatmul.mubr.f32.gmra.mxu0 %v1480
    %v1553 = vpop.f32.mrf.mxu0
    %v1554 = vadd.f32 0.0, %v1553
    %v1555 = vpop.f32.mrf.mxu0
    %1556 = vdwg.mxu0
    %v1557 = vadd.f32 %v1340, %v1549
    %v1558 = vadd.f32 %v1341, %v1554
    %v1559 = vmul.f32 %v1557, %v1557
    %v1560 = vmul.f32 %v1558, %v1558
    %v1561 = vsel %vm43, %v1559, 0.0
    %1562 = vadd.xlane.f32.xlu0 %v1561
    %v1563 = vpop.xlane.xlu0 %1562
    %v1564 = vsel %vm43, %v1560, 0.0
    %1565 = vadd.xlane.f32.xlu0 %v1564
    %v1566 = vpop.xlane.xlu0 %1565
    %v1567 = vmul.f32 %v1563, %v50
    %v1568 = vmul.f32 %v1566, %v50
    %v1569 = vadd.f32 %v1567, 1e-05
    %v1570 = vadd.f32 %v1568, 1e-05
    %v1571 = vrsqrt.pop %v1569
    %v1572 = vrsqrt.pop %v1570
    %v1573 = vmul.f32 %v1557, %v1571
    %v1574 = vmul.f32 %v1558, %v1572
    %s1575 = scalar_lea.vmem %s4, 64
    %v1576 = vld [vmem:[%s1575] sm:$0xff]
    %v1577 = vld [vmem:[%s1575 + $0x8] sm:$0xff]
    %v1578 = vld [vmem:[%s1575 + $0x10] sm:$0xff]
    %v1579 = vld [vmem:[%s1575 + $0x18] sm:$0xff]
    %v1580 = vld [vmem:[%s1575 + $0x20] sm:$0xff]
    %v1581 = vld [vmem:[%s1575 + $0x28] sm:$0xff]
    %v1582 = vld [vmem:[%s1575 + $0x30] sm:$0xff]
    %v1583 = vld [vmem:[%s1575 + $0x38] sm:$0xff]
    %v1585 = vsel %vm43, %v1573, 0
    %v1588 = vsel %vm43, %v1574, 0
    %1590 = vmatprep.subr.mxu0 0.0
    %1591 = vmatpush1.msra.mxu0 0.0
    %1592 = vmatprep.subr.mxu0 0.0
    %1593 = vmatpush1.msra.mxu0 0.0
    %1594 = vmatprep.subr.mxu0 0.0
    %1595 = vmatpush1.msra.mxu0 0.0
    %1596 = vmatprep.subr.mxu0 0.0
    %1597 = vmatpush1.msra.mxu0 0.0
    %1598 = vmatprep.subr.mxu0 0.0
    %1599 = vmatpush1.msra.mxu0 0.0
    %1600 = vmatprep.subr.mxu0 0.0
    %1601 = vmatpush1.msra.mxu0 0.0
    %1602 = vmatprep.subr.mxu0 0.0
    %1603 = vmatpush1.msra.mxu0 0.0
    %1604 = vmatprep.subr.mxu0 0.0
    %1605 = vmatpush1.msra.mxu0 0.0
    %1606 = vmatprep.subr.mxu0 0.0
    %1607 = vmatpush1.msra.mxu0 0.0
    %1608 = vmatprep.subr.mxu0 0.0
    %1609 = vmatpush1.msra.mxu0 0.0
    %1610 = vmatprep.subr.mxu0 0.0
    %1611 = vmatpush1.msra.mxu0 0.0
    %1612 = vmatprep.subr.mxu0 0.0
    %1613 = vmatpush1.msra.mxu0 0.0
    %1614 = vmatprep.subr.mxu0 %v1583
    %1615 = vmatpush1.msra.mxu0 %v1582
    %1616 = vmatprep.subr.mxu0 %v1581
    %1617 = vmatpush1.msra.mxu0 %v1580
    %1618 = vmatprep.subr.mxu0 %v1579
    %1619 = vmatpush1.msra.mxu0 %v1578
    %1620 = vmatprep.subr.mxu0 %v1577
    %1621 = vmatpush1.msra.mxu0 %v1576
    %1622 = vmatprep.subr.mxu0 0.0
    %1623 = vmatpush2.msra.mxu0 0.0
    %1624 = vmatprep.subr.mxu0 0.0
    %1625 = vmatpush2.msra.mxu0 0.0
    %1626 = vmatprep.subr.mxu0 0.0
    %1627 = vmatpush2.msra.mxu0 0.0
    %1628 = vmatprep.subr.mxu0 0.0
    %1629 = vmatpush2.msra.mxu0 0.0
    %1630 = vmatprep.subr.mxu0 0.0
    %1631 = vmatpush2.msra.mxu0 0.0
    %1632 = vmatprep.subr.mxu0 0.0
    %1633 = vmatpush2.msra.mxu0 0.0
    %1634 = vmatprep.subr.mxu0 0.0
    %1635 = vmatpush2.msra.mxu0 0.0
    %1636 = vmatprep.subr.mxu0 0.0
    %1637 = vmatpush2.msra.mxu0 0.0
    %1638 = vmatprep.subr.mxu0 0.0
    %1639 = vmatpush2.msra.mxu0 0.0
    %1640 = vmatprep.subr.mxu0 0.0
    %1641 = vmatpush2.msra.mxu0 0.0
    %1642 = vmatprep.subr.mxu0 0.0
    %1643 = vmatpush2.msra.mxu0 0.0
    %1644 = vmatprep.subr.mxu0 0.0
    %1645 = vmatpush2.msra.mxu0 0.0
    %1646 = vmatprep.subr.mxu0 0.0
    %1647 = vmatpush2.msra.mxu0 0.0
    %1648 = vmatprep.subr.mxu0 0.0
    %1649 = vmatpush2.msra.mxu0 0.0
    %1650 = vmatprep.subr.mxu0 0.0
    %1651 = vmatpush2.msra.mxu0 0.0
    %1652 = vmatprep.subr.mxu0 0.0
    %1653 = vmatpush2.msra.mxu0 0.0
    %1654 = vmatprep.mubr.f32.mxu0 0.0
    %1655 = vmatmul.mubr.f32.gmra.mxu0 %v1585
    %v1656 = vpop.f32.mrf.mxu0
    %v1657 = vadd.f32 0.0, %v1656
    %v1658 = vpop.f32.mrf.mxu0
    %v1659 = vadd.f32 0.0, %v1658
    %1660 = vmatprep.mubr.f32.mxu0 0.0
    %1661 = vmatmul.mubr.f32.gmra.mxu0 %v1588
    %v1662 = vpop.f32.mrf.mxu0
    %v1663 = vadd.f32 0.0, %v1662
    %v1664 = vpop.f32.mrf.mxu0
    %v1665 = vadd.f32 0.0, %v1664
    %1666 = vdwg.mxu0
    %v1667 = vmul.f32 %v1657, %v35
    %v1668 = vmul.f32 %v1663, %v36
    %v1669 = vmul.f32 %v1657, %v155
    %v1670 = vmul.f32 %v1663, %v157
    %1673 = vrot.lane.b32.xlu0 %v1669, 32
    %v1674 = vpop.permute.xlu0 %1673
    %1675 = vrot.lane.b32.xlu0 %v1670, 32
    %v1676 = vpop.permute.xlu0 %1675
    %v1679 = vadd.f32 %v1667, %v1674
    %v1680 = vadd.f32 %v1668, %v1676
    %v1681 = vmul.f32 %v1657, %v175
    %v1682 = vmul.f32 %v1663, %v177
    %v1683 = vmul.f32 %v1659, %v37
    %v1684 = vmul.f32 %v1665, %v38
    %1687 = vrot.lane.b32.xlu0 %v1683, 32
    %v1688 = vpop.permute.xlu0 %1687
    %1689 = vrot.lane.b32.xlu0 %v1684, 32
    %v1690 = vpop.permute.xlu0 %1689
    %v1693 = vadd.f32 %v1681, %v1688
    %v1694 = vadd.f32 %v1682, %v1690
    %1697 = vrot.lane.b32.xlu0 %v1693, 96
    %v1698 = vpop.permute.xlu0 %1697
    %1699 = vrot.lane.b32.xlu0 %v1694, 96
    %v1700 = vpop.permute.xlu0 %1699
    %v1702 = vsel %vm200, %v1679, 0
    %v1705 = vsel %vm200, %v1680, 0
    %v1707 = vsel %vm200, %v1698, 0
    %v1709 = vsel %vm200, %v1700, 0
    %1711 = vmatprep.subr.mxu0 0.0
    %1712 = vmatpush1.xpose.msra.mxu0 0.0
    %1713 = vmatprep.subr.mxu0 0.0
    %1714 = vmatpush1.xpose.msra.mxu0 0.0
    %1715 = vmatprep.subr.mxu0 0.0
    %1716 = vmatpush1.xpose.msra.mxu0 0.0
    %1717 = vmatprep.subr.mxu0 0.0
    %1718 = vmatpush1.xpose.msra.mxu0 0.0
    %1719 = vmatprep.subr.mxu0 0.0
    %1720 = vmatpush1.xpose.msra.mxu0 0.0
    %1721 = vmatprep.subr.mxu0 0.0
    %1722 = vmatpush1.xpose.msra.mxu0 0.0
    %1723 = vmatprep.subr.mxu0 0.0
    %1724 = vmatpush1.xpose.msra.mxu0 0.0
    %1725 = vmatprep.subr.mxu0 0.0
    %1726 = vmatpush1.xpose.msra.mxu0 0.0
    %1727 = vmatprep.subr.mxu0 0.0
    %1728 = vmatpush1.xpose.msra.mxu0 0.0
    %1729 = vmatprep.subr.mxu0 0.0
    %1730 = vmatpush1.xpose.msra.mxu0 0.0
    %1731 = vmatprep.subr.mxu0 0.0
    %1732 = vmatpush1.xpose.msra.mxu0 0.0
    %1733 = vmatprep.subr.mxu0 0.0
    %1734 = vmatpush1.xpose.msra.mxu0 0.0
    %1735 = vmatprep.subr.mxu0 0.0
    %1736 = vmatpush1.xpose.msra.mxu0 0.0
    %1737 = vmatprep.subr.mxu0 0.0
    %1738 = vmatpush1.xpose.msra.mxu0 0.0
    %1739 = vmatprep.subr.mxu0 0.0
    %1740 = vmatpush1.xpose.msra.mxu0 %v1709
    %1741 = vmatprep.subr.mxu0 0.0
    %1742 = vmatpush1.xpose.msra.mxu0 %v1707
    %1743 = vmatprep.subr.mxu0 0.0
    %1744 = vmatpush2.xpose.msra.mxu0 0.0
    %1745 = vmatprep.subr.mxu0 0.0
    %1746 = vmatpush2.xpose.msra.mxu0 0.0
    %1747 = vmatprep.subr.mxu0 0.0
    %1748 = vmatpush2.xpose.msra.mxu0 0.0
    %1749 = vmatprep.subr.mxu0 0.0
    %1750 = vmatpush2.xpose.msra.mxu0 0.0
    %1751 = vmatprep.subr.mxu0 0.0
    %1752 = vmatpush2.xpose.msra.mxu0 0.0
    %1753 = vmatprep.subr.mxu0 0.0
    %1754 = vmatpush2.xpose.msra.mxu0 0.0
    %1755 = vmatprep.subr.mxu0 0.0
    %1756 = vmatpush2.xpose.msra.mxu0 0.0
    %1757 = vmatprep.subr.mxu0 0.0
    %1758 = vmatpush2.xpose.msra.mxu0 0.0
    %1759 = vmatprep.subr.mxu0 0.0
    %1760 = vmatpush2.xpose.msra.mxu0 0.0
    %1761 = vmatprep.subr.mxu0 0.0
    %1762 = vmatpush2.xpose.msra.mxu0 0.0
    %1763 = vmatprep.subr.mxu0 0.0
    %1764 = vmatpush2.xpose.msra.mxu0 0.0
    %1765 = vmatprep.subr.mxu0 0.0
    %1766 = vmatpush2.xpose.msra.mxu0 0.0
    %1767 = vmatprep.subr.mxu0 0.0
    %1768 = vmatpush2.xpose.msra.mxu0 0.0
    %1769 = vmatprep.subr.mxu0 0.0
    %1770 = vmatpush2.xpose.msra.mxu0 0.0
    %1771 = vmatprep.subr.mxu0 0.0
    %1772 = vmatpush2.xpose.msra.mxu0 0.0
    %1773 = vmatprep.subr.mxu0 0.0
    %1774 = vmatpush2.xpose.msra.mxu0 0.0
    %1775 = vmatprep.mubr.f32.mxu0 0.0
    %1776 = vmatmul.mubr.f32.gmra.mxu0 %v1702
    %v1777 = vpop.f32.mrf.mxu0
    %v1778 = vadd.f32 0.0, %v1777
    %v1779 = vpop.f32.mrf.mxu0
    %1780 = vmatprep.mubr.f32.mxu0 0.0
    %1781 = vmatmul.mubr.f32.gmra.mxu0 %v1705
    %v1782 = vpop.f32.mrf.mxu0
    %v1783 = vadd.f32 0.0, %v1782
    %v1784 = vpop.f32.mrf.mxu0
    %1785 = vdwg.mxu0
    %1786 = vrot.lane.b32.xlu0 %v1679, 120
    %v1787 = vpop.permute.xlu0 %1786
    %1788 = vrot.lane.b32.xlu0 %v1680, 120
    %v1789 = vpop.permute.xlu0 %1788
    %1790 = vrot.lane.b32.xlu0 %v1693, 88
    %v1791 = vpop.permute.xlu0 %1790
    %1792 = vrot.lane.b32.xlu0 %v1694, 88
    %v1793 = vpop.permute.xlu0 %1792
    %v1794 = vsel %vm200, %v1787, 0
    %v1796 = vsel %vm200, %v1789, 0
    %v1798 = vsel %vm200, %v1791, 0
    %v1800 = vsel %vm200, %v1793, 0
    %1802 = vmatprep.subr.mxu0 0.0
    %1803 = vmatpush1.xpose.msra.mxu0 0.0
    %1804 = vmatprep.subr.mxu0 0.0
    %1805 = vmatpush1.xpose.msra.mxu0 0.0
    %1806 = vmatprep.subr.mxu0 0.0
    %1807 = vmatpush1.xpose.msra.mxu0 0.0
    %1808 = vmatprep.subr.mxu0 0.0
    %1809 = vmatpush1.xpose.msra.mxu0 0.0
    %1810 = vmatprep.subr.mxu0 0.0
    %1811 = vmatpush1.xpose.msra.mxu0 0.0
    %1812 = vmatprep.subr.mxu0 0.0
    %1813 = vmatpush1.xpose.msra.mxu0 0.0
    %1814 = vmatprep.subr.mxu0 0.0
    %1815 = vmatpush1.xpose.msra.mxu0 0.0
    %1816 = vmatprep.subr.mxu0 0.0
    %1817 = vmatpush1.xpose.msra.mxu0 0.0
    %1818 = vmatprep.subr.mxu0 0.0
    %1819 = vmatpush1.xpose.msra.mxu0 0.0
    %1820 = vmatprep.subr.mxu0 0.0
    %1821 = vmatpush1.xpose.msra.mxu0 0.0
    %1822 = vmatprep.subr.mxu0 0.0
    %1823 = vmatpush1.xpose.msra.mxu0 0.0
    %1824 = vmatprep.subr.mxu0 0.0
    %1825 = vmatpush1.xpose.msra.mxu0 0.0
    %1826 = vmatprep.subr.mxu0 0.0
    %1827 = vmatpush1.xpose.msra.mxu0 0.0
    %1828 = vmatprep.subr.mxu0 0.0
    %1829 = vmatpush1.xpose.msra.mxu0 0.0
    %1830 = vmatprep.subr.mxu0 0.0
    %1831 = vmatpush1.xpose.msra.mxu0 %v1800
    %1832 = vmatprep.subr.mxu0 0.0
    %1833 = vmatpush1.xpose.msra.mxu0 %v1798
    %1834 = vmatprep.subr.mxu0 0.0
    %1835 = vmatpush2.xpose.msra.mxu0 0.0
    %1836 = vmatprep.subr.mxu0 0.0
    %1837 = vmatpush2.xpose.msra.mxu0 0.0
    %1838 = vmatprep.subr.mxu0 0.0
    %1839 = vmatpush2.xpose.msra.mxu0 0.0
    %1840 = vmatprep.subr.mxu0 0.0
    %1841 = vmatpush2.xpose.msra.mxu0 0.0
    %1842 = vmatprep.subr.mxu0 0.0
    %1843 = vmatpush2.xpose.msra.mxu0 0.0
    %1844 = vmatprep.subr.mxu0 0.0
    %1845 = vmatpush2.xpose.msra.mxu0 0.0
    %1846 = vmatprep.subr.mxu0 0.0
    %1847 = vmatpush2.xpose.msra.mxu0 0.0
    %1848 = vmatprep.subr.mxu0 0.0
    %1849 = vmatpush2.xpose.msra.mxu0 0.0
    %1850 = vmatprep.subr.mxu0 0.0
    %1851 = vmatpush2.xpose.msra.mxu0 0.0
    %1852 = vmatprep.subr.mxu0 0.0
    %1853 = vmatpush2.xpose.msra.mxu0 0.0
    %1854 = vmatprep.subr.mxu0 0.0
    %1855 = vmatpush2.xpose.msra.mxu0 0.0
    %1856 = vmatprep.subr.mxu0 0.0
    %1857 = vmatpush2.xpose.msra.mxu0 0.0
    %1858 = vmatprep.subr.mxu0 0.0
    %1859 = vmatpush2.xpose.msra.mxu0 0.0
    %1860 = vmatprep.subr.mxu0 0.0
    %1861 = vmatpush2.xpose.msra.mxu0 0.0
    %1862 = vmatprep.subr.mxu0 0.0
    %1863 = vmatpush2.xpose.msra.mxu0 0.0
    %1864 = vmatprep.subr.mxu0 0.0
    %1865 = vmatpush2.xpose.msra.mxu0 0.0
    %1866 = vmatprep.mubr.f32.mxu0 0.0
    %1867 = vmatmul.mubr.f32.gmra.mxu0 %v1794
    %v1868 = vpop.f32.mrf.mxu0
    %v1869 = vadd.f32 0.0, %v1868
    %v1870 = vpop.f32.mrf.mxu0
    %1871 = vmatprep.mubr.f32.mxu0 0.0
    %1872 = vmatmul.mubr.f32.gmra.mxu0 %v1796
    %v1873 = vpop.f32.mrf.mxu0
    %v1874 = vadd.f32 0.0, %v1873
    %v1875 = vpop.f32.mrf.mxu0
    %1876 = vdwg.mxu0
    %1877 = vrot.lane.b32.xlu0 %v1679, 112
    %v1878 = vpop.permute.xlu0 %1877
    %1879 = vrot.lane.b32.xlu0 %v1680, 112
    %v1880 = vpop.permute.xlu0 %1879
    %1881 = vrot.lane.b32.xlu0 %v1693, 80
    %v1882 = vpop.permute.xlu0 %1881
    %1883 = vrot.lane.b32.xlu0 %v1694, 80
    %v1884 = vpop.permute.xlu0 %1883
    %v1885 = vsel %vm200, %v1878, 0
    %v1887 = vsel %vm200, %v1880, 0
    %v1889 = vsel %vm200, %v1882, 0
    %v1891 = vsel %vm200, %v1884, 0
    %1893 = vmatprep.subr.mxu0 0.0
    %1894 = vmatpush1.xpose.msra.mxu0 0.0
    %1895 = vmatprep.subr.mxu0 0.0
    %1896 = vmatpush1.xpose.msra.mxu0 0.0
    %1897 = vmatprep.subr.mxu0 0.0
    %1898 = vmatpush1.xpose.msra.mxu0 0.0
    %1899 = vmatprep.subr.mxu0 0.0
    %1900 = vmatpush1.xpose.msra.mxu0 0.0
    %1901 = vmatprep.subr.mxu0 0.0
    %1902 = vmatpush1.xpose.msra.mxu0 0.0
    %1903 = vmatprep.subr.mxu0 0.0
    %1904 = vmatpush1.xpose.msra.mxu0 0.0
    %1905 = vmatprep.subr.mxu0 0.0
    %1906 = vmatpush1.xpose.msra.mxu0 0.0
    %1907 = vmatprep.subr.mxu0 0.0
    %1908 = vmatpush1.xpose.msra.mxu0 0.0
    %1909 = vmatprep.subr.mxu0 0.0
    %1910 = vmatpush1.xpose.msra.mxu0 0.0
    %1911 = vmatprep.subr.mxu0 0.0
    %1912 = vmatpush1.xpose.msra.mxu0 0.0
    %1913 = vmatprep.subr.mxu0 0.0
    %1914 = vmatpush1.xpose.msra.mxu0 0.0
    %1915 = vmatprep.subr.mxu0 0.0
    %1916 = vmatpush1.xpose.msra.mxu0 0.0
    %1917 = vmatprep.subr.mxu0 0.0
    %1918 = vmatpush1.xpose.msra.mxu0 0.0
    %1919 = vmatprep.subr.mxu0 0.0
    %1920 = vmatpush1.xpose.msra.mxu0 0.0
    %1921 = vmatprep.subr.mxu0 0.0
    %1922 = vmatpush1.xpose.msra.mxu0 %v1891
    %1923 = vmatprep.subr.mxu0 0.0
    %1924 = vmatpush1.xpose.msra.mxu0 %v1889
    %1925 = vmatprep.subr.mxu0 0.0
    %1926 = vmatpush2.xpose.msra.mxu0 0.0
    %1927 = vmatprep.subr.mxu0 0.0
    %1928 = vmatpush2.xpose.msra.mxu0 0.0
    %1929 = vmatprep.subr.mxu0 0.0
    %1930 = vmatpush2.xpose.msra.mxu0 0.0
    %1931 = vmatprep.subr.mxu0 0.0
    %1932 = vmatpush2.xpose.msra.mxu0 0.0
    %1933 = vmatprep.subr.mxu0 0.0
    %1934 = vmatpush2.xpose.msra.mxu0 0.0
    %1935 = vmatprep.subr.mxu0 0.0
    %1936 = vmatpush2.xpose.msra.mxu0 0.0
    %1937 = vmatprep.subr.mxu0 0.0
    %1938 = vmatpush2.xpose.msra.mxu0 0.0
    %1939 = vmatprep.subr.mxu0 0.0
    %1940 = vmatpush2.xpose.msra.mxu0 0.0
    %1941 = vmatprep.subr.mxu0 0.0
    %1942 = vmatpush2.xpose.msra.mxu0 0.0
    %1943 = vmatprep.subr.mxu0 0.0
    %1944 = vmatpush2.xpose.msra.mxu0 0.0
    %1945 = vmatprep.subr.mxu0 0.0
    %1946 = vmatpush2.xpose.msra.mxu0 0.0
    %1947 = vmatprep.subr.mxu0 0.0
    %1948 = vmatpush2.xpose.msra.mxu0 0.0
    %1949 = vmatprep.subr.mxu0 0.0
    %1950 = vmatpush2.xpose.msra.mxu0 0.0
    %1951 = vmatprep.subr.mxu0 0.0
    %1952 = vmatpush2.xpose.msra.mxu0 0.0
    %1953 = vmatprep.subr.mxu0 0.0
    %1954 = vmatpush2.xpose.msra.mxu0 0.0
    %1955 = vmatprep.subr.mxu0 0.0
    %1956 = vmatpush2.xpose.msra.mxu0 0.0
    %1957 = vmatprep.mubr.f32.mxu0 0.0
    %1958 = vmatmul.mubr.f32.gmra.mxu0 %v1885
    %v1959 = vpop.f32.mrf.mxu0
    %v1960 = vadd.f32 0.0, %v1959
    %v1961 = vpop.f32.mrf.mxu0
    %1962 = vmatprep.mubr.f32.mxu0 0.0
    %1963 = vmatmul.mubr.f32.gmra.mxu0 %v1887
    %v1964 = vpop.f32.mrf.mxu0
    %v1965 = vadd.f32 0.0, %v1964
    %v1966 = vpop.f32.mrf.mxu0
    %1967 = vdwg.mxu0
    %1968 = vrot.lane.b32.xlu0 %v1679, 104
    %v1969 = vpop.permute.xlu0 %1968
    %1970 = vrot.lane.b32.xlu0 %v1680, 104
    %v1971 = vpop.permute.xlu0 %1970
    %1972 = vrot.lane.b32.xlu0 %v1693, 72
    %v1973 = vpop.permute.xlu0 %1972
    %1974 = vrot.lane.b32.xlu0 %v1694, 72
    %v1975 = vpop.permute.xlu0 %1974
    %v1976 = vsel %vm200, %v1969, 0
    %v1978 = vsel %vm200, %v1971, 0
    %v1980 = vsel %vm200, %v1973, 0
    %v1982 = vsel %vm200, %v1975, 0
    %1984 = vmatprep.subr.mxu0 0.0
    %1985 = vmatpush1.xpose.msra.mxu0 0.0
    %1986 = vmatprep.subr.mxu0 0.0
    %1987 = vmatpush1.xpose.msra.mxu0 0.0
    %1988 = vmatprep.subr.mxu0 0.0
    %1989 = vmatpush1.xpose.msra.mxu0 0.0
    %1990 = vmatprep.subr.mxu0 0.0
    %1991 = vmatpush1.xpose.msra.mxu0 0.0
    %1992 = vmatprep.subr.mxu0 0.0
    %1993 = vmatpush1.xpose.msra.mxu0 0.0
    %1994 = vmatprep.subr.mxu0 0.0
    %1995 = vmatpush1.xpose.msra.mxu0 0.0
    %1996 = vmatprep.subr.mxu0 0.0
    %1997 = vmatpush1.xpose.msra.mxu0 0.0
    %1998 = vmatprep.subr.mxu0 0.0
    %1999 = vmatpush1.xpose.msra.mxu0 0.0
    %2000 = vmatprep.subr.mxu0 0.0
    %2001 = vmatpush1.xpose.msra.mxu0 0.0
    %2002 = vmatprep.subr.mxu0 0.0
    %2003 = vmatpush1.xpose.msra.mxu0 0.0
    %2004 = vmatprep.subr.mxu0 0.0
    %2005 = vmatpush1.xpose.msra.mxu0 0.0
    %2006 = vmatprep.subr.mxu0 0.0
    %2007 = vmatpush1.xpose.msra.mxu0 0.0
    %2008 = vmatprep.subr.mxu0 0.0
    %2009 = vmatpush1.xpose.msra.mxu0 0.0
    %2010 = vmatprep.subr.mxu0 0.0
    %2011 = vmatpush1.xpose.msra.mxu0 0.0
    %2012 = vmatprep.subr.mxu0 0.0
    %2013 = vmatpush1.xpose.msra.mxu0 %v1982
    %2014 = vmatprep.subr.mxu0 0.0
    %2015 = vmatpush1.xpose.msra.mxu0 %v1980
    %2016 = vmatprep.subr.mxu0 0.0
    %2017 = vmatpush2.xpose.msra.mxu0 0.0
    %2018 = vmatprep.subr.mxu0 0.0
    %2019 = vmatpush2.xpose.msra.mxu0 0.0
    %2020 = vmatprep.subr.mxu0 0.0
    %2021 = vmatpush2.xpose.msra.mxu0 0.0
    %2022 = vmatprep.subr.mxu0 0.0
    %2023 = vmatpush2.xpose.msra.mxu0 0.0
    %2024 = vmatprep.subr.mxu0 0.0
    %2025 = vmatpush2.xpose.msra.mxu0 0.0
    %2026 = vmatprep.subr.mxu0 0.0
    %2027 = vmatpush2.xpose.msra.mxu0 0.0
    %2028 = vmatprep.subr.mxu0 0.0
    %2029 = vmatpush2.xpose.msra.mxu0 0.0
    %2030 = vmatprep.subr.mxu0 0.0
    %2031 = vmatpush2.xpose.msra.mxu0 0.0
    %2032 = vmatprep.subr.mxu0 0.0
    %2033 = vmatpush2.xpose.msra.mxu0 0.0
    %2034 = vmatprep.subr.mxu0 0.0
    %2035 = vmatpush2.xpose.msra.mxu0 0.0
    %2036 = vmatprep.subr.mxu0 0.0
    %2037 = vmatpush2.xpose.msra.mxu0 0.0
    %2038 = vmatprep.subr.mxu0 0.0
    %2039 = vmatpush2.xpose.msra.mxu0 0.0
    %2040 = vmatprep.subr.mxu0 0.0
    %2041 = vmatpush2.xpose.msra.mxu0 0.0
    %2042 = vmatprep.subr.mxu0 0.0
    %2043 = vmatpush2.xpose.msra.mxu0 0.0
    %2044 = vmatprep.subr.mxu0 0.0
    %2045 = vmatpush2.xpose.msra.mxu0 0.0
    %2046 = vmatprep.subr.mxu0 0.0
    %2047 = vmatpush2.xpose.msra.mxu0 0.0
    %2048 = vmatprep.mubr.f32.mxu0 0.0
    %2049 = vmatmul.mubr.f32.gmra.mxu0 %v1976
    %v2050 = vpop.f32.mrf.mxu0
    %v2051 = vadd.f32 0.0, %v2050
    %v2052 = vpop.f32.mrf.mxu0
    %2053 = vmatprep.mubr.f32.mxu0 0.0
    %2054 = vmatmul.mubr.f32.gmra.mxu0 %v1978
    %v2055 = vpop.f32.mrf.mxu0
    %v2056 = vadd.f32 0.0, %v2055
    %v2057 = vpop.f32.mrf.mxu0
    %2058 = vdwg.mxu0
    %v2059 = vadd.f32 %v1778, %v39
    %v2060 = vadd.f32 %v1783, %v40
    %v2061 = vadd.f32 %v1869, %v39
    %v2062 = vadd.f32 %v1874, %v40
    %v2063 = vadd.f32 %v1960, %v39
    %v2064 = vadd.f32 %v1965, %v40
    %v2065 = vadd.f32 %v2051, %v39
    %v2066 = vadd.f32 %v2056, %v40
    %v2067 = vsel %vm567, %v2059, -inf
    %2068 = vmax.xlane.f32.xlu0 %v2067
    %v2069 = vpop.xlane.xlu0 %2068
    %v2070 = vsel %vm567, %v2060, -inf
    %2071 = vmax.xlane.f32.xlu0 %v2070
    %v2072 = vpop.xlane.xlu0 %2071
    %v2073 = vsel %vm567, %v2061, -inf
    %2074 = vmax.xlane.f32.xlu0 %v2073
    %v2075 = vpop.xlane.xlu0 %2074
    %v2076 = vsel %vm567, %v2062, -inf
    %2077 = vmax.xlane.f32.xlu0 %v2076
    %v2078 = vpop.xlane.xlu0 %2077
    %v2079 = vsel %vm567, %v2063, -inf
    %2080 = vmax.xlane.f32.xlu0 %v2079
    %v2081 = vpop.xlane.xlu0 %2080
    %v2082 = vsel %vm567, %v2064, -inf
    %2083 = vmax.xlane.f32.xlu0 %v2082
    %v2084 = vpop.xlane.xlu0 %2083
    %v2085 = vsel %vm567, %v2065, -inf
    %2086 = vmax.xlane.f32.xlu0 %v2085
    %v2087 = vpop.xlane.xlu0 %2086
    %v2088 = vsel %vm567, %v2066, -inf
    %2089 = vmax.xlane.f32.xlu0 %v2088
    %v2090 = vpop.xlane.xlu0 %2089
    %v2091 = vsub.f32 %v2059, %v2069
    %v2092 = vsub.f32 %v2060, %v2072
    %v2093 = vsub.f32 %v2061, %v2075
    %v2094 = vsub.f32 %v2062, %v2078
    %v2095 = vsub.f32 %v2063, %v2081
    %v2096 = vsub.f32 %v2064, %v2084
    %v2097 = vsub.f32 %v2065, %v2087
    %v2098 = vsub.f32 %v2066, %v2090
    %v2099 = vmul.f32 %v2091, 1.442695
    %v2100 = vpow.pop %v2099
    %v2101 = vmul.f32 %v2092, 1.442695
    %v2102 = vpow.pop %v2101
    %v2103 = vmul.f32 %v2093, 1.442695
    %v2104 = vpow.pop %v2103
    %v2105 = vmul.f32 %v2094, 1.442695
    %v2106 = vpow.pop %v2105
    %v2107 = vmul.f32 %v2095, 1.442695
    %v2108 = vpow.pop %v2107
    %v2109 = vmul.f32 %v2096, 1.442695
    %v2110 = vpow.pop %v2109
    %v2111 = vmul.f32 %v2097, 1.442695
    %v2112 = vpow.pop %v2111
    %v2113 = vmul.f32 %v2098, 1.442695
    %v2114 = vpow.pop %v2113
    %v2115 = vsel %vm567, %v2100, 0.0
    %2116 = vadd.xlane.f32.xlu0 %v2115
    %v2117 = vpop.xlane.xlu0 %2116
    %v2118 = vsel %vm567, %v2102, 0.0
    %2119 = vadd.xlane.f32.xlu0 %v2118
    %v2120 = vpop.xlane.xlu0 %2119
    %v2121 = vsel %vm567, %v2104, 0.0
    %2122 = vadd.xlane.f32.xlu0 %v2121
    %v2123 = vpop.xlane.xlu0 %2122
    %v2124 = vsel %vm567, %v2106, 0.0
    %2125 = vadd.xlane.f32.xlu0 %v2124
    %v2126 = vpop.xlane.xlu0 %2125
    %v2127 = vsel %vm567, %v2108, 0.0
    %2128 = vadd.xlane.f32.xlu0 %v2127
    %v2129 = vpop.xlane.xlu0 %2128
    %v2130 = vsel %vm567, %v2110, 0.0
    %2131 = vadd.xlane.f32.xlu0 %v2130
    %v2132 = vpop.xlane.xlu0 %2131
    %v2133 = vsel %vm567, %v2112, 0.0
    %2134 = vadd.xlane.f32.xlu0 %v2133
    %v2135 = vpop.xlane.xlu0 %2134
    %v2136 = vsel %vm567, %v2114, 0.0
    %2137 = vadd.xlane.f32.xlu0 %v2136
    %v2138 = vpop.xlane.xlu0 %2137
    %v2139 = vrcp.pop %v2117
    %v2140 = vmul.f32 %v2100, %v2139
    %v2141 = vrcp.pop %v2120
    %v2142 = vmul.f32 %v2102, %v2141
    %v2143 = vrcp.pop %v2123
    %v2144 = vmul.f32 %v2104, %v2143
    %v2145 = vrcp.pop %v2126
    %v2146 = vmul.f32 %v2106, %v2145
    %v2147 = vrcp.pop %v2129
    %v2148 = vmul.f32 %v2108, %v2147
    %v2149 = vrcp.pop %v2132
    %v2150 = vmul.f32 %v2110, %v2149
    %v2151 = vrcp.pop %v2135
    %v2152 = vmul.f32 %v2112, %v2151
    %v2153 = vrcp.pop %v2138
    %v2154 = vmul.f32 %v2114, %v2153
    %s2155 = scalar_lea.vmem %s5, 32
    %v2156 = vld [vmem:[%s2155] sm:$0xff]
    %v2157 = vld [vmem:[%s2155 + $0x8] sm:$0xff]
    %v2158 = vld [vmem:[%s2155 + $0x10] sm:$0xff]
    %v2159 = vld [vmem:[%s2155 + $0x18] sm:$0xff]
    %2162 = vrot.lane.b32.xlu0 %v1657, 64
    %v2163 = vpop.permute.xlu0 %2162
    %2164 = vrot.lane.b32.xlu0 %v1663, 64
    %v2165 = vpop.permute.xlu0 %2164
    %v2169 = vsel %vm567, %v2140, 0
    %v2172 = vsel %vm567, %v2142, 0
    %2174 = vmatprep.subr.mxu0 0.0
    %2175 = vmatpush1.msra.mxu0 0.0
    %2176 = vmatprep.subr.mxu0 0.0
    %2177 = vmatpush1.msra.mxu0 0.0
    %2178 = vmatprep.subr.mxu0 0.0
    %2179 = vmatpush1.msra.mxu0 0.0
    %2180 = vmatprep.subr.mxu0 0.0
    %2181 = vmatpush1.msra.mxu0 0.0
    %2182 = vmatprep.subr.mxu0 0.0
    %2183 = vmatpush1.msra.mxu0 0.0
    %2184 = vmatprep.subr.mxu0 0.0
    %2185 = vmatpush1.msra.mxu0 0.0
    %2186 = vmatprep.subr.mxu0 0.0
    %2187 = vmatpush1.msra.mxu0 0.0
    %2188 = vmatprep.subr.mxu0 0.0
    %2189 = vmatpush1.msra.mxu0 0.0
    %2190 = vmatprep.subr.mxu0 0.0
    %2191 = vmatpush1.msra.mxu0 0.0
    %2192 = vmatprep.subr.mxu0 0.0
    %2193 = vmatpush1.msra.mxu0 0.0
    %2194 = vmatprep.subr.mxu0 0.0
    %2195 = vmatpush1.msra.mxu0 0.0
    %2196 = vmatprep.subr.mxu0 0.0
    %2197 = vmatpush1.msra.mxu0 0.0
    %2198 = vmatprep.subr.mxu0 0.0
    %2199 = vmatpush1.msra.mxu0 0.0
    %2200 = vmatprep.subr.mxu0 0.0
    %2201 = vmatpush1.msra.mxu0 0.0
    %2202 = vmatprep.subr.mxu0 0.0
    %2203 = vmatpush1.msra.mxu0 %v2165
    %2204 = vmatprep.subr.mxu0 0.0
    %2205 = vmatpush1.msra.mxu0 %v2163
    %2206 = vmatprep.subr.mxu0 0.0
    %2207 = vmatpush2.msra.mxu0 0.0
    %2208 = vmatprep.subr.mxu0 0.0
    %2209 = vmatpush2.msra.mxu0 0.0
    %2210 = vmatprep.subr.mxu0 0.0
    %2211 = vmatpush2.msra.mxu0 0.0
    %2212 = vmatprep.subr.mxu0 0.0
    %2213 = vmatpush2.msra.mxu0 0.0
    %2214 = vmatprep.subr.mxu0 0.0
    %2215 = vmatpush2.msra.mxu0 0.0
    %2216 = vmatprep.subr.mxu0 0.0
    %2217 = vmatpush2.msra.mxu0 0.0
    %2218 = vmatprep.subr.mxu0 0.0
    %2219 = vmatpush2.msra.mxu0 0.0
    %2220 = vmatprep.subr.mxu0 0.0
    %2221 = vmatpush2.msra.mxu0 0.0
    %2222 = vmatprep.subr.mxu0 0.0
    %2223 = vmatpush2.msra.mxu0 0.0
    %2224 = vmatprep.subr.mxu0 0.0
    %2225 = vmatpush2.msra.mxu0 0.0
    %2226 = vmatprep.subr.mxu0 0.0
    %2227 = vmatpush2.msra.mxu0 0.0
    %2228 = vmatprep.subr.mxu0 0.0
    %2229 = vmatpush2.msra.mxu0 0.0
    %2230 = vmatprep.subr.mxu0 0.0
    %2231 = vmatpush2.msra.mxu0 0.0
    %2232 = vmatprep.subr.mxu0 0.0
    %2233 = vmatpush2.msra.mxu0 0.0
    %2234 = vmatprep.subr.mxu0 0.0
    %2235 = vmatpush2.msra.mxu0 0.0
    %2236 = vmatprep.subr.mxu0 0.0
    %2237 = vmatpush2.msra.mxu0 0.0
    %2238 = vmatprep.mubr.f32.mxu0 0.0
    %2239 = vmatmul.mubr.f32.gmra.mxu0 %v2169
    %v2240 = vpop.f32.mrf.mxu0
    %v2241 = vadd.f32 0.0, %v2240
    %v2242 = vpop.f32.mrf.mxu0
    %2243 = vmatprep.mubr.f32.mxu0 0.0
    %2244 = vmatmul.mubr.f32.gmra.mxu0 %v2172
    %v2245 = vpop.f32.mrf.mxu0
    %v2246 = vadd.f32 0.0, %v2245
    %v2247 = vpop.f32.mrf.mxu0
    %2248 = vdwg.mxu0
    %v2250 = vsel %vm200, %v2241, 0
    %v2253 = vsel %vm200, %v2246, 0
    %2255 = vmatprep.subr.mxu0 0.0
    %2256 = vmatpush1.msra.mxu0 0.0
    %2257 = vmatprep.subr.mxu0 0.0
    %2258 = vmatpush1.msra.mxu0 0.0
    %2259 = vmatprep.subr.mxu0 0.0
    %2260 = vmatpush1.msra.mxu0 0.0
    %2261 = vmatprep.subr.mxu0 0.0
    %2262 = vmatpush1.msra.mxu0 0.0
    %2263 = vmatprep.subr.mxu0 0.0
    %2264 = vmatpush1.msra.mxu0 0.0
    %2265 = vmatprep.subr.mxu0 0.0
    %2266 = vmatpush1.msra.mxu0 0.0
    %2267 = vmatprep.subr.mxu0 0.0
    %2268 = vmatpush1.msra.mxu0 0.0
    %2269 = vmatprep.subr.mxu0 0.0
    %2270 = vmatpush1.msra.mxu0 0.0
    %2271 = vmatprep.subr.mxu0 0.0
    %2272 = vmatpush1.msra.mxu0 0.0
    %2273 = vmatprep.subr.mxu0 0.0
    %2274 = vmatpush1.msra.mxu0 0.0
    %2275 = vmatprep.subr.mxu0 0.0
    %2276 = vmatpush1.msra.mxu0 0.0
    %2277 = vmatprep.subr.mxu0 0.0
    %2278 = vmatpush1.msra.mxu0 0.0
    %2279 = vmatprep.subr.mxu0 0.0
    %2280 = vmatpush1.msra.mxu0 0.0
    %2281 = vmatprep.subr.mxu0 0.0
    %2282 = vmatpush1.msra.mxu0 0.0
    %2283 = vmatprep.subr.mxu0 0.0
    %2284 = vmatpush1.msra.mxu0 0.0
    %2285 = vmatprep.subr.mxu0 0.0
    %2286 = vmatpush1.msra.mxu0 %v2156
    %2287 = vmatprep.subr.mxu0 0.0
    %2288 = vmatpush2.msra.mxu0 0.0
    %2289 = vmatprep.subr.mxu0 0.0
    %2290 = vmatpush2.msra.mxu0 0.0
    %2291 = vmatprep.subr.mxu0 0.0
    %2292 = vmatpush2.msra.mxu0 0.0
    %2293 = vmatprep.subr.mxu0 0.0
    %2294 = vmatpush2.msra.mxu0 0.0
    %2295 = vmatprep.subr.mxu0 0.0
    %2296 = vmatpush2.msra.mxu0 0.0
    %2297 = vmatprep.subr.mxu0 0.0
    %2298 = vmatpush2.msra.mxu0 0.0
    %2299 = vmatprep.subr.mxu0 0.0
    %2300 = vmatpush2.msra.mxu0 0.0
    %2301 = vmatprep.subr.mxu0 0.0
    %2302 = vmatpush2.msra.mxu0 0.0
    %2303 = vmatprep.subr.mxu0 0.0
    %2304 = vmatpush2.msra.mxu0 0.0
    %2305 = vmatprep.subr.mxu0 0.0
    %2306 = vmatpush2.msra.mxu0 0.0
    %2307 = vmatprep.subr.mxu0 0.0
    %2308 = vmatpush2.msra.mxu0 0.0
    %2309 = vmatprep.subr.mxu0 0.0
    %2310 = vmatpush2.msra.mxu0 0.0
    %2311 = vmatprep.subr.mxu0 0.0
    %2312 = vmatpush2.msra.mxu0 0.0
    %2313 = vmatprep.subr.mxu0 0.0
    %2314 = vmatpush2.msra.mxu0 0.0
    %2315 = vmatprep.subr.mxu0 0.0
    %2316 = vmatpush2.msra.mxu0 0.0
    %2317 = vmatprep.subr.mxu0 0.0
    %2318 = vmatpush2.msra.mxu0 0.0
    %2319 = vmatprep.mubr.f32.mxu0 0.0
    %2320 = vmatmul.mubr.f32.gmra.mxu0 %v2250
    %v2321 = vpop.f32.mrf.mxu0
    %v2322 = vadd.f32 0.0, %v2321
    %v2323 = vpop.f32.mrf.mxu0
    %2324 = vmatprep.mubr.f32.mxu0 0.0
    %2325 = vmatmul.mubr.f32.gmra.mxu0 %v2253
    %v2326 = vpop.f32.mrf.mxu0
    %v2327 = vadd.f32 0.0, %v2326
    %v2328 = vpop.f32.mrf.mxu0
    %2329 = vdwg.mxu0
    %v2330 = vadd.f32 %v1557, %v2322
    %v2331 = vadd.f32 %v1558, %v2327
    %2332 = vrot.lane.b32.xlu0 %v1657, 56
    %v2333 = vpop.permute.xlu0 %2332
    %2334 = vrot.lane.b32.xlu0 %v1663, 56
    %v2335 = vpop.permute.xlu0 %2334
    %v2339 = vsel %vm567, %v2144, 0
    %v2342 = vsel %vm567, %v2146, 0
    %2344 = vmatprep.subr.mxu0 0.0
    %2345 = vmatpush1.msra.mxu0 0.0
    %2346 = vmatprep.subr.mxu0 0.0
    %2347 = vmatpush1.msra.mxu0 0.0
    %2348 = vmatprep.subr.mxu0 0.0
    %2349 = vmatpush1.msra.mxu0 0.0
    %2350 = vmatprep.subr.mxu0 0.0
    %2351 = vmatpush1.msra.mxu0 0.0
    %2352 = vmatprep.subr.mxu0 0.0
    %2353 = vmatpush1.msra.mxu0 0.0
    %2354 = vmatprep.subr.mxu0 0.0
    %2355 = vmatpush1.msra.mxu0 0.0
    %2356 = vmatprep.subr.mxu0 0.0
    %2357 = vmatpush1.msra.mxu0 0.0
    %2358 = vmatprep.subr.mxu0 0.0
    %2359 = vmatpush1.msra.mxu0 0.0
    %2360 = vmatprep.subr.mxu0 0.0
    %2361 = vmatpush1.msra.mxu0 0.0
    %2362 = vmatprep.subr.mxu0 0.0
    %2363 = vmatpush1.msra.mxu0 0.0
    %2364 = vmatprep.subr.mxu0 0.0
    %2365 = vmatpush1.msra.mxu0 0.0
    %2366 = vmatprep.subr.mxu0 0.0
    %2367 = vmatpush1.msra.mxu0 0.0
    %2368 = vmatprep.subr.mxu0 0.0
    %2369 = vmatpush1.msra.mxu0 0.0
    %2370 = vmatprep.subr.mxu0 0.0
    %2371 = vmatpush1.msra.mxu0 0.0
    %2372 = vmatprep.subr.mxu0 0.0
    %2373 = vmatpush1.msra.mxu0 %v2335
    %2374 = vmatprep.subr.mxu0 0.0
    %2375 = vmatpush1.msra.mxu0 %v2333
    %2376 = vmatprep.subr.mxu0 0.0
    %2377 = vmatpush2.msra.mxu0 0.0
    %2378 = vmatprep.subr.mxu0 0.0
    %2379 = vmatpush2.msra.mxu0 0.0
    %2380 = vmatprep.subr.mxu0 0.0
    %2381 = vmatpush2.msra.mxu0 0.0
    %2382 = vmatprep.subr.mxu0 0.0
    %2383 = vmatpush2.msra.mxu0 0.0
    %2384 = vmatprep.subr.mxu0 0.0
    %2385 = vmatpush2.msra.mxu0 0.0
    %2386 = vmatprep.subr.mxu0 0.0
    %2387 = vmatpush2.msra.mxu0 0.0
    %2388 = vmatprep.subr.mxu0 0.0
    %2389 = vmatpush2.msra.mxu0 0.0
    %2390 = vmatprep.subr.mxu0 0.0
    %2391 = vmatpush2.msra.mxu0 0.0
    %2392 = vmatprep.subr.mxu0 0.0
    %2393 = vmatpush2.msra.mxu0 0.0
    %2394 = vmatprep.subr.mxu0 0.0
    %2395 = vmatpush2.msra.mxu0 0.0
    %2396 = vmatprep.subr.mxu0 0.0
    %2397 = vmatpush2.msra.mxu0 0.0
    %2398 = vmatprep.subr.mxu0 0.0
    %2399 = vmatpush2.msra.mxu0 0.0
    %2400 = vmatprep.subr.mxu0 0.0
    %2401 = vmatpush2.msra.mxu0 0.0
    %2402 = vmatprep.subr.mxu0 0.0
    %2403 = vmatpush2.msra.mxu0 0.0
    %2404 = vmatprep.subr.mxu0 0.0
    %2405 = vmatpush2.msra.mxu0 0.0
    %2406 = vmatprep.subr.mxu0 0.0
    %2407 = vmatpush2.msra.mxu0 0.0
    %2408 = vmatprep.mubr.f32.mxu0 0.0
    %2409 = vmatmul.mubr.f32.gmra.mxu0 %v2339
    %v2410 = vpop.f32.mrf.mxu0
    %v2411 = vadd.f32 0.0, %v2410
    %v2412 = vpop.f32.mrf.mxu0
    %2413 = vmatprep.mubr.f32.mxu0 0.0
    %2414 = vmatmul.mubr.f32.gmra.mxu0 %v2342
    %v2415 = vpop.f32.mrf.mxu0
    %v2416 = vadd.f32 0.0, %v2415
    %v2417 = vpop.f32.mrf.mxu0
    %2418 = vdwg.mxu0
    %v2420 = vsel %vm200, %v2411, 0
    %v2423 = vsel %vm200, %v2416, 0
    %2425 = vmatprep.subr.mxu0 0.0
    %2426 = vmatpush1.msra.mxu0 0.0
    %2427 = vmatprep.subr.mxu0 0.0
    %2428 = vmatpush1.msra.mxu0 0.0
    %2429 = vmatprep.subr.mxu0 0.0
    %2430 = vmatpush1.msra.mxu0 0.0
    %2431 = vmatprep.subr.mxu0 0.0
    %2432 = vmatpush1.msra.mxu0 0.0
    %2433 = vmatprep.subr.mxu0 0.0
    %2434 = vmatpush1.msra.mxu0 0.0
    %2435 = vmatprep.subr.mxu0 0.0
    %2436 = vmatpush1.msra.mxu0 0.0
    %2437 = vmatprep.subr.mxu0 0.0
    %2438 = vmatpush1.msra.mxu0 0.0
    %2439 = vmatprep.subr.mxu0 0.0
    %2440 = vmatpush1.msra.mxu0 0.0
    %2441 = vmatprep.subr.mxu0 0.0
    %2442 = vmatpush1.msra.mxu0 0.0
    %2443 = vmatprep.subr.mxu0 0.0
    %2444 = vmatpush1.msra.mxu0 0.0
    %2445 = vmatprep.subr.mxu0 0.0
    %2446 = vmatpush1.msra.mxu0 0.0
    %2447 = vmatprep.subr.mxu0 0.0
    %2448 = vmatpush1.msra.mxu0 0.0
    %2449 = vmatprep.subr.mxu0 0.0
    %2450 = vmatpush1.msra.mxu0 0.0
    %2451 = vmatprep.subr.mxu0 0.0
    %2452 = vmatpush1.msra.mxu0 0.0
    %2453 = vmatprep.subr.mxu0 0.0
    %2454 = vmatpush1.msra.mxu0 0.0
    %2455 = vmatprep.subr.mxu0 0.0
    %2456 = vmatpush1.msra.mxu0 %v2157
    %2457 = vmatprep.subr.mxu0 0.0
    %2458 = vmatpush2.msra.mxu0 0.0
    %2459 = vmatprep.subr.mxu0 0.0
    %2460 = vmatpush2.msra.mxu0 0.0
    %2461 = vmatprep.subr.mxu0 0.0
    %2462 = vmatpush2.msra.mxu0 0.0
    %2463 = vmatprep.subr.mxu0 0.0
    %2464 = vmatpush2.msra.mxu0 0.0
    %2465 = vmatprep.subr.mxu0 0.0
    %2466 = vmatpush2.msra.mxu0 0.0
    %2467 = vmatprep.subr.mxu0 0.0
    %2468 = vmatpush2.msra.mxu0 0.0
    %2469 = vmatprep.subr.mxu0 0.0
    %2470 = vmatpush2.msra.mxu0 0.0
    %2471 = vmatprep.subr.mxu0 0.0
    %2472 = vmatpush2.msra.mxu0 0.0
    %2473 = vmatprep.subr.mxu0 0.0
    %2474 = vmatpush2.msra.mxu0 0.0
    %2475 = vmatprep.subr.mxu0 0.0
    %2476 = vmatpush2.msra.mxu0 0.0
    %2477 = vmatprep.subr.mxu0 0.0
    %2478 = vmatpush2.msra.mxu0 0.0
    %2479 = vmatprep.subr.mxu0 0.0
    %2480 = vmatpush2.msra.mxu0 0.0
    %2481 = vmatprep.subr.mxu0 0.0
    %2482 = vmatpush2.msra.mxu0 0.0
    %2483 = vmatprep.subr.mxu0 0.0
    %2484 = vmatpush2.msra.mxu0 0.0
    %2485 = vmatprep.subr.mxu0 0.0
    %2486 = vmatpush2.msra.mxu0 0.0
    %2487 = vmatprep.subr.mxu0 0.0
    %2488 = vmatpush2.msra.mxu0 0.0
    %2489 = vmatprep.mubr.f32.mxu0 0.0
    %2490 = vmatmul.mubr.f32.gmra.mxu0 %v2420
    %v2491 = vpop.f32.mrf.mxu0
    %v2492 = vadd.f32 0.0, %v2491
    %v2493 = vpop.f32.mrf.mxu0
    %2494 = vmatprep.mubr.f32.mxu0 0.0
    %2495 = vmatmul.mubr.f32.gmra.mxu0 %v2423
    %v2496 = vpop.f32.mrf.mxu0
    %v2497 = vadd.f32 0.0, %v2496
    %v2498 = vpop.f32.mrf.mxu0
    %2499 = vdwg.mxu0
    %v2500 = vadd.f32 %v2330, %v2492
    %v2501 = vadd.f32 %v2331, %v2497
    %2502 = vrot.lane.b32.xlu0 %v1657, 48
    %v2503 = vpop.permute.xlu0 %2502
    %2504 = vrot.lane.b32.xlu0 %v1663, 48
    %v2505 = vpop.permute.xlu0 %2504
    %v2509 = vsel %vm567, %v2148, 0
    %v2512 = vsel %vm567, %v2150, 0
    %2514 = vmatprep.subr.mxu0 0.0
    %2515 = vmatpush1.msra.mxu0 0.0
    %2516 = vmatprep.subr.mxu0 0.0
    %2517 = vmatpush1.msra.mxu0 0.0
    %2518 = vmatprep.subr.mxu0 0.0
    %2519 = vmatpush1.msra.mxu0 0.0
    %2520 = vmatprep.subr.mxu0 0.0
    %2521 = vmatpush1.msra.mxu0 0.0
    %2522 = vmatprep.subr.mxu0 0.0
    %2523 = vmatpush1.msra.mxu0 0.0
    %2524 = vmatprep.subr.mxu0 0.0
    %2525 = vmatpush1.msra.mxu0 0.0
    %2526 = vmatprep.subr.mxu0 0.0
    %2527 = vmatpush1.msra.mxu0 0.0
    %2528 = vmatprep.subr.mxu0 0.0
    %2529 = vmatpush1.msra.mxu0 0.0
    %2530 = vmatprep.subr.mxu0 0.0
    %2531 = vmatpush1.msra.mxu0 0.0
    %2532 = vmatprep.subr.mxu0 0.0
    %2533 = vmatpush1.msra.mxu0 0.0
    %2534 = vmatprep.subr.mxu0 0.0
    %2535 = vmatpush1.msra.mxu0 0.0
    %2536 = vmatprep.subr.mxu0 0.0
    %2537 = vmatpush1.msra.mxu0 0.0
    %2538 = vmatprep.subr.mxu0 0.0
    %2539 = vmatpush1.msra.mxu0 0.0
    %2540 = vmatprep.subr.mxu0 0.0
    %2541 = vmatpush1.msra.mxu0 0.0
    %2542 = vmatprep.subr.mxu0 0.0
    %2543 = vmatpush1.msra.mxu0 %v2505
    %2544 = vmatprep.subr.mxu0 0.0
    %2545 = vmatpush1.msra.mxu0 %v2503
    %2546 = vmatprep.subr.mxu0 0.0
    %2547 = vmatpush2.msra.mxu0 0.0
    %2548 = vmatprep.subr.mxu0 0.0
    %2549 = vmatpush2.msra.mxu0 0.0
    %2550 = vmatprep.subr.mxu0 0.0
    %2551 = vmatpush2.msra.mxu0 0.0
    %2552 = vmatprep.subr.mxu0 0.0
    %2553 = vmatpush2.msra.mxu0 0.0
    %2554 = vmatprep.subr.mxu0 0.0
    %2555 = vmatpush2.msra.mxu0 0.0
    %2556 = vmatprep.subr.mxu0 0.0
    %2557 = vmatpush2.msra.mxu0 0.0
    %2558 = vmatprep.subr.mxu0 0.0
    %2559 = vmatpush2.msra.mxu0 0.0
    %2560 = vmatprep.subr.mxu0 0.0
    %2561 = vmatpush2.msra.mxu0 0.0
    %2562 = vmatprep.subr.mxu0 0.0
    %2563 = vmatpush2.msra.mxu0 0.0
    %2564 = vmatprep.subr.mxu0 0.0
    %2565 = vmatpush2.msra.mxu0 0.0
    %2566 = vmatprep.subr.mxu0 0.0
    %2567 = vmatpush2.msra.mxu0 0.0
    %2568 = vmatprep.subr.mxu0 0.0
    %2569 = vmatpush2.msra.mxu0 0.0
    %2570 = vmatprep.subr.mxu0 0.0
    %2571 = vmatpush2.msra.mxu0 0.0
    %2572 = vmatprep.subr.mxu0 0.0
    %2573 = vmatpush2.msra.mxu0 0.0
    %2574 = vmatprep.subr.mxu0 0.0
    %2575 = vmatpush2.msra.mxu0 0.0
    %2576 = vmatprep.subr.mxu0 0.0
    %2577 = vmatpush2.msra.mxu0 0.0
    %2578 = vmatprep.mubr.f32.mxu0 0.0
    %2579 = vmatmul.mubr.f32.gmra.mxu0 %v2509
    %v2580 = vpop.f32.mrf.mxu0
    %v2581 = vadd.f32 0.0, %v2580
    %v2582 = vpop.f32.mrf.mxu0
    %2583 = vmatprep.mubr.f32.mxu0 0.0
    %2584 = vmatmul.mubr.f32.gmra.mxu0 %v2512
    %v2585 = vpop.f32.mrf.mxu0
    %v2586 = vadd.f32 0.0, %v2585
    %v2587 = vpop.f32.mrf.mxu0
    %2588 = vdwg.mxu0
    %v2590 = vsel %vm200, %v2581, 0
    %v2593 = vsel %vm200, %v2586, 0
    %2595 = vmatprep.subr.mxu0 0.0
    %2596 = vmatpush1.msra.mxu0 0.0
    %2597 = vmatprep.subr.mxu0 0.0
    %2598 = vmatpush1.msra.mxu0 0.0
    %2599 = vmatprep.subr.mxu0 0.0
    %2600 = vmatpush1.msra.mxu0 0.0
    %2601 = vmatprep.subr.mxu0 0.0
    %2602 = vmatpush1.msra.mxu0 0.0
    %2603 = vmatprep.subr.mxu0 0.0
    %2604 = vmatpush1.msra.mxu0 0.0
    %2605 = vmatprep.subr.mxu0 0.0
    %2606 = vmatpush1.msra.mxu0 0.0
    %2607 = vmatprep.subr.mxu0 0.0
    %2608 = vmatpush1.msra.mxu0 0.0
    %2609 = vmatprep.subr.mxu0 0.0
    %2610 = vmatpush1.msra.mxu0 0.0
    %2611 = vmatprep.subr.mxu0 0.0
    %2612 = vmatpush1.msra.mxu0 0.0
    %2613 = vmatprep.subr.mxu0 0.0
    %2614 = vmatpush1.msra.mxu0 0.0
    %2615 = vmatprep.subr.mxu0 0.0
    %2616 = vmatpush1.msra.mxu0 0.0
    %2617 = vmatprep.subr.mxu0 0.0
    %2618 = vmatpush1.msra.mxu0 0.0
    %2619 = vmatprep.subr.mxu0 0.0
    %2620 = vmatpush1.msra.mxu0 0.0
    %2621 = vmatprep.subr.mxu0 0.0
    %2622 = vmatpush1.msra.mxu0 0.0
    %2623 = vmatprep.subr.mxu0 0.0
    %2624 = vmatpush1.msra.mxu0 0.0
    %2625 = vmatprep.subr.mxu0 0.0
    %2626 = vmatpush1.msra.mxu0 %v2158
    %2627 = vmatprep.subr.mxu0 0.0
    %2628 = vmatpush2.msra.mxu0 0.0
    %2629 = vmatprep.subr.mxu0 0.0
    %2630 = vmatpush2.msra.mxu0 0.0
    %2631 = vmatprep.subr.mxu0 0.0
    %2632 = vmatpush2.msra.mxu0 0.0
    %2633 = vmatprep.subr.mxu0 0.0
    %2634 = vmatpush2.msra.mxu0 0.0
    %2635 = vmatprep.subr.mxu0 0.0
    %2636 = vmatpush2.msra.mxu0 0.0
    %2637 = vmatprep.subr.mxu0 0.0
    %2638 = vmatpush2.msra.mxu0 0.0
    %2639 = vmatprep.subr.mxu0 0.0
    %2640 = vmatpush2.msra.mxu0 0.0
    %2641 = vmatprep.subr.mxu0 0.0
    %2642 = vmatpush2.msra.mxu0 0.0
    %2643 = vmatprep.subr.mxu0 0.0
    %2644 = vmatpush2.msra.mxu0 0.0
    %2645 = vmatprep.subr.mxu0 0.0
    %2646 = vmatpush2.msra.mxu0 0.0
    %2647 = vmatprep.subr.mxu0 0.0
    %2648 = vmatpush2.msra.mxu0 0.0
    %2649 = vmatprep.subr.mxu0 0.0
    %2650 = vmatpush2.msra.mxu0 0.0
    %2651 = vmatprep.subr.mxu0 0.0
    %2652 = vmatpush2.msra.mxu0 0.0
    %2653 = vmatprep.subr.mxu0 0.0
    %2654 = vmatpush2.msra.mxu0 0.0
    %2655 = vmatprep.subr.mxu0 0.0
    %2656 = vmatpush2.msra.mxu0 0.0
    %2657 = vmatprep.subr.mxu0 0.0
    %2658 = vmatpush2.msra.mxu0 0.0
    %2659 = vmatprep.mubr.f32.mxu0 0.0
    %2660 = vmatmul.mubr.f32.gmra.mxu0 %v2590
    %v2661 = vpop.f32.mrf.mxu0
    %v2662 = vadd.f32 0.0, %v2661
    %v2663 = vpop.f32.mrf.mxu0
    %2664 = vmatprep.mubr.f32.mxu0 0.0
    %2665 = vmatmul.mubr.f32.gmra.mxu0 %v2593
    %v2666 = vpop.f32.mrf.mxu0
    %v2667 = vadd.f32 0.0, %v2666
    %v2668 = vpop.f32.mrf.mxu0
    %2669 = vdwg.mxu0
    %v2670 = vadd.f32 %v2500, %v2662
    %v2671 = vadd.f32 %v2501, %v2667
    %2672 = vrot.lane.b32.xlu0 %v1657, 40
    %v2673 = vpop.permute.xlu0 %2672
    %2674 = vrot.lane.b32.xlu0 %v1663, 40
    %v2675 = vpop.permute.xlu0 %2674
    %v2679 = vsel %vm567, %v2152, 0
    %v2682 = vsel %vm567, %v2154, 0
    %2684 = vmatprep.subr.mxu0 0.0
    %2685 = vmatpush1.msra.mxu0 0.0
    %2686 = vmatprep.subr.mxu0 0.0
    %2687 = vmatpush1.msra.mxu0 0.0
    %2688 = vmatprep.subr.mxu0 0.0
    %2689 = vmatpush1.msra.mxu0 0.0
    %2690 = vmatprep.subr.mxu0 0.0
    %2691 = vmatpush1.msra.mxu0 0.0
    %2692 = vmatprep.subr.mxu0 0.0
    %2693 = vmatpush1.msra.mxu0 0.0
    %2694 = vmatprep.subr.mxu0 0.0
    %2695 = vmatpush1.msra.mxu0 0.0
    %2696 = vmatprep.subr.mxu0 0.0
    %2697 = vmatpush1.msra.mxu0 0.0
    %2698 = vmatprep.subr.mxu0 0.0
    %2699 = vmatpush1.msra.mxu0 0.0
    %2700 = vmatprep.subr.mxu0 0.0
    %2701 = vmatpush1.msra.mxu0 0.0
    %2702 = vmatprep.subr.mxu0 0.0
    %2703 = vmatpush1.msra.mxu0 0.0
    %2704 = vmatprep.subr.mxu0 0.0
    %2705 = vmatpush1.msra.mxu0 0.0
    %2706 = vmatprep.subr.mxu0 0.0
    %2707 = vmatpush1.msra.mxu0 0.0
    %2708 = vmatprep.subr.mxu0 0.0
    %2709 = vmatpush1.msra.mxu0 0.0
    %2710 = vmatprep.subr.mxu0 0.0
    %2711 = vmatpush1.msra.mxu0 0.0
    %2712 = vmatprep.subr.mxu0 0.0
    %2713 = vmatpush1.msra.mxu0 %v2675
    %2714 = vmatprep.subr.mxu0 0.0
    %2715 = vmatpush1.msra.mxu0 %v2673
    %2716 = vmatprep.subr.mxu0 0.0
    %2717 = vmatpush2.msra.mxu0 0.0
    %2718 = vmatprep.subr.mxu0 0.0
    %2719 = vmatpush2.msra.mxu0 0.0
    %2720 = vmatprep.subr.mxu0 0.0
    %2721 = vmatpush2.msra.mxu0 0.0
    %2722 = vmatprep.subr.mxu0 0.0
    %2723 = vmatpush2.msra.mxu0 0.0
    %2724 = vmatprep.subr.mxu0 0.0
    %2725 = vmatpush2.msra.mxu0 0.0
    %2726 = vmatprep.subr.mxu0 0.0
    %2727 = vmatpush2.msra.mxu0 0.0
    %2728 = vmatprep.subr.mxu0 0.0
    %2729 = vmatpush2.msra.mxu0 0.0
    %2730 = vmatprep.subr.mxu0 0.0
    %2731 = vmatpush2.msra.mxu0 0.0
    %2732 = vmatprep.subr.mxu0 0.0
    %2733 = vmatpush2.msra.mxu0 0.0
    %2734 = vmatprep.subr.mxu0 0.0
    %2735 = vmatpush2.msra.mxu0 0.0
    %2736 = vmatprep.subr.mxu0 0.0
    %2737 = vmatpush2.msra.mxu0 0.0
    %2738 = vmatprep.subr.mxu0 0.0
    %2739 = vmatpush2.msra.mxu0 0.0
    %2740 = vmatprep.subr.mxu0 0.0
    %2741 = vmatpush2.msra.mxu0 0.0
    %2742 = vmatprep.subr.mxu0 0.0
    %2743 = vmatpush2.msra.mxu0 0.0
    %2744 = vmatprep.subr.mxu0 0.0
    %2745 = vmatpush2.msra.mxu0 0.0
    %2746 = vmatprep.subr.mxu0 0.0
    %2747 = vmatpush2.msra.mxu0 0.0
    %2748 = vmatprep.mubr.f32.mxu0 0.0
    %2749 = vmatmul.mubr.f32.gmra.mxu0 %v2679
    %v2750 = vpop.f32.mrf.mxu0
    %v2751 = vadd.f32 0.0, %v2750
    %v2752 = vpop.f32.mrf.mxu0
    %2753 = vmatprep.mubr.f32.mxu0 0.0
    %2754 = vmatmul.mubr.f32.gmra.mxu0 %v2682
    %v2755 = vpop.f32.mrf.mxu0
    %v2756 = vadd.f32 0.0, %v2755
    %v2757 = vpop.f32.mrf.mxu0
    %2758 = vdwg.mxu0
    %v2760 = vsel %vm200, %v2751, 0
    %v2763 = vsel %vm200, %v2756, 0
    %2765 = vmatprep.subr.mxu0 0.0
    %2766 = vmatpush1.msra.mxu0 0.0
    %2767 = vmatprep.subr.mxu0 0.0
    %2768 = vmatpush1.msra.mxu0 0.0
    %2769 = vmatprep.subr.mxu0 0.0
    %2770 = vmatpush1.msra.mxu0 0.0
    %2771 = vmatprep.subr.mxu0 0.0
    %2772 = vmatpush1.msra.mxu0 0.0
    %2773 = vmatprep.subr.mxu0 0.0
    %2774 = vmatpush1.msra.mxu0 0.0
    %2775 = vmatprep.subr.mxu0 0.0
    %2776 = vmatpush1.msra.mxu0 0.0
    %2777 = vmatprep.subr.mxu0 0.0
    %2778 = vmatpush1.msra.mxu0 0.0
    %2779 = vmatprep.subr.mxu0 0.0
    %2780 = vmatpush1.msra.mxu0 0.0
    %2781 = vmatprep.subr.mxu0 0.0
    %2782 = vmatpush1.msra.mxu0 0.0
    %2783 = vmatprep.subr.mxu0 0.0
    %2784 = vmatpush1.msra.mxu0 0.0
    %2785 = vmatprep.subr.mxu0 0.0
    %2786 = vmatpush1.msra.mxu0 0.0
    %2787 = vmatprep.subr.mxu0 0.0
    %2788 = vmatpush1.msra.mxu0 0.0
    %2789 = vmatprep.subr.mxu0 0.0
    %2790 = vmatpush1.msra.mxu0 0.0
    %2791 = vmatprep.subr.mxu0 0.0
    %2792 = vmatpush1.msra.mxu0 0.0
    %2793 = vmatprep.subr.mxu0 0.0
    %2794 = vmatpush1.msra.mxu0 0.0
    %2795 = vmatprep.subr.mxu0 0.0
    %2796 = vmatpush1.msra.mxu0 %v2159
    %2797 = vmatprep.subr.mxu0 0.0
    %2798 = vmatpush2.msra.mxu0 0.0
    %2799 = vmatprep.subr.mxu0 0.0
    %2800 = vmatpush2.msra.mxu0 0.0
    %2801 = vmatprep.subr.mxu0 0.0
    %2802 = vmatpush2.msra.mxu0 0.0
    %2803 = vmatprep.subr.mxu0 0.0
    %2804 = vmatpush2.msra.mxu0 0.0
    %2805 = vmatprep.subr.mxu0 0.0
    %2806 = vmatpush2.msra.mxu0 0.0
    %2807 = vmatprep.subr.mxu0 0.0
    %2808 = vmatpush2.msra.mxu0 0.0
    %2809 = vmatprep.subr.mxu0 0.0
    %2810 = vmatpush2.msra.mxu0 0.0
    %2811 = vmatprep.subr.mxu0 0.0
    %2812 = vmatpush2.msra.mxu0 0.0
    %2813 = vmatprep.subr.mxu0 0.0
    %2814 = vmatpush2.msra.mxu0 0.0
    %2815 = vmatprep.subr.mxu0 0.0
    %2816 = vmatpush2.msra.mxu0 0.0
    %2817 = vmatprep.subr.mxu0 0.0
    %2818 = vmatpush2.msra.mxu0 0.0
    %2819 = vmatprep.subr.mxu0 0.0
    %2820 = vmatpush2.msra.mxu0 0.0
    %2821 = vmatprep.subr.mxu0 0.0
    %2822 = vmatpush2.msra.mxu0 0.0
    %2823 = vmatprep.subr.mxu0 0.0
    %2824 = vmatpush2.msra.mxu0 0.0
    %2825 = vmatprep.subr.mxu0 0.0
    %2826 = vmatpush2.msra.mxu0 0.0
    %2827 = vmatprep.subr.mxu0 0.0
    %2828 = vmatpush2.msra.mxu0 0.0
    %2829 = vmatprep.mubr.f32.mxu0 0.0
    %2830 = vmatmul.mubr.f32.gmra.mxu0 %v2760
    %v2831 = vpop.f32.mrf.mxu0
    %v2832 = vadd.f32 0.0, %v2831
    %v2833 = vpop.f32.mrf.mxu0
    %2834 = vmatprep.mubr.f32.mxu0 0.0
    %2835 = vmatmul.mubr.f32.gmra.mxu0 %v2763
    %v2836 = vpop.f32.mrf.mxu0
    %v2837 = vadd.f32 0.0, %v2836
    %v2838 = vpop.f32.mrf.mxu0
    %2839 = vdwg.mxu0
    %v2840 = vadd.f32 %v2670, %v2832
    %v2841 = vadd.f32 %v2671, %v2837
    %v2842 = vmul.f32 %v2840, %v2840
    %v2843 = vmul.f32 %v2841, %v2841
    %v2844 = vsel %vm43, %v2842, 0.0
    %2845 = vadd.xlane.f32.xlu0 %v2844
    %v2846 = vpop.xlane.xlu0 %2845
    %v2847 = vsel %vm43, %v2843, 0.0
    %2848 = vadd.xlane.f32.xlu0 %v2847
    %v2849 = vpop.xlane.xlu0 %2848
    %v2850 = vmul.f32 %v2846, %v50
    %v2851 = vmul.f32 %v2849, %v50
    %v2852 = vadd.f32 %v2850, 1e-05
    %v2853 = vadd.f32 %v2851, 1e-05
    %v2854 = vrsqrt.pop %v2852
    %v2855 = vrsqrt.pop %v2853
    %v2856 = vmul.f32 %v2840, %v2854
    %v2857 = vmul.f32 %v2841, %v2855
    %s2858 = scalar_lea.vmem %s6, 32
    %v2859 = vld [vmem:[%s2858] sm:$0xff]
    %v2860 = vld [vmem:[%s2858 + $0x8] sm:$0xff]
    %v2861 = vld [vmem:[%s2858 + $0x10] sm:$0xff]
    %v2862 = vld [vmem:[%s2858 + $0x18] sm:$0xff]
    %v2864 = vsel %vm43, %v2856, 0
    %v2867 = vsel %vm43, %v2857, 0
    %2869 = vmatprep.subr.mxu0 0.0
    %2870 = vmatpush1.msra.mxu0 0.0
    %2871 = vmatprep.subr.mxu0 0.0
    %2872 = vmatpush1.msra.mxu0 0.0
    %2873 = vmatprep.subr.mxu0 0.0
    %2874 = vmatpush1.msra.mxu0 0.0
    %2875 = vmatprep.subr.mxu0 0.0
    %2876 = vmatpush1.msra.mxu0 0.0
    %2877 = vmatprep.subr.mxu0 0.0
    %2878 = vmatpush1.msra.mxu0 0.0
    %2879 = vmatprep.subr.mxu0 0.0
    %2880 = vmatpush1.msra.mxu0 0.0
    %2881 = vmatprep.subr.mxu0 0.0
    %2882 = vmatpush1.msra.mxu0 0.0
    %2883 = vmatprep.subr.mxu0 0.0
    %2884 = vmatpush1.msra.mxu0 0.0
    %2885 = vmatprep.subr.mxu0 0.0
    %2886 = vmatpush1.msra.mxu0 0.0
    %2887 = vmatprep.subr.mxu0 0.0
    %2888 = vmatpush1.msra.mxu0 0.0
    %2889 = vmatprep.subr.mxu0 0.0
    %2890 = vmatpush1.msra.mxu0 0.0
    %2891 = vmatprep.subr.mxu0 0.0
    %2892 = vmatpush1.msra.mxu0 0.0
    %2893 = vmatprep.subr.mxu0 0.0
    %2894 = vmatpush1.msra.mxu0 %v2862
    %2895 = vmatprep.subr.mxu0 0.0
    %2896 = vmatpush1.msra.mxu0 %v2861
    %2897 = vmatprep.subr.mxu0 0.0
    %2898 = vmatpush1.msra.mxu0 %v2860
    %2899 = vmatprep.subr.mxu0 0.0
    %2900 = vmatpush1.msra.mxu0 %v2859
    %2901 = vmatprep.subr.mxu0 0.0
    %2902 = vmatpush2.msra.mxu0 0.0
    %2903 = vmatprep.subr.mxu0 0.0
    %2904 = vmatpush2.msra.mxu0 0.0
    %2905 = vmatprep.subr.mxu0 0.0
    %2906 = vmatpush2.msra.mxu0 0.0
    %2907 = vmatprep.subr.mxu0 0.0
    %2908 = vmatpush2.msra.mxu0 0.0
    %2909 = vmatprep.subr.mxu0 0.0
    %2910 = vmatpush2.msra.mxu0 0.0
    %2911 = vmatprep.subr.mxu0 0.0
    %2912 = vmatpush2.msra.mxu0 0.0
    %2913 = vmatprep.subr.mxu0 0.0
    %2914 = vmatpush2.msra.mxu0 0.0
    %2915 = vmatprep.subr.mxu0 0.0
    %2916 = vmatpush2.msra.mxu0 0.0
    %2917 = vmatprep.subr.mxu0 0.0
    %2918 = vmatpush2.msra.mxu0 0.0
    %2919 = vmatprep.subr.mxu0 0.0
    %2920 = vmatpush2.msra.mxu0 0.0
    %2921 = vmatprep.subr.mxu0 0.0
    %2922 = vmatpush2.msra.mxu0 0.0
    %2923 = vmatprep.subr.mxu0 0.0
    %2924 = vmatpush2.msra.mxu0 0.0
    %2925 = vmatprep.subr.mxu0 0.0
    %2926 = vmatpush2.msra.mxu0 0.0
    %2927 = vmatprep.subr.mxu0 0.0
    %2928 = vmatpush2.msra.mxu0 0.0
    %2929 = vmatprep.subr.mxu0 0.0
    %2930 = vmatpush2.msra.mxu0 0.0
    %2931 = vmatprep.subr.mxu0 0.0
    %2932 = vmatpush2.msra.mxu0 0.0
    %2933 = vmatprep.mubr.f32.mxu0 0.0
    %2934 = vmatmul.mubr.f32.gmra.mxu0 %v2864
    %v2935 = vpop.f32.mrf.mxu0
    %v2936 = vadd.f32 0.0, %v2935
    %v2937 = vpop.f32.mrf.mxu0
    %2938 = vmatprep.mubr.f32.mxu0 0.0
    %2939 = vmatmul.mubr.f32.gmra.mxu0 %v2867
    %v2940 = vpop.f32.mrf.mxu0
    %v2941 = vadd.f32 0.0, %v2940
    %v2942 = vpop.f32.mrf.mxu0
    %2943 = vdwg.mxu0
    %v2944 = vxor.u32 %v2936, 2147483648
    %v2945 = vxor.u32 %v2941, 2147483648
    %v2946 = vmul.f32 %v2944, 1.442695
    %v2947 = vpow.pop %v2946
    %v2948 = vmul.f32 %v2945, 1.442695
    %v2949 = vpow.pop %v2948
    %v2950 = vadd.f32 %v2947, 1.0
    %v2951 = vadd.f32 %v2949, 1.0
    %v2952 = vrcp.pop %v2950
    %v2953 = vmul.f32 1.0, %v2952
    %v2954 = vrcp.pop %v2951
    %v2955 = vmul.f32 1.0, %v2954
    %v2956 = vmul.f32 %v2936, %v2953
    %v2957 = vmul.f32 %v2941, %v2955
    %2960 = vrot.lane.b32.xlu0 %v2936, 64
    %v2961 = vpop.permute.xlu0 %2960
    %2962 = vrot.lane.b32.xlu0 %v2941, 64
    %v2963 = vpop.permute.xlu0 %2962
    %v2966 = vmul.f32 %v2956, %v2961
    %v2967 = vmul.f32 %v2957, %v2963
    %s2968 = scalar_lea.vmem %s7, 64
    %v2969 = vld [vmem:[%s2968] sm:$0xff]
    %v2970 = vld [vmem:[%s2968 + $0x8] sm:$0xff]
    %v2971 = vld [vmem:[%s2968 + $0x10] sm:$0xff]
    %v2972 = vld [vmem:[%s2968 + $0x18] sm:$0xff]
    %v2973 = vld [vmem:[%s2968 + $0x20] sm:$0xff]
    %v2974 = vld [vmem:[%s2968 + $0x28] sm:$0xff]
    %v2975 = vld [vmem:[%s2968 + $0x30] sm:$0xff]
    %v2976 = vld [vmem:[%s2968 + $0x38] sm:$0xff]
    %v2978 = vsel %vm1475, %v2966, 0
    %v2981 = vsel %vm1475, %v2967, 0
    %2983 = vmatprep.subr.mxu0 0.0
    %2984 = vmatpush1.msra.mxu0 0.0
    %2985 = vmatprep.subr.mxu0 0.0
    %2986 = vmatpush1.msra.mxu0 0.0
    %2987 = vmatprep.subr.mxu0 0.0
    %2988 = vmatpush1.msra.mxu0 0.0
    %2989 = vmatprep.subr.mxu0 0.0
    %2990 = vmatpush1.msra.mxu0 0.0
    %2991 = vmatprep.subr.mxu0 0.0
    %2992 = vmatpush1.msra.mxu0 0.0
    %2993 = vmatprep.subr.mxu0 0.0
    %2994 = vmatpush1.msra.mxu0 0.0
    %2995 = vmatprep.subr.mxu0 0.0
    %2996 = vmatpush1.msra.mxu0 0.0
    %2997 = vmatprep.subr.mxu0 0.0
    %2998 = vmatpush1.msra.mxu0 0.0
    %2999 = vmatprep.subr.mxu0 0.0
    %3000 = vmatpush1.msra.mxu0 %v2976
    %3001 = vmatprep.subr.mxu0 0.0
    %3002 = vmatpush1.msra.mxu0 %v2975
    %3003 = vmatprep.subr.mxu0 0.0
    %3004 = vmatpush1.msra.mxu0 %v2974
    %3005 = vmatprep.subr.mxu0 0.0
    %3006 = vmatpush1.msra.mxu0 %v2973
    %3007 = vmatprep.subr.mxu0 0.0
    %3008 = vmatpush1.msra.mxu0 %v2972
    %3009 = vmatprep.subr.mxu0 0.0
    %3010 = vmatpush1.msra.mxu0 %v2971
    %3011 = vmatprep.subr.mxu0 0.0
    %3012 = vmatpush1.msra.mxu0 %v2970
    %3013 = vmatprep.subr.mxu0 0.0
    %3014 = vmatpush1.msra.mxu0 %v2969
    %3015 = vmatprep.subr.mxu0 0.0
    %3016 = vmatpush2.msra.mxu0 0.0
    %3017 = vmatprep.subr.mxu0 0.0
    %3018 = vmatpush2.msra.mxu0 0.0
    %3019 = vmatprep.subr.mxu0 0.0
    %3020 = vmatpush2.msra.mxu0 0.0
    %3021 = vmatprep.subr.mxu0 0.0
    %3022 = vmatpush2.msra.mxu0 0.0
    %3023 = vmatprep.subr.mxu0 0.0
    %3024 = vmatpush2.msra.mxu0 0.0
    %3025 = vmatprep.subr.mxu0 0.0
    %3026 = vmatpush2.msra.mxu0 0.0
    %3027 = vmatprep.subr.mxu0 0.0
    %3028 = vmatpush2.msra.mxu0 0.0
    %3029 = vmatprep.subr.mxu0 0.0
    %3030 = vmatpush2.msra.mxu0 0.0
    %3031 = vmatprep.subr.mxu0 0.0
    %3032 = vmatpush2.msra.mxu0 0.0
    %3033 = vmatprep.subr.mxu0 0.0
    %3034 = vmatpush2.msra.mxu0 0.0
    %3035 = vmatprep.subr.mxu0 0.0
    %3036 = vmatpush2.msra.mxu0 0.0
    %3037 = vmatprep.subr.mxu0 0.0
    %3038 = vmatpush2.msra.mxu0 0.0
    %3039 = vmatprep.subr.mxu0 0.0
    %3040 = vmatpush2.msra.mxu0 0.0
    %3041 = vmatprep.subr.mxu0 0.0
    %3042 = vmatpush2.msra.mxu0 0.0
    %3043 = vmatprep.subr.mxu0 0.0
    %3044 = vmatpush2.msra.mxu0 0.0
    %3045 = vmatprep.subr.mxu0 0.0
    %3046 = vmatpush2.msra.mxu0 0.0
    %3047 = vmatprep.mubr.f32.mxu0 0.0
    %3048 = vmatmul.mubr.f32.gmra.mxu0 %v2978
    %v3049 = vpop.f32.mrf.mxu0
    %v3050 = vadd.f32 0.0, %v3049
    %v3051 = vpop.f32.mrf.mxu0
    %3052 = vmatprep.mubr.f32.mxu0 0.0
    %3053 = vmatmul.mubr.f32.gmra.mxu0 %v2981
    %v3054 = vpop.f32.mrf.mxu0
    %v3055 = vadd.f32 0.0, %v3054
    %v3056 = vpop.f32.mrf.mxu0
    %3057 = vdwg.mxu0
    %v3058 = vadd.f32 %v2840, %v3050
    %v3059 = vadd.f32 %v2841, %v3055
    %v3060 = vld [vmem:[%s8] sm:$0xff]
    %v3061 = vld [vmem:[%s8 + $0x8] sm:$0xff]
    %v3062 = vld [vmem:[%s8 + $0x10] sm:$0xff]
    %v3063 = vld [vmem:[%s8 + $0x18] sm:$0xff]
    %v3065 = vsel %vm43, %v3058, 0
    %v3068 = vsel %vm43, %v3059, 0
    %3070 = vmatprep.subr.mxu0 0.0
    %3071 = vmatpush1.msra.mxu0 0.0
    %3072 = vmatprep.subr.mxu0 0.0
    %3073 = vmatpush1.msra.mxu0 0.0
    %3074 = vmatprep.subr.mxu0 0.0
    %3075 = vmatpush1.msra.mxu0 0.0
    %3076 = vmatprep.subr.mxu0 0.0
    %3077 = vmatpush1.msra.mxu0 0.0
    %3078 = vmatprep.subr.mxu0 0.0
    %3079 = vmatpush1.msra.mxu0 0.0
    %3080 = vmatprep.subr.mxu0 0.0
    %3081 = vmatpush1.msra.mxu0 0.0
    %3082 = vmatprep.subr.mxu0 0.0
    %3083 = vmatpush1.msra.mxu0 0.0
    %3084 = vmatprep.subr.mxu0 0.0
    %3085 = vmatpush1.msra.mxu0 0.0
    %3086 = vmatprep.subr.mxu0 0.0
    %3087 = vmatpush1.msra.mxu0 0.0
    %3088 = vmatprep.subr.mxu0 0.0
    %3089 = vmatpush1.msra.mxu0 0.0
    %3090 = vmatprep.subr.mxu0 0.0
    %3091 = vmatpush1.msra.mxu0 0.0
    %3092 = vmatprep.subr.mxu0 0.0
    %3093 = vmatpush1.msra.mxu0 0.0
    %3094 = vmatprep.subr.mxu0 0.0
    %3095 = vmatpush1.msra.mxu0 %v3063
    %3096 = vmatprep.subr.mxu0 0.0
    %3097 = vmatpush1.msra.mxu0 %v3062
    %3098 = vmatprep.subr.mxu0 0.0
    %3099 = vmatpush1.msra.mxu0 %v3061
    %3100 = vmatprep.subr.mxu0 0.0
    %3101 = vmatpush1.msra.mxu0 %v3060
    %3102 = vmatprep.subr.mxu0 0.0
    %3103 = vmatpush2.msra.mxu0 0.0
    %3104 = vmatprep.subr.mxu0 0.0
    %3105 = vmatpush2.msra.mxu0 0.0
    %3106 = vmatprep.subr.mxu0 0.0
    %3107 = vmatpush2.msra.mxu0 0.0
    %3108 = vmatprep.subr.mxu0 0.0
    %3109 = vmatpush2.msra.mxu0 0.0
    %3110 = vmatprep.subr.mxu0 0.0
    %3111 = vmatpush2.msra.mxu0 0.0
    %3112 = vmatprep.subr.mxu0 0.0
    %3113 = vmatpush2.msra.mxu0 0.0
    %3114 = vmatprep.subr.mxu0 0.0
    %3115 = vmatpush2.msra.mxu0 0.0
    %3116 = vmatprep.subr.mxu0 0.0
    %3117 = vmatpush2.msra.mxu0 0.0
    %3118 = vmatprep.subr.mxu0 0.0
    %3119 = vmatpush2.msra.mxu0 0.0
    %3120 = vmatprep.subr.mxu0 0.0
    %3121 = vmatpush2.msra.mxu0 0.0
    %3122 = vmatprep.subr.mxu0 0.0
    %3123 = vmatpush2.msra.mxu0 0.0
    %3124 = vmatprep.subr.mxu0 0.0
    %3125 = vmatpush2.msra.mxu0 0.0
    %3126 = vmatprep.subr.mxu0 0.0
    %3127 = vmatpush2.msra.mxu0 0.0
    %3128 = vmatprep.subr.mxu0 0.0
    %3129 = vmatpush2.msra.mxu0 0.0
    %3130 = vmatprep.subr.mxu0 0.0
    %3131 = vmatpush2.msra.mxu0 0.0
    %3132 = vmatprep.subr.mxu0 0.0
    %3133 = vmatpush2.msra.mxu0 0.0
    %3134 = vmatprep.mubr.f32.mxu0 0.0
    %3135 = vmatmul.mubr.f32.gmra.mxu0 %v3065
    %v3136 = vpop.f32.mrf.mxu0
    %v3137 = vadd.f32 0.0, %v3136
    %v3138 = vpop.f32.mrf.mxu0
    %3139 = vmatprep.mubr.f32.mxu0 0.0
    %3140 = vmatmul.mubr.f32.gmra.mxu0 %v3068
    %v3141 = vpop.f32.mrf.mxu0
    %v3142 = vadd.f32 0.0, %v3141
    %v3143 = vpop.f32.mrf.mxu0
    %3144 = vdwg.mxu0
    %3145 = vst [vmem:[#allocation2] sm:$0xff] %v3137
    %3146 = vst [vmem:[#allocation2 + $0x8] sm:$0xff] %v3142
    // Predicated region
    $region38: #{transformer_decoder_phi_forward.1} parent=1 // pred_check
      _
    $region39: #{transformer_decoder_phi_forward.1} parent=1 // pred_check_branch
      %3148 = sbr.rel (0) target = $region41
    $region40: #{transformer_decoder_phi_forward.1} parent=1 // pred_region
      %s3150 = ssub.s32 256, 256
      %3151 = vsyncadd [#allocation3], %s3150
      %s3152 = sshll.u32 [#allocation2], 4
      %s3153 = int_to_ptr.vmem [resolvable:$true] %s3152
      %3158 = dma.vmem_to_hbm [thread:$0]  %s3153, 256, %s9, [#allocation3], 128, 128, 8
    $region41: #{transformer_decoder_phi_forward.1} parent=1 // pred_fallthru
      _
    // Predicated region
    $region42: #{transformer_decoder_phi_forward.1} parent=1 // pred_check
      _
    $region43: #{transformer_decoder_phi_forward.1} parent=1 // pred_check_branch
      %3160 = sbr.rel (0) target = $region45
    $region44: #{transformer_decoder_phi_forward.1} parent=1 // pred_region
      %3161 = dma.done [#allocation3], 256
    $region45: #{transformer_decoder_phi_forward.1} parent=1 // pred_fallthru
      _
    %3162 = vsyncpa [#allocation3], 1

</llo_original>
